<compile_context>
chip_gen: v7x
topology: tpu7x:2x2x1
jax: 0.10.0
libtpu: 0.0.40
codegen_flags: <defaults>
</compile_context>

<pallas_src>
import jax
import jax.numpy as jnp
from jax import lax
from jax.experimental import pallas as pl
from jax.experimental.pallas import tpu as pltpu


def net_kernel(x_ref, w1_ref, b1_ref, w2_ref, b2_ref,
               wselT_ref, fc1_b_ref, fc2_w_ref, fc2_b_ref,
               out_ref, e1_ref, rc1_ref, e2_ref):
    """One grid step processes BN samples (BN on the lane dim).

    x_ref    : (13, 25, BN)   input block, W on sublanes, batch on lanes
    e1_ref   : (40, 22, BN)   relu(conv1) rows, flat index = row*4 + c
    rc1_ref  : (20, 21, BN)   dense pool1 at even rows, flat = a*4 + c
    e2_ref   : ( 8, 19, BN)   relu(conv2) dense rows, flat = h2*2 + co
    out_ref  : ( 1, BN)
    """
    f32 = jnp.float32

    # ---- stage 1: conv1 (1->4, k=4) + bias + relu, one output row at a time
    def conv1_row(i, carry):
        acc = [None] * 4
        for ki in range(4):
            for kj in range(4):
                xr = x_ref[i + ki, kj:kj + 22, :]                 # (22, BN)
                for c in range(4):
                    t = w1_ref[c * 16 + ki * 4 + kj] * xr
                    acc[c] = t if acc[c] is None else acc[c] + t
        for c in range(4):
            e1_ref[i * 4 + c] = jnp.maximum(acc[c] + b1_ref[c], 0.0)
        return carry

    lax.fori_loop(0, 10, conv1_row, 0)

    # ---- stage 2: pool1 on the dense grid, only the even rows 2a are needed
    # rc1[a, c][w] = max over e1[{2a,2a+1}, c][{w,w+1}]   (w in [0,21))
    def pool1_row(a, carry):
        for c in range(4):
            m0 = jnp.maximum(e1_ref[8 * a + c, 0:21, :],
                             e1_ref[8 * a + c, 1:22, :])
            m1 = jnp.maximum(e1_ref[8 * a + 4 + c, 0:21, :],
                             e1_ref[8 * a + 4 + c, 1:22, :])
            rc1_ref[a * 4 + c] = jnp.maximum(m0, m1)
        return carry

    lax.fori_loop(0, 5, pool1_row, 0)

    # ---- stage 3: conv2 (4->2, k=2) "dilated" on the dense pool1 grid, only
    # at the 4 dense rows H = 2*h2 that pool2 ever samples.
    # e2[h2, co][W] = relu(b2 + sum_{ci,ki,kj} w2 * rc1[h2+ki, ci][W+2kj])
    def conv2_row(h2, carry):
        acc = [None, None]
        for ki in range(2):
            for kj in range(2):
                for ci in range(4):
                    r = rc1_ref[4 * h2 + 4 * ki + ci,
                                2 * kj:2 * kj + 19, :]            # (19, BN)
                    for co in range(2):
                        t = w2_ref[co * 16 + ci * 4 + ki * 2 + kj] * r
                        acc[co] = t if acc[co] is None else acc[co] + t
        for co in range(2):
            e2_ref[h2 * 2 + co] = jnp.maximum(acc[co] + b2_ref[co], 0.0)
        return carry

    lax.fori_loop(0, 4, conv2_row, 0)

    # ---- stage 4: pool2 (pairwise max, offset 2 on the dense grid) with the
    # stride-4 column gather folded into scattered fc1 weights.
    # R_{c,p}[W] = pool2-dense value; wselT[c*2+p][j, 4q] = fc1_w[j, c*10+p*5+q]
    y_acc = None
    for c in range(2):
        for p in range(2):
            r0 = jnp.maximum(e2_ref[4 * p + c, 0:17, :],
                             e2_ref[4 * p + c, 2:19, :])
            r1 = jnp.maximum(e2_ref[4 * p + 2 + c, 0:17, :],
                             e2_ref[4 * p + 2 + c, 2:19, :])
            R = jnp.maximum(r0, r1)                               # (17, BN)
            d = jnp.dot(wselT_ref[c * 2 + p], R,
                        preferred_element_type=f32)               # (20, BN)
            y_acc = d if y_acc is None else y_acc + d
    y = jnp.maximum(y_acc + fc1_b_ref[...], 0.0)                  # (20, BN)

    # ---- fc2: one small dot, lane-dense (1, BN) store -----------------------
    out = jnp.dot(fc2_w_ref[...], y, preferred_element_type=f32) + fc2_b_ref[0]
    out_ref[...] = out.astype(out_ref.dtype)


def net_forward(x, params, block_n=128):
    """x: NCHW (N, 1, 13, 25).  Returns (N, 1)."""
    w1, b1, w2, b2, fc1_w, fc1_b, fc2_w, fc2_b = params
    f32 = jnp.float32
    assert block_n % 128 == 0, "batch block must be a multiple of 128 (lanes)"
    N = x.shape[0]
    nb = max(1, -(-N // block_n))
    n_pad = nb * block_n

    # batch -> lane dim: (H, W, N_pad)
    xk = x[:, 0, :, :].astype(f32)                                # (N, 13, 25)
    if n_pad != N:
        xk = jnp.pad(xk, ((0, n_pad - N), (0, 0), (0, 0)))
    xk = jnp.transpose(xk, (1, 2, 0))                             # (13, 25, n_pad)

    # fc1 weights scattered onto the dense pool2 column grid (cols 0,4,...,16)
    # wselT[c*2+p][j, 4q] = fc1_w[j, c*10 + p*5 + q]; zeros elsewhere.
    wselT = jnp.zeros((2, 2, 20, 17), f32)
    wselT = wselT.at[:, :, :, 0:17:4].set(
        jnp.transpose(fc1_w.reshape(20, 2, 2, 5), (1, 2, 0, 3)))
    wselT = wselT.reshape(4, 20, 17)

    vmem = pltpu.MemorySpace.VMEM
    smem = pltpu.MemorySpace.SMEM

    cost = pl.CostEstimate(flops=34000 * n_pad, transcendentals=0,
                           bytes_accessed=(13 * 25 * 4 + 4) * n_pad)

    out = pl.pallas_call(
        net_kernel,
        out_shape=jax.ShapeDtypeStruct((1, n_pad), f32),
        grid=(nb,),
        in_specs=[
            pl.BlockSpec((13, 25, block_n), lambda i: (0, 0, i)),  # x block
            pl.BlockSpec(memory_space=smem),   # conv1 weight, flat (64,)
            pl.BlockSpec(memory_space=smem),   # conv1 bias (4,)
            pl.BlockSpec(memory_space=smem),   # conv2 weight, flat (32,)
            pl.BlockSpec(memory_space=smem),   # conv2 bias (2,)
            pl.BlockSpec(memory_space=vmem),   # fc1 scattered weight (4,20,17)
            pl.BlockSpec(memory_space=vmem),   # fc1 bias (20, 1)
            pl.BlockSpec(memory_space=vmem),   # fc2 weight (1, 20)
            pl.BlockSpec(memory_space=smem),   # fc2 bias (1,)
        ],
        out_specs=pl.BlockSpec((1, block_n), lambda i: (0, i)),
        scratch_shapes=[
            pltpu.VMEM((40, 22, block_n), f32),   # relu(conv1), row*4+c
            pltpu.VMEM((20, 21, block_n), f32),   # dense pool1 even rows, a*4+c
            pltpu.VMEM((8, 19, block_n), f32),    # relu(conv2) dense, h2*2+co
        ],
        compiler_params=pltpu.CompilerParams(
            dimension_semantics=("parallel",)),
        cost_estimate=cost,
    )(xk,
      w1.reshape(-1).astype(f32), b1.astype(f32),
      w2.reshape(-1).astype(f32), b2.astype(f32),
      wselT, fc1_b.reshape(20, 1).astype(f32),
      fc2_w.astype(f32), fc2_b.astype(f32))
    return out.reshape(-1)[:N].reshape(N, 1)


def net_forward_ref(x, params):
    """Pure-JAX reference mirroring the PyTorch forward (NCHW)."""
    w1, b1, w2, b2, fc1_w, fc1_b, fc2_w, fc2_b = params
    dn = ('NCHW', 'OIHW', 'NCHW')
    with jax.default_matmul_precision('float32'):
        y = jax.lax.conv_general_dilated(x, w1, (1, 1), 'VALID',
                                         dimension_numbers=dn,
                                         precision=jax.lax.Precision.HIGHEST)
        y = jax.nn.relu(y + b1[None, :, None, None])
        y = jax.lax.reduce_window(y, -jnp.inf, jax.lax.max,
                                  (1, 1, 2, 2), (1, 1, 2, 2), 'VALID')
        y = jax.lax.conv_general_dilated(y, w2, (1, 1), 'VALID',
                                         dimension_numbers=dn,
                                         precision=jax.lax.Precision.HIGHEST)
        y = jax.nn.relu(y + b2[None, :, None, None])
        y = jax.lax.reduce_window(y, -jnp.inf, jax.lax.max,
                                  (1, 1, 2, 2), (1, 1, 2, 2), 'VALID')
        y = y.reshape(-1, 20)
        y = jax.nn.relu(jnp.dot(y, fc1_w.T) + fc1_b)
        return jnp.dot(y, fc2_w.T) + fc2_b


def init_params(key):
    ks = jax.random.split(key, 8)

    def u(k, shape, fan_in):
        bound = 1.0 / float(fan_in) ** 0.5
        return jax.random.uniform(k, shape, jnp.float32, -bound, bound)

    w1 = u(ks[0], (4, 1, 4, 4), 1 * 4 * 4)
    b1 = u(ks[1], (4,), 1 * 4 * 4)
    w2 = u(ks[2], (2, 4, 2, 2), 4 * 2 * 2)
    b2 = u(ks[3], (2,), 4 * 2 * 2)
    fc1_w = u(ks[4], (20, 20), 20)
    fc1_b = u(ks[5], (20,), 20)
    fc2_w = u(ks[6], (1, 20), 20)      # net_labels == 'energy' -> out dim 1
    fc2_b = u(ks[7], (1,), 20)
    return (w1, b1, w2, b2, fc1_w, fc1_b, fc2_w, fc2_b)


if __name__ == "__main__":
    key = jax.random.PRNGKey(0)
    kx, kp = jax.random.split(key)
    # NCHW input; 13x25 spatial makes the flatten exactly 2*2*5 = 20 features.
    x = jax.random.normal(kx, (2, 1, 13, 25), jnp.float32)
    params = init_params(kp)

    out = net_forward(x, params)
    out = jax.block_until_ready(out)

    ref = net_forward_ref(x, params)
    assert out.shape == (2, 1), out.shape
    assert jnp.allclose(out, ref, atol=1e-2, rtol=1e-2), (out, ref)
    print("KERNEL_OK")
</pallas_src>

<mosaic_0001>
module attributes {stable_mosaic.version = 11 : i64} {
  func.func @net_kernel(%arg0: i32, %arg1: memref<13x25x128xf32, #tpu.memory_space<vmem>>, %arg2: memref<64xf32, #tpu.memory_space<smem>>, %arg3: memref<4xf32, #tpu.memory_space<smem>>, %arg4: memref<32xf32, #tpu.memory_space<smem>>, %arg5: memref<2xf32, #tpu.memory_space<smem>>, %arg6: memref<4x20x17xf32, #tpu.memory_space<vmem>>, %arg7: memref<20x1xf32, #tpu.memory_space<vmem>>, %arg8: memref<1x20xf32, #tpu.memory_space<vmem>>, %arg9: memref<1xf32, #tpu.memory_space<smem>>, %arg10: memref<1x128xf32, #tpu.memory_space<vmem>>, %arg11: memref<40x22x128xf32, #tpu.memory_space<vmem>>, %arg12: memref<20x21x128xf32, #tpu.memory_space<vmem>>, %arg13: memref<8x19x128xf32, #tpu.memory_space<vmem>>) attributes {dimension_semantics = [#tpu.dimension_semantics<parallel>], iteration_bounds = array<i64: 1>, scalar_prefetch = 0 : i64, scratch_operands = 3 : i64, tpu.core_type = #tpu.core_type<tc>, window_params = [{transform_indices = @transform_0, window_bounds = array<i64: 13, 25, 128>}, {transform_indices = @transform_1, window_bounds = array<i64: 64>}, {transform_indices = @transform_2, window_bounds = array<i64: 4>}, {transform_indices = @transform_3, window_bounds = array<i64: 32>}, {transform_indices = @transform_4, window_bounds = array<i64: 2>}, {pipeline_mode = #tpu.pipeline_mode<synchronous>, transform_indices = @transform_5, window_bounds = array<i64: 4, 20, 17>}, {pipeline_mode = #tpu.pipeline_mode<synchronous>, transform_indices = @transform_6, window_bounds = array<i64: 20, 1>}, {pipeline_mode = #tpu.pipeline_mode<synchronous>, transform_indices = @transform_7, window_bounds = array<i64: 1, 20>}, {transform_indices = @transform_8, window_bounds = array<i64: 1>}, {transform_indices = @transform_9, window_bounds = array<i64: 1, 128>}]} {
    %c0_i32 = arith.constant 0 : i32
    %c10_i32 = arith.constant 10 : i32
    %0 = arith.addi %c0_i32, %c10_i32 : i32
    %c1_i32 = arith.constant 1 : i32
    scf.for %arg14 = %c0_i32 to %0 step %c1_i32  : i32 {
      %c0_i32_71 = arith.constant 0 : i32
      %73 = arith.addi %arg14, %c0_i32_71 : i32
      %74 = arith.index_cast %73 : i32 to index
      %c0_72 = arith.constant 0 : index
      %c0_73 = arith.constant 0 : index
      %75 = vector.load %arg1[%74, %c0_72, %c0_73] : memref<13x25x128xf32, #tpu.memory_space<vmem>>, vector<1x22x128xf32>
      %76 = vector.shape_cast %75 : vector<1x22x128xf32> to vector<22x128xf32>
      %c0_74 = arith.constant 0 : index
      %77 = memref.load %arg2[%c0_74] : memref<64xf32, #tpu.memory_space<smem>>
      %78 = vector.broadcast %77 : f32 to vector<22x128xf32>
      %79 = arith.mulf %78, %76 : vector<22x128xf32>
      %c16 = arith.constant 16 : index
      %80 = memref.load %arg2[%c16] : memref<64xf32, #tpu.memory_space<smem>>
      %81 = vector.broadcast %80 : f32 to vector<22x128xf32>
      %82 = arith.mulf %81, %76 : vector<22x128xf32>
      %c32 = arith.constant 32 : index
      %83 = memref.load %arg2[%c32] : memref<64xf32, #tpu.memory_space<smem>>
      %84 = vector.broadcast %83 : f32 to vector<22x128xf32>
      %85 = arith.mulf %84, %76 : vector<22x128xf32>
      %c48 = arith.constant 48 : index
      %86 = memref.load %arg2[%c48] : memref<64xf32, #tpu.memory_space<smem>>
      %87 = vector.broadcast %86 : f32 to vector<22x128xf32>
      %88 = arith.mulf %87, %76 : vector<22x128xf32>
      %c0_i32_75 = arith.constant 0 : i32
      %89 = arith.addi %arg14, %c0_i32_75 : i32
      %90 = arith.index_cast %89 : i32 to index
      %c1_76 = arith.constant 1 : index
      %c0_77 = arith.constant 0 : index
      %91 = vector.load %arg1[%90, %c1_76, %c0_77] : memref<13x25x128xf32, #tpu.memory_space<vmem>>, vector<1x22x128xf32>
      %92 = vector.shape_cast %91 : vector<1x22x128xf32> to vector<22x128xf32>
      %c1_78 = arith.constant 1 : index
      %93 = memref.load %arg2[%c1_78] : memref<64xf32, #tpu.memory_space<smem>>
      %94 = vector.broadcast %93 : f32 to vector<22x128xf32>
      %95 = arith.mulf %94, %92 : vector<22x128xf32>
      %96 = arith.addf %79, %95 : vector<22x128xf32>
      %c17 = arith.constant 17 : index
      %97 = memref.load %arg2[%c17] : memref<64xf32, #tpu.memory_space<smem>>
      %98 = vector.broadcast %97 : f32 to vector<22x128xf32>
      %99 = arith.mulf %98, %92 : vector<22x128xf32>
      %100 = arith.addf %82, %99 : vector<22x128xf32>
      %c33 = arith.constant 33 : index
      %101 = memref.load %arg2[%c33] : memref<64xf32, #tpu.memory_space<smem>>
      %102 = vector.broadcast %101 : f32 to vector<22x128xf32>
      %103 = arith.mulf %102, %92 : vector<22x128xf32>
      %104 = arith.addf %85, %103 : vector<22x128xf32>
      %c49 = arith.constant 49 : index
      %105 = memref.load %arg2[%c49] : memref<64xf32, #tpu.memory_space<smem>>
      %106 = vector.broadcast %105 : f32 to vector<22x128xf32>
      %107 = arith.mulf %106, %92 : vector<22x128xf32>
      %108 = arith.addf %88, %107 : vector<22x128xf32>
      %c0_i32_79 = arith.constant 0 : i32
      %109 = arith.addi %arg14, %c0_i32_79 : i32
      %110 = arith.index_cast %109 : i32 to index
      %c2_80 = arith.constant 2 : index
      %c0_81 = arith.constant 0 : index
      %111 = vector.load %arg1[%110, %c2_80, %c0_81] : memref<13x25x128xf32, #tpu.memory_space<vmem>>, vector<1x22x128xf32>
      %112 = vector.shape_cast %111 : vector<1x22x128xf32> to vector<22x128xf32>
      %c2_82 = arith.constant 2 : index
      %113 = memref.load %arg2[%c2_82] : memref<64xf32, #tpu.memory_space<smem>>
      %114 = vector.broadcast %113 : f32 to vector<22x128xf32>
      %115 = arith.mulf %114, %112 : vector<22x128xf32>
      %116 = arith.addf %96, %115 : vector<22x128xf32>
      %c18 = arith.constant 18 : index
      %117 = memref.load %arg2[%c18] : memref<64xf32, #tpu.memory_space<smem>>
      %118 = vector.broadcast %117 : f32 to vector<22x128xf32>
      %119 = arith.mulf %118, %112 : vector<22x128xf32>
      %120 = arith.addf %100, %119 : vector<22x128xf32>
      %c34 = arith.constant 34 : index
      %121 = memref.load %arg2[%c34] : memref<64xf32, #tpu.memory_space<smem>>
      %122 = vector.broadcast %121 : f32 to vector<22x128xf32>
      %123 = arith.mulf %122, %112 : vector<22x128xf32>
      %124 = arith.addf %104, %123 : vector<22x128xf32>
      %c50 = arith.constant 50 : index
      %125 = memref.load %arg2[%c50] : memref<64xf32, #tpu.memory_space<smem>>
      %126 = vector.broadcast %125 : f32 to vector<22x128xf32>
      %127 = arith.mulf %126, %112 : vector<22x128xf32>
      %128 = arith.addf %108, %127 : vector<22x128xf32>
      %c0_i32_83 = arith.constant 0 : i32
      %129 = arith.addi %arg14, %c0_i32_83 : i32
      %130 = arith.index_cast %129 : i32 to index
      %c3_84 = arith.constant 3 : index
      %c0_85 = arith.constant 0 : index
      %131 = vector.load %arg1[%130, %c3_84, %c0_85] : memref<13x25x128xf32, #tpu.memory_space<vmem>>, vector<1x22x128xf32>
      %132 = vector.shape_cast %131 : vector<1x22x128xf32> to vector<22x128xf32>
      %c3_86 = arith.constant 3 : index
      %133 = memref.load %arg2[%c3_86] : memref<64xf32, #tpu.memory_space<smem>>
      %134 = vector.broadcast %133 : f32 to vector<22x128xf32>
      %135 = arith.mulf %134, %132 : vector<22x128xf32>
      %136 = arith.addf %116, %135 : vector<22x128xf32>
      %c19 = arith.constant 19 : index
      %137 = memref.load %arg2[%c19] : memref<64xf32, #tpu.memory_space<smem>>
      %138 = vector.broadcast %137 : f32 to vector<22x128xf32>
      %139 = arith.mulf %138, %132 : vector<22x128xf32>
      %140 = arith.addf %120, %139 : vector<22x128xf32>
      %c35 = arith.constant 35 : index
      %141 = memref.load %arg2[%c35] : memref<64xf32, #tpu.memory_space<smem>>
      %142 = vector.broadcast %141 : f32 to vector<22x128xf32>
      %143 = arith.mulf %142, %132 : vector<22x128xf32>
      %144 = arith.addf %124, %143 : vector<22x128xf32>
      %c51 = arith.constant 51 : index
      %145 = memref.load %arg2[%c51] : memref<64xf32, #tpu.memory_space<smem>>
      %146 = vector.broadcast %145 : f32 to vector<22x128xf32>
      %147 = arith.mulf %146, %132 : vector<22x128xf32>
      %148 = arith.addf %128, %147 : vector<22x128xf32>
      %c1_i32_87 = arith.constant 1 : i32
      %149 = arith.addi %arg14, %c1_i32_87 : i32
      %150 = arith.index_cast %149 : i32 to index
      %c0_88 = arith.constant 0 : index
      %c0_89 = arith.constant 0 : index
      %151 = vector.load %arg1[%150, %c0_88, %c0_89] : memref<13x25x128xf32, #tpu.memory_space<vmem>>, vector<1x22x128xf32>
      %152 = vector.shape_cast %151 : vector<1x22x128xf32> to vector<22x128xf32>
      %c4_90 = arith.constant 4 : index
      %153 = memref.load %arg2[%c4_90] : memref<64xf32, #tpu.memory_space<smem>>
      %154 = vector.broadcast %153 : f32 to vector<22x128xf32>
      %155 = arith.mulf %154, %152 : vector<22x128xf32>
      %156 = arith.addf %136, %155 : vector<22x128xf32>
      %c20 = arith.constant 20 : index
      %157 = memref.load %arg2[%c20] : memref<64xf32, #tpu.memory_space<smem>>
      %158 = vector.broadcast %157 : f32 to vector<22x128xf32>
      %159 = arith.mulf %158, %152 : vector<22x128xf32>
      %160 = arith.addf %140, %159 : vector<22x128xf32>
      %c36 = arith.constant 36 : index
      %161 = memref.load %arg2[%c36] : memref<64xf32, #tpu.memory_space<smem>>
      %162 = vector.broadcast %161 : f32 to vector<22x128xf32>
      %163 = arith.mulf %162, %152 : vector<22x128xf32>
      %164 = arith.addf %144, %163 : vector<22x128xf32>
      %c52 = arith.constant 52 : index
      %165 = memref.load %arg2[%c52] : memref<64xf32, #tpu.memory_space<smem>>
      %166 = vector.broadcast %165 : f32 to vector<22x128xf32>
      %167 = arith.mulf %166, %152 : vector<22x128xf32>
      %168 = arith.addf %148, %167 : vector<22x128xf32>
      %c1_i32_91 = arith.constant 1 : i32
      %169 = arith.addi %arg14, %c1_i32_91 : i32
      %170 = arith.index_cast %169 : i32 to index
      %c1_92 = arith.constant 1 : index
      %c0_93 = arith.constant 0 : index
      %171 = vector.load %arg1[%170, %c1_92, %c0_93] : memref<13x25x128xf32, #tpu.memory_space<vmem>>, vector<1x22x128xf32>
      %172 = vector.shape_cast %171 : vector<1x22x128xf32> to vector<22x128xf32>
      %c5_94 = arith.constant 5 : index
      %173 = memref.load %arg2[%c5_94] : memref<64xf32, #tpu.memory_space<smem>>
      %174 = vector.broadcast %173 : f32 to vector<22x128xf32>
      %175 = arith.mulf %174, %172 : vector<22x128xf32>
      %176 = arith.addf %156, %175 : vector<22x128xf32>
      %c21 = arith.constant 21 : index
      %177 = memref.load %arg2[%c21] : memref<64xf32, #tpu.memory_space<smem>>
      %178 = vector.broadcast %177 : f32 to vector<22x128xf32>
      %179 = arith.mulf %178, %172 : vector<22x128xf32>
      %180 = arith.addf %160, %179 : vector<22x128xf32>
      %c37 = arith.constant 37 : index
      %181 = memref.load %arg2[%c37] : memref<64xf32, #tpu.memory_space<smem>>
      %182 = vector.broadcast %181 : f32 to vector<22x128xf32>
      %183 = arith.mulf %182, %172 : vector<22x128xf32>
      %184 = arith.addf %164, %183 : vector<22x128xf32>
      %c53 = arith.constant 53 : index
      %185 = memref.load %arg2[%c53] : memref<64xf32, #tpu.memory_space<smem>>
      %186 = vector.broadcast %185 : f32 to vector<22x128xf32>
      %187 = arith.mulf %186, %172 : vector<22x128xf32>
      %188 = arith.addf %168, %187 : vector<22x128xf32>
      %c1_i32_95 = arith.constant 1 : i32
      %189 = arith.addi %arg14, %c1_i32_95 : i32
      %190 = arith.index_cast %189 : i32 to index
      %c2_96 = arith.constant 2 : index
      %c0_97 = arith.constant 0 : index
      %191 = vector.load %arg1[%190, %c2_96, %c0_97] : memref<13x25x128xf32, #tpu.memory_space<vmem>>, vector<1x22x128xf32>
      %192 = vector.shape_cast %191 : vector<1x22x128xf32> to vector<22x128xf32>
      %c6_98 = arith.constant 6 : index
      %193 = memref.load %arg2[%c6_98] : memref<64xf32, #tpu.memory_space<smem>>
      %194 = vector.broadcast %193 : f32 to vector<22x128xf32>
      %195 = arith.mulf %194, %192 : vector<22x128xf32>
      %196 = arith.addf %176, %195 : vector<22x128xf32>
      %c22 = arith.constant 22 : index
      %197 = memref.load %arg2[%c22] : memref<64xf32, #tpu.memory_space<smem>>
      %198 = vector.broadcast %197 : f32 to vector<22x128xf32>
      %199 = arith.mulf %198, %192 : vector<22x128xf32>
      %200 = arith.addf %180, %199 : vector<22x128xf32>
      %c38 = arith.constant 38 : index
      %201 = memref.load %arg2[%c38] : memref<64xf32, #tpu.memory_space<smem>>
      %202 = vector.broadcast %201 : f32 to vector<22x128xf32>
      %203 = arith.mulf %202, %192 : vector<22x128xf32>
      %204 = arith.addf %184, %203 : vector<22x128xf32>
      %c54 = arith.constant 54 : index
      %205 = memref.load %arg2[%c54] : memref<64xf32, #tpu.memory_space<smem>>
      %206 = vector.broadcast %205 : f32 to vector<22x128xf32>
      %207 = arith.mulf %206, %192 : vector<22x128xf32>
      %208 = arith.addf %188, %207 : vector<22x128xf32>
      %c1_i32_99 = arith.constant 1 : i32
      %209 = arith.addi %arg14, %c1_i32_99 : i32
      %210 = arith.index_cast %209 : i32 to index
      %c3_100 = arith.constant 3 : index
      %c0_101 = arith.constant 0 : index
      %211 = vector.load %arg1[%210, %c3_100, %c0_101] : memref<13x25x128xf32, #tpu.memory_space<vmem>>, vector<1x22x128xf32>
      %212 = vector.shape_cast %211 : vector<1x22x128xf32> to vector<22x128xf32>
      %c7_102 = arith.constant 7 : index
      %213 = memref.load %arg2[%c7_102] : memref<64xf32, #tpu.memory_space<smem>>
      %214 = vector.broadcast %213 : f32 to vector<22x128xf32>
      %215 = arith.mulf %214, %212 : vector<22x128xf32>
      %216 = arith.addf %196, %215 : vector<22x128xf32>
      %c23 = arith.constant 23 : index
      %217 = memref.load %arg2[%c23] : memref<64xf32, #tpu.memory_space<smem>>
      %218 = vector.broadcast %217 : f32 to vector<22x128xf32>
      %219 = arith.mulf %218, %212 : vector<22x128xf32>
      %220 = arith.addf %200, %219 : vector<22x128xf32>
      %c39 = arith.constant 39 : index
      %221 = memref.load %arg2[%c39] : memref<64xf32, #tpu.memory_space<smem>>
      %222 = vector.broadcast %221 : f32 to vector<22x128xf32>
      %223 = arith.mulf %222, %212 : vector<22x128xf32>
      %224 = arith.addf %204, %223 : vector<22x128xf32>
      %c55 = arith.constant 55 : index
      %225 = memref.load %arg2[%c55] : memref<64xf32, #tpu.memory_space<smem>>
      %226 = vector.broadcast %225 : f32 to vector<22x128xf32>
      %227 = arith.mulf %226, %212 : vector<22x128xf32>
      %228 = arith.addf %208, %227 : vector<22x128xf32>
      %c2_i32 = arith.constant 2 : i32
      %229 = arith.addi %arg14, %c2_i32 : i32
      %230 = arith.index_cast %229 : i32 to index
      %c0_103 = arith.constant 0 : index
      %c0_104 = arith.constant 0 : index
      %231 = vector.load %arg1[%230, %c0_103, %c0_104] : memref<13x25x128xf32, #tpu.memory_space<vmem>>, vector<1x22x128xf32>
      %232 = vector.shape_cast %231 : vector<1x22x128xf32> to vector<22x128xf32>
      %c8 = arith.constant 8 : index
      %233 = memref.load %arg2[%c8] : memref<64xf32, #tpu.memory_space<smem>>
      %234 = vector.broadcast %233 : f32 to vector<22x128xf32>
      %235 = arith.mulf %234, %232 : vector<22x128xf32>
      %236 = arith.addf %216, %235 : vector<22x128xf32>
      %c24 = arith.constant 24 : index
      %237 = memref.load %arg2[%c24] : memref<64xf32, #tpu.memory_space<smem>>
      %238 = vector.broadcast %237 : f32 to vector<22x128xf32>
      %239 = arith.mulf %238, %232 : vector<22x128xf32>
      %240 = arith.addf %220, %239 : vector<22x128xf32>
      %c40 = arith.constant 40 : index
      %241 = memref.load %arg2[%c40] : memref<64xf32, #tpu.memory_space<smem>>
      %242 = vector.broadcast %241 : f32 to vector<22x128xf32>
      %243 = arith.mulf %242, %232 : vector<22x128xf32>
      %244 = arith.addf %224, %243 : vector<22x128xf32>
      %c56 = arith.constant 56 : index
      %245 = memref.load %arg2[%c56] : memref<64xf32, #tpu.memory_space<smem>>
      %246 = vector.broadcast %245 : f32 to vector<22x128xf32>
      %247 = arith.mulf %246, %232 : vector<22x128xf32>
      %248 = arith.addf %228, %247 : vector<22x128xf32>
      %c2_i32_105 = arith.constant 2 : i32
      %249 = arith.addi %arg14, %c2_i32_105 : i32
      %250 = arith.index_cast %249 : i32 to index
      %c1_106 = arith.constant 1 : index
      %c0_107 = arith.constant 0 : index
      %251 = vector.load %arg1[%250, %c1_106, %c0_107] : memref<13x25x128xf32, #tpu.memory_space<vmem>>, vector<1x22x128xf32>
      %252 = vector.shape_cast %251 : vector<1x22x128xf32> to vector<22x128xf32>
      %c9 = arith.constant 9 : index
      %253 = memref.load %arg2[%c9] : memref<64xf32, #tpu.memory_space<smem>>
      %254 = vector.broadcast %253 : f32 to vector<22x128xf32>
      %255 = arith.mulf %254, %252 : vector<22x128xf32>
      %256 = arith.addf %236, %255 : vector<22x128xf32>
      %c25 = arith.constant 25 : index
      %257 = memref.load %arg2[%c25] : memref<64xf32, #tpu.memory_space<smem>>
      %258 = vector.broadcast %257 : f32 to vector<22x128xf32>
      %259 = arith.mulf %258, %252 : vector<22x128xf32>
      %260 = arith.addf %240, %259 : vector<22x128xf32>
      %c41 = arith.constant 41 : index
      %261 = memref.load %arg2[%c41] : memref<64xf32, #tpu.memory_space<smem>>
      %262 = vector.broadcast %261 : f32 to vector<22x128xf32>
      %263 = arith.mulf %262, %252 : vector<22x128xf32>
      %264 = arith.addf %244, %263 : vector<22x128xf32>
      %c57 = arith.constant 57 : index
      %265 = memref.load %arg2[%c57] : memref<64xf32, #tpu.memory_space<smem>>
      %266 = vector.broadcast %265 : f32 to vector<22x128xf32>
      %267 = arith.mulf %266, %252 : vector<22x128xf32>
      %268 = arith.addf %248, %267 : vector<22x128xf32>
      %c2_i32_108 = arith.constant 2 : i32
      %269 = arith.addi %arg14, %c2_i32_108 : i32
      %270 = arith.index_cast %269 : i32 to index
      %c2_109 = arith.constant 2 : index
      %c0_110 = arith.constant 0 : index
      %271 = vector.load %arg1[%270, %c2_109, %c0_110] : memref<13x25x128xf32, #tpu.memory_space<vmem>>, vector<1x22x128xf32>
      %272 = vector.shape_cast %271 : vector<1x22x128xf32> to vector<22x128xf32>
      %c10 = arith.constant 10 : index
      %273 = memref.load %arg2[%c10] : memref<64xf32, #tpu.memory_space<smem>>
      %274 = vector.broadcast %273 : f32 to vector<22x128xf32>
      %275 = arith.mulf %274, %272 : vector<22x128xf32>
      %276 = arith.addf %256, %275 : vector<22x128xf32>
      %c26 = arith.constant 26 : index
      %277 = memref.load %arg2[%c26] : memref<64xf32, #tpu.memory_space<smem>>
      %278 = vector.broadcast %277 : f32 to vector<22x128xf32>
      %279 = arith.mulf %278, %272 : vector<22x128xf32>
      %280 = arith.addf %260, %279 : vector<22x128xf32>
      %c42 = arith.constant 42 : index
      %281 = memref.load %arg2[%c42] : memref<64xf32, #tpu.memory_space<smem>>
      %282 = vector.broadcast %281 : f32 to vector<22x128xf32>
      %283 = arith.mulf %282, %272 : vector<22x128xf32>
      %284 = arith.addf %264, %283 : vector<22x128xf32>
      %c58 = arith.constant 58 : index
      %285 = memref.load %arg2[%c58] : memref<64xf32, #tpu.memory_space<smem>>
      %286 = vector.broadcast %285 : f32 to vector<22x128xf32>
      %287 = arith.mulf %286, %272 : vector<22x128xf32>
      %288 = arith.addf %268, %287 : vector<22x128xf32>
      %c2_i32_111 = arith.constant 2 : i32
      %289 = arith.addi %arg14, %c2_i32_111 : i32
      %290 = arith.index_cast %289 : i32 to index
      %c3_112 = arith.constant 3 : index
      %c0_113 = arith.constant 0 : index
      %291 = vector.load %arg1[%290, %c3_112, %c0_113] : memref<13x25x128xf32, #tpu.memory_space<vmem>>, vector<1x22x128xf32>
      %292 = vector.shape_cast %291 : vector<1x22x128xf32> to vector<22x128xf32>
      %c11 = arith.constant 11 : index
      %293 = memref.load %arg2[%c11] : memref<64xf32, #tpu.memory_space<smem>>
      %294 = vector.broadcast %293 : f32 to vector<22x128xf32>
      %295 = arith.mulf %294, %292 : vector<22x128xf32>
      %296 = arith.addf %276, %295 : vector<22x128xf32>
      %c27 = arith.constant 27 : index
      %297 = memref.load %arg2[%c27] : memref<64xf32, #tpu.memory_space<smem>>
      %298 = vector.broadcast %297 : f32 to vector<22x128xf32>
      %299 = arith.mulf %298, %292 : vector<22x128xf32>
      %300 = arith.addf %280, %299 : vector<22x128xf32>
      %c43 = arith.constant 43 : index
      %301 = memref.load %arg2[%c43] : memref<64xf32, #tpu.memory_space<smem>>
      %302 = vector.broadcast %301 : f32 to vector<22x128xf32>
      %303 = arith.mulf %302, %292 : vector<22x128xf32>
      %304 = arith.addf %284, %303 : vector<22x128xf32>
      %c59 = arith.constant 59 : index
      %305 = memref.load %arg2[%c59] : memref<64xf32, #tpu.memory_space<smem>>
      %306 = vector.broadcast %305 : f32 to vector<22x128xf32>
      %307 = arith.mulf %306, %292 : vector<22x128xf32>
      %308 = arith.addf %288, %307 : vector<22x128xf32>
      %c3_i32 = arith.constant 3 : i32
      %309 = arith.addi %arg14, %c3_i32 : i32
      %310 = arith.index_cast %309 : i32 to index
      %c0_114 = arith.constant 0 : index
      %c0_115 = arith.constant 0 : index
      %311 = vector.load %arg1[%310, %c0_114, %c0_115] : memref<13x25x128xf32, #tpu.memory_space<vmem>>, vector<1x22x128xf32>
      %312 = vector.shape_cast %311 : vector<1x22x128xf32> to vector<22x128xf32>
      %c12 = arith.constant 12 : index
      %313 = memref.load %arg2[%c12] : memref<64xf32, #tpu.memory_space<smem>>
      %314 = vector.broadcast %313 : f32 to vector<22x128xf32>
      %315 = arith.mulf %314, %312 : vector<22x128xf32>
      %316 = arith.addf %296, %315 : vector<22x128xf32>
      %c28 = arith.constant 28 : index
      %317 = memref.load %arg2[%c28] : memref<64xf32, #tpu.memory_space<smem>>
      %318 = vector.broadcast %317 : f32 to vector<22x128xf32>
      %319 = arith.mulf %318, %312 : vector<22x128xf32>
      %320 = arith.addf %300, %319 : vector<22x128xf32>
      %c44 = arith.constant 44 : index
      %321 = memref.load %arg2[%c44] : memref<64xf32, #tpu.memory_space<smem>>
      %322 = vector.broadcast %321 : f32 to vector<22x128xf32>
      %323 = arith.mulf %322, %312 : vector<22x128xf32>
      %324 = arith.addf %304, %323 : vector<22x128xf32>
      %c60 = arith.constant 60 : index
      %325 = memref.load %arg2[%c60] : memref<64xf32, #tpu.memory_space<smem>>
      %326 = vector.broadcast %325 : f32 to vector<22x128xf32>
      %327 = arith.mulf %326, %312 : vector<22x128xf32>
      %328 = arith.addf %308, %327 : vector<22x128xf32>
      %c3_i32_116 = arith.constant 3 : i32
      %329 = arith.addi %arg14, %c3_i32_116 : i32
      %330 = arith.index_cast %329 : i32 to index
      %c1_117 = arith.constant 1 : index
      %c0_118 = arith.constant 0 : index
      %331 = vector.load %arg1[%330, %c1_117, %c0_118] : memref<13x25x128xf32, #tpu.memory_space<vmem>>, vector<1x22x128xf32>
      %332 = vector.shape_cast %331 : vector<1x22x128xf32> to vector<22x128xf32>
      %c13 = arith.constant 13 : index
      %333 = memref.load %arg2[%c13] : memref<64xf32, #tpu.memory_space<smem>>
      %334 = vector.broadcast %333 : f32 to vector<22x128xf32>
      %335 = arith.mulf %334, %332 : vector<22x128xf32>
      %336 = arith.addf %316, %335 : vector<22x128xf32>
      %c29 = arith.constant 29 : index
      %337 = memref.load %arg2[%c29] : memref<64xf32, #tpu.memory_space<smem>>
      %338 = vector.broadcast %337 : f32 to vector<22x128xf32>
      %339 = arith.mulf %338, %332 : vector<22x128xf32>
      %340 = arith.addf %320, %339 : vector<22x128xf32>
      %c45 = arith.constant 45 : index
      %341 = memref.load %arg2[%c45] : memref<64xf32, #tpu.memory_space<smem>>
      %342 = vector.broadcast %341 : f32 to vector<22x128xf32>
      %343 = arith.mulf %342, %332 : vector<22x128xf32>
      %344 = arith.addf %324, %343 : vector<22x128xf32>
      %c61 = arith.constant 61 : index
      %345 = memref.load %arg2[%c61] : memref<64xf32, #tpu.memory_space<smem>>
      %346 = vector.broadcast %345 : f32 to vector<22x128xf32>
      %347 = arith.mulf %346, %332 : vector<22x128xf32>
      %348 = arith.addf %328, %347 : vector<22x128xf32>
      %c3_i32_119 = arith.constant 3 : i32
      %349 = arith.addi %arg14, %c3_i32_119 : i32
      %350 = arith.index_cast %349 : i32 to index
      %c2_120 = arith.constant 2 : index
      %c0_121 = arith.constant 0 : index
      %351 = vector.load %arg1[%350, %c2_120, %c0_121] : memref<13x25x128xf32, #tpu.memory_space<vmem>>, vector<1x22x128xf32>
      %352 = vector.shape_cast %351 : vector<1x22x128xf32> to vector<22x128xf32>
      %c14 = arith.constant 14 : index
      %353 = memref.load %arg2[%c14] : memref<64xf32, #tpu.memory_space<smem>>
      %354 = vector.broadcast %353 : f32 to vector<22x128xf32>
      %355 = arith.mulf %354, %352 : vector<22x128xf32>
      %356 = arith.addf %336, %355 : vector<22x128xf32>
      %c30 = arith.constant 30 : index
      %357 = memref.load %arg2[%c30] : memref<64xf32, #tpu.memory_space<smem>>
      %358 = vector.broadcast %357 : f32 to vector<22x128xf32>
      %359 = arith.mulf %358, %352 : vector<22x128xf32>
      %360 = arith.addf %340, %359 : vector<22x128xf32>
      %c46 = arith.constant 46 : index
      %361 = memref.load %arg2[%c46] : memref<64xf32, #tpu.memory_space<smem>>
      %362 = vector.broadcast %361 : f32 to vector<22x128xf32>
      %363 = arith.mulf %362, %352 : vector<22x128xf32>
      %364 = arith.addf %344, %363 : vector<22x128xf32>
      %c62 = arith.constant 62 : index
      %365 = memref.load %arg2[%c62] : memref<64xf32, #tpu.memory_space<smem>>
      %366 = vector.broadcast %365 : f32 to vector<22x128xf32>
      %367 = arith.mulf %366, %352 : vector<22x128xf32>
      %368 = arith.addf %348, %367 : vector<22x128xf32>
      %c3_i32_122 = arith.constant 3 : i32
      %369 = arith.addi %arg14, %c3_i32_122 : i32
      %370 = arith.index_cast %369 : i32 to index
      %c3_123 = arith.constant 3 : index
      %c0_124 = arith.constant 0 : index
      %371 = vector.load %arg1[%370, %c3_123, %c0_124] : memref<13x25x128xf32, #tpu.memory_space<vmem>>, vector<1x22x128xf32>
      %372 = vector.shape_cast %371 : vector<1x22x128xf32> to vector<22x128xf32>
      %c15 = arith.constant 15 : index
      %373 = memref.load %arg2[%c15] : memref<64xf32, #tpu.memory_space<smem>>
      %374 = vector.broadcast %373 : f32 to vector<22x128xf32>
      %375 = arith.mulf %374, %372 : vector<22x128xf32>
      %376 = arith.addf %356, %375 : vector<22x128xf32>
      %c31 = arith.constant 31 : index
      %377 = memref.load %arg2[%c31] : memref<64xf32, #tpu.memory_space<smem>>
      %378 = vector.broadcast %377 : f32 to vector<22x128xf32>
      %379 = arith.mulf %378, %372 : vector<22x128xf32>
      %380 = arith.addf %360, %379 : vector<22x128xf32>
      %c47 = arith.constant 47 : index
      %381 = memref.load %arg2[%c47] : memref<64xf32, #tpu.memory_space<smem>>
      %382 = vector.broadcast %381 : f32 to vector<22x128xf32>
      %383 = arith.mulf %382, %372 : vector<22x128xf32>
      %384 = arith.addf %364, %383 : vector<22x128xf32>
      %c63 = arith.constant 63 : index
      %385 = memref.load %arg2[%c63] : memref<64xf32, #tpu.memory_space<smem>>
      %386 = vector.broadcast %385 : f32 to vector<22x128xf32>
      %387 = arith.mulf %386, %372 : vector<22x128xf32>
      %388 = arith.addf %368, %387 : vector<22x128xf32>
      %c0_125 = arith.constant 0 : index
      %389 = memref.load %arg3[%c0_125] : memref<4xf32, #tpu.memory_space<smem>>
      %390 = vector.broadcast %389 : f32 to vector<22x128xf32>
      %391 = arith.addf %376, %390 : vector<22x128xf32>
      %cst_126 = arith.constant 0.000000e+00 : f32
      %392 = vector.broadcast %cst_126 : f32 to vector<22x128xf32>
      %393 = arith.maximumf %391, %392 : vector<22x128xf32>
      %c4_i32_127 = arith.constant 4 : i32
      %394 = arith.muli %arg14, %c4_i32_127 : i32
      %c0_i32_128 = arith.constant 0 : i32
      %395 = arith.addi %394, %c0_i32_128 : i32
      %396 = arith.index_cast %395 : i32 to index
      %c0_129 = arith.constant 0 : index
      %c0_130 = arith.constant 0 : index
      %397 = vector.load %arg11[%396, %c0_129, %c0_130] : memref<40x22x128xf32, #tpu.memory_space<vmem>>, vector<1x22x128xf32>
      %398 = vector.shape_cast %397 : vector<1x22x128xf32> to vector<22x128xf32>
      %399 = vector.shape_cast %393 : vector<22x128xf32> to vector<1x22x128xf32>
      tpu.vector_store %arg11[%396, %c0_129, %c0_130], %399 {strides = array<i32>} : memref<40x22x128xf32, #tpu.memory_space<vmem>>, vector<1x22x128xf32>,
      %c1_131 = arith.constant 1 : index
      %400 = memref.load %arg3[%c1_131] : memref<4xf32, #tpu.memory_space<smem>>
      %401 = vector.broadcast %400 : f32 to vector<22x128xf32>
      %402 = arith.addf %380, %401 : vector<22x128xf32>
      %cst_132 = arith.constant 0.000000e+00 : f32
      %403 = vector.broadcast %cst_132 : f32 to vector<22x128xf32>
      %404 = arith.maximumf %402, %403 : vector<22x128xf32>
      %c4_i32_133 = arith.constant 4 : i32
      %405 = arith.muli %arg14, %c4_i32_133 : i32
      %c1_i32_134 = arith.constant 1 : i32
      %406 = arith.addi %405, %c1_i32_134 : i32
      %407 = arith.index_cast %406 : i32 to index
      %c0_135 = arith.constant 0 : index
      %c0_136 = arith.constant 0 : index
      %408 = vector.load %arg11[%407, %c0_135, %c0_136] : memref<40x22x128xf32, #tpu.memory_space<vmem>>, vector<1x22x128xf32>
      %409 = vector.shape_cast %408 : vector<1x22x128xf32> to vector<22x128xf32>
      %410 = vector.shape_cast %404 : vector<22x128xf32> to vector<1x22x128xf32>
      tpu.vector_store %arg11[%407, %c0_135, %c0_136], %410 {strides = array<i32>} : memref<40x22x128xf32, #tpu.memory_space<vmem>>, vector<1x22x128xf32>,
      %c2_137 = arith.constant 2 : index
      %411 = memref.load %arg3[%c2_137] : memref<4xf32, #tpu.memory_space<smem>>
      %412 = vector.broadcast %411 : f32 to vector<22x128xf32>
      %413 = arith.addf %384, %412 : vector<22x128xf32>
      %cst_138 = arith.constant 0.000000e+00 : f32
      %414 = vector.broadcast %cst_138 : f32 to vector<22x128xf32>
      %415 = arith.maximumf %413, %414 : vector<22x128xf32>
      %c4_i32_139 = arith.constant 4 : i32
      %416 = arith.muli %arg14, %c4_i32_139 : i32
      %c2_i32_140 = arith.constant 2 : i32
      %417 = arith.addi %416, %c2_i32_140 : i32
      %418 = arith.index_cast %417 : i32 to index
      %c0_141 = arith.constant 0 : index
      %c0_142 = arith.constant 0 : index
      %419 = vector.load %arg11[%418, %c0_141, %c0_142] : memref<40x22x128xf32, #tpu.memory_space<vmem>>, vector<1x22x128xf32>
      %420 = vector.shape_cast %419 : vector<1x22x128xf32> to vector<22x128xf32>
      %421 = vector.shape_cast %415 : vector<22x128xf32> to vector<1x22x128xf32>
      tpu.vector_store %arg11[%418, %c0_141, %c0_142], %421 {strides = array<i32>} : memref<40x22x128xf32, #tpu.memory_space<vmem>>, vector<1x22x128xf32>,
      %c3_143 = arith.constant 3 : index
      %422 = memref.load %arg3[%c3_143] : memref<4xf32, #tpu.memory_space<smem>>
      %423 = vector.broadcast %422 : f32 to vector<22x128xf32>
      %424 = arith.addf %388, %423 : vector<22x128xf32>
      %cst_144 = arith.constant 0.000000e+00 : f32
      %425 = vector.broadcast %cst_144 : f32 to vector<22x128xf32>
      %426 = arith.maximumf %424, %425 : vector<22x128xf32>
      %c4_i32_145 = arith.constant 4 : i32
      %427 = arith.muli %arg14, %c4_i32_145 : i32
      %c3_i32_146 = arith.constant 3 : i32
      %428 = arith.addi %427, %c3_i32_146 : i32
      %429 = arith.index_cast %428 : i32 to index
      %c0_147 = arith.constant 0 : index
      %c0_148 = arith.constant 0 : index
      %430 = vector.load %arg11[%429, %c0_147, %c0_148] : memref<40x22x128xf32, #tpu.memory_space<vmem>>, vector<1x22x128xf32>
      %431 = vector.shape_cast %430 : vector<1x22x128xf32> to vector<22x128xf32>
      %432 = vector.shape_cast %426 : vector<22x128xf32> to vector<1x22x128xf32>
      tpu.vector_store %arg11[%429, %c0_147, %c0_148], %432 {strides = array<i32>} : memref<40x22x128xf32, #tpu.memory_space<vmem>>, vector<1x22x128xf32>,
    }
    %c10_i32_0 = arith.constant 10 : i32
    %c0_i32_1 = arith.constant 0 : i32
    %c5_i32 = arith.constant 5 : i32
    %1 = arith.addi %c0_i32_1, %c5_i32 : i32
    %c1_i32_2 = arith.constant 1 : i32
    scf.for %arg14 = %c0_i32_1 to %1 step %c1_i32_2  : i32 {
      %c8_i32 = arith.constant 8 : i32
      %73 = arith.muli %c8_i32, %arg14 : i32
      %c0_i32_71 = arith.constant 0 : i32
      %74 = arith.addi %73, %c0_i32_71 : i32
      %75 = arith.index_cast %74 : i32 to index
      %c0_72 = arith.constant 0 : index
      %c0_73 = arith.constant 0 : index
      %76 = vector.load %arg11[%75, %c0_72, %c0_73] : memref<40x22x128xf32, #tpu.memory_space<vmem>>, vector<1x21x128xf32>
      %77 = vector.shape_cast %76 : vector<1x21x128xf32> to vector<21x128xf32>
      %c8_i32_74 = arith.constant 8 : i32
      %78 = arith.muli %c8_i32_74, %arg14 : i32
      %c0_i32_75 = arith.constant 0 : i32
      %79 = arith.addi %78, %c0_i32_75 : i32
      %80 = arith.index_cast %79 : i32 to index
      %c1_76 = arith.constant 1 : index
      %c0_77 = arith.constant 0 : index
      %81 = vector.load %arg11[%80, %c1_76, %c0_77] : memref<40x22x128xf32, #tpu.memory_space<vmem>>, vector<1x21x128xf32>
      %82 = vector.shape_cast %81 : vector<1x21x128xf32> to vector<21x128xf32>
      %83 = arith.maximumf %77, %82 : vector<21x128xf32>
      %c8_i32_78 = arith.constant 8 : i32
      %84 = arith.muli %c8_i32_78, %arg14 : i32
      %c4_i32_79 = arith.constant 4 : i32
      %85 = arith.addi %84, %c4_i32_79 : i32
      %c0_i32_80 = arith.constant 0 : i32
      %86 = arith.addi %85, %c0_i32_80 : i32
      %87 = arith.index_cast %86 : i32 to index
      %c0_81 = arith.constant 0 : index
      %c0_82 = arith.constant 0 : index
      %88 = vector.load %arg11[%87, %c0_81, %c0_82] : memref<40x22x128xf32, #tpu.memory_space<vmem>>, vector<1x21x128xf32>
      %89 = vector.shape_cast %88 : vector<1x21x128xf32> to vector<21x128xf32>
      %c8_i32_83 = arith.constant 8 : i32
      %90 = arith.muli %c8_i32_83, %arg14 : i32
      %c4_i32_84 = arith.constant 4 : i32
      %91 = arith.addi %90, %c4_i32_84 : i32
      %c0_i32_85 = arith.constant 0 : i32
      %92 = arith.addi %91, %c0_i32_85 : i32
      %93 = arith.index_cast %92 : i32 to index
      %c1_86 = arith.constant 1 : index
      %c0_87 = arith.constant 0 : index
      %94 = vector.load %arg11[%93, %c1_86, %c0_87] : memref<40x22x128xf32, #tpu.memory_space<vmem>>, vector<1x21x128xf32>
      %95 = vector.shape_cast %94 : vector<1x21x128xf32> to vector<21x128xf32>
      %96 = arith.maximumf %89, %95 : vector<21x128xf32>
      %97 = arith.maximumf %83, %96 : vector<21x128xf32>
      %c4_i32_88 = arith.constant 4 : i32
      %98 = arith.muli %arg14, %c4_i32_88 : i32
      %c0_i32_89 = arith.constant 0 : i32
      %99 = arith.addi %98, %c0_i32_89 : i32
      %100 = arith.index_cast %99 : i32 to index
      %c0_90 = arith.constant 0 : index
      %c0_91 = arith.constant 0 : index
      %101 = vector.load %arg12[%100, %c0_90, %c0_91] : memref<20x21x128xf32, #tpu.memory_space<vmem>>, vector<1x21x128xf32>
      %102 = vector.shape_cast %101 : vector<1x21x128xf32> to vector<21x128xf32>
      %103 = vector.shape_cast %97 : vector<21x128xf32> to vector<1x21x128xf32>
      tpu.vector_store %arg12[%100, %c0_90, %c0_91], %103 {strides = array<i32>} : memref<20x21x128xf32, #tpu.memory_space<vmem>>, vector<1x21x128xf32>,
      %c8_i32_92 = arith.constant 8 : i32
      %104 = arith.muli %c8_i32_92, %arg14 : i32
      %c1_i32_93 = arith.constant 1 : i32
      %105 = arith.addi %104, %c1_i32_93 : i32
      %106 = arith.index_cast %105 : i32 to index
      %c0_94 = arith.constant 0 : index
      %c0_95 = arith.constant 0 : index
      %107 = vector.load %arg11[%106, %c0_94, %c0_95] : memref<40x22x128xf32, #tpu.memory_space<vmem>>, vector<1x21x128xf32>
      %108 = vector.shape_cast %107 : vector<1x21x128xf32> to vector<21x128xf32>
      %c8_i32_96 = arith.constant 8 : i32
      %109 = arith.muli %c8_i32_96, %arg14 : i32
      %c1_i32_97 = arith.constant 1 : i32
      %110 = arith.addi %109, %c1_i32_97 : i32
      %111 = arith.index_cast %110 : i32 to index
      %c1_98 = arith.constant 1 : index
      %c0_99 = arith.constant 0 : index
      %112 = vector.load %arg11[%111, %c1_98, %c0_99] : memref<40x22x128xf32, #tpu.memory_space<vmem>>, vector<1x21x128xf32>
      %113 = vector.shape_cast %112 : vector<1x21x128xf32> to vector<21x128xf32>
      %114 = arith.maximumf %108, %113 : vector<21x128xf32>
      %c8_i32_100 = arith.constant 8 : i32
      %115 = arith.muli %c8_i32_100, %arg14 : i32
      %c4_i32_101 = arith.constant 4 : i32
      %116 = arith.addi %115, %c4_i32_101 : i32
      %c1_i32_102 = arith.constant 1 : i32
      %117 = arith.addi %116, %c1_i32_102 : i32
      %118 = arith.index_cast %117 : i32 to index
      %c0_103 = arith.constant 0 : index
      %c0_104 = arith.constant 0 : index
      %119 = vector.load %arg11[%118, %c0_103, %c0_104] : memref<40x22x128xf32, #tpu.memory_space<vmem>>, vector<1x21x128xf32>
      %120 = vector.shape_cast %119 : vector<1x21x128xf32> to vector<21x128xf32>
      %c8_i32_105 = arith.constant 8 : i32
      %121 = arith.muli %c8_i32_105, %arg14 : i32
      %c4_i32_106 = arith.constant 4 : i32
      %122 = arith.addi %121, %c4_i32_106 : i32
      %c1_i32_107 = arith.constant 1 : i32
      %123 = arith.addi %122, %c1_i32_107 : i32
      %124 = arith.index_cast %123 : i32 to index
      %c1_108 = arith.constant 1 : index
      %c0_109 = arith.constant 0 : index
      %125 = vector.load %arg11[%124, %c1_108, %c0_109] : memref<40x22x128xf32, #tpu.memory_space<vmem>>, vector<1x21x128xf32>
      %126 = vector.shape_cast %125 : vector<1x21x128xf32> to vector<21x128xf32>
      %127 = arith.maximumf %120, %126 : vector<21x128xf32>
      %128 = arith.maximumf %114, %127 : vector<21x128xf32>
      %c4_i32_110 = arith.constant 4 : i32
      %129 = arith.muli %arg14, %c4_i32_110 : i32
      %c1_i32_111 = arith.constant 1 : i32
      %130 = arith.addi %129, %c1_i32_111 : i32
      %131 = arith.index_cast %130 : i32 to index
      %c0_112 = arith.constant 0 : index
      %c0_113 = arith.constant 0 : index
      %132 = vector.load %arg12[%131, %c0_112, %c0_113] : memref<20x21x128xf32, #tpu.memory_space<vmem>>, vector<1x21x128xf32>
      %133 = vector.shape_cast %132 : vector<1x21x128xf32> to vector<21x128xf32>
      %134 = vector.shape_cast %128 : vector<21x128xf32> to vector<1x21x128xf32>
      tpu.vector_store %arg12[%131, %c0_112, %c0_113], %134 {strides = array<i32>} : memref<20x21x128xf32, #tpu.memory_space<vmem>>, vector<1x21x128xf32>,
      %c8_i32_114 = arith.constant 8 : i32
      %135 = arith.muli %c8_i32_114, %arg14 : i32
      %c2_i32 = arith.constant 2 : i32
      %136 = arith.addi %135, %c2_i32 : i32
      %137 = arith.index_cast %136 : i32 to index
      %c0_115 = arith.constant 0 : index
      %c0_116 = arith.constant 0 : index
      %138 = vector.load %arg11[%137, %c0_115, %c0_116] : memref<40x22x128xf32, #tpu.memory_space<vmem>>, vector<1x21x128xf32>
      %139 = vector.shape_cast %138 : vector<1x21x128xf32> to vector<21x128xf32>
      %c8_i32_117 = arith.constant 8 : i32
      %140 = arith.muli %c8_i32_117, %arg14 : i32
      %c2_i32_118 = arith.constant 2 : i32
      %141 = arith.addi %140, %c2_i32_118 : i32
      %142 = arith.index_cast %141 : i32 to index
      %c1_119 = arith.constant 1 : index
      %c0_120 = arith.constant 0 : index
      %143 = vector.load %arg11[%142, %c1_119, %c0_120] : memref<40x22x128xf32, #tpu.memory_space<vmem>>, vector<1x21x128xf32>
      %144 = vector.shape_cast %143 : vector<1x21x128xf32> to vector<21x128xf32>
      %145 = arith.maximumf %139, %144 : vector<21x128xf32>
      %c8_i32_121 = arith.constant 8 : i32
      %146 = arith.muli %c8_i32_121, %arg14 : i32
      %c4_i32_122 = arith.constant 4 : i32
      %147 = arith.addi %146, %c4_i32_122 : i32
      %c2_i32_123 = arith.constant 2 : i32
      %148 = arith.addi %147, %c2_i32_123 : i32
      %149 = arith.index_cast %148 : i32 to index
      %c0_124 = arith.constant 0 : index
      %c0_125 = arith.constant 0 : index
      %150 = vector.load %arg11[%149, %c0_124, %c0_125] : memref<40x22x128xf32, #tpu.memory_space<vmem>>, vector<1x21x128xf32>
      %151 = vector.shape_cast %150 : vector<1x21x128xf32> to vector<21x128xf32>
      %c8_i32_126 = arith.constant 8 : i32
      %152 = arith.muli %c8_i32_126, %arg14 : i32
      %c4_i32_127 = arith.constant 4 : i32
      %153 = arith.addi %152, %c4_i32_127 : i32
      %c2_i32_128 = arith.constant 2 : i32
      %154 = arith.addi %153, %c2_i32_128 : i32
      %155 = arith.index_cast %154 : i32 to index
      %c1_129 = arith.constant 1 : index
      %c0_130 = arith.constant 0 : index
      %156 = vector.load %arg11[%155, %c1_129, %c0_130] : memref<40x22x128xf32, #tpu.memory_space<vmem>>, vector<1x21x128xf32>
      %157 = vector.shape_cast %156 : vector<1x21x128xf32> to vector<21x128xf32>
      %158 = arith.maximumf %151, %157 : vector<21x128xf32>
      %159 = arith.maximumf %145, %158 : vector<21x128xf32>
      %c4_i32_131 = arith.constant 4 : i32
      %160 = arith.muli %arg14, %c4_i32_131 : i32
      %c2_i32_132 = arith.constant 2 : i32
      %161 = arith.addi %160, %c2_i32_132 : i32
      %162 = arith.index_cast %161 : i32 to index
      %c0_133 = arith.constant 0 : index
      %c0_134 = arith.constant 0 : index
      %163 = vector.load %arg12[%162, %c0_133, %c0_134] : memref<20x21x128xf32, #tpu.memory_space<vmem>>, vector<1x21x128xf32>
      %164 = vector.shape_cast %163 : vector<1x21x128xf32> to vector<21x128xf32>
      %165 = vector.shape_cast %159 : vector<21x128xf32> to vector<1x21x128xf32>
      tpu.vector_store %arg12[%162, %c0_133, %c0_134], %165 {strides = array<i32>} : memref<20x21x128xf32, #tpu.memory_space<vmem>>, vector<1x21x128xf32>,
      %c8_i32_135 = arith.constant 8 : i32
      %166 = arith.muli %c8_i32_135, %arg14 : i32
      %c3_i32 = arith.constant 3 : i32
      %167 = arith.addi %166, %c3_i32 : i32
      %168 = arith.index_cast %167 : i32 to index
      %c0_136 = arith.constant 0 : index
      %c0_137 = arith.constant 0 : index
      %169 = vector.load %arg11[%168, %c0_136, %c0_137] : memref<40x22x128xf32, #tpu.memory_space<vmem>>, vector<1x21x128xf32>
      %170 = vector.shape_cast %169 : vector<1x21x128xf32> to vector<21x128xf32>
      %c8_i32_138 = arith.constant 8 : i32
      %171 = arith.muli %c8_i32_138, %arg14 : i32
      %c3_i32_139 = arith.constant 3 : i32
      %172 = arith.addi %171, %c3_i32_139 : i32
      %173 = arith.index_cast %172 : i32 to index
      %c1_140 = arith.constant 1 : index
      %c0_141 = arith.constant 0 : index
      %174 = vector.load %arg11[%173, %c1_140, %c0_141] : memref<40x22x128xf32, #tpu.memory_space<vmem>>, vector<1x21x128xf32>
      %175 = vector.shape_cast %174 : vector<1x21x128xf32> to vector<21x128xf32>
      %176 = arith.maximumf %170, %175 : vector<21x128xf32>
      %c8_i32_142 = arith.constant 8 : i32
      %177 = arith.muli %c8_i32_142, %arg14 : i32
      %c4_i32_143 = arith.constant 4 : i32
      %178 = arith.addi %177, %c4_i32_143 : i32
      %c3_i32_144 = arith.constant 3 : i32
      %179 = arith.addi %178, %c3_i32_144 : i32
      %180 = arith.index_cast %179 : i32 to index
      %c0_145 = arith.constant 0 : index
      %c0_146 = arith.constant 0 : index
      %181 = vector.load %arg11[%180, %c0_145, %c0_146] : memref<40x22x128xf32, #tpu.memory_space<vmem>>, vector<1x21x128xf32>
      %182 = vector.shape_cast %181 : vector<1x21x128xf32> to vector<21x128xf32>
      %c8_i32_147 = arith.constant 8 : i32
      %183 = arith.muli %c8_i32_147, %arg14 : i32
      %c4_i32_148 = arith.constant 4 : i32
      %184 = arith.addi %183, %c4_i32_148 : i32
      %c3_i32_149 = arith.constant 3 : i32
      %185 = arith.addi %184, %c3_i32_149 : i32
      %186 = arith.index_cast %185 : i32 to index
      %c1_150 = arith.constant 1 : index
      %c0_151 = arith.constant 0 : index
      %187 = vector.load %arg11[%186, %c1_150, %c0_151] : memref<40x22x128xf32, #tpu.memory_space<vmem>>, vector<1x21x128xf32>
      %188 = vector.shape_cast %187 : vector<1x21x128xf32> to vector<21x128xf32>
      %189 = arith.maximumf %182, %188 : vector<21x128xf32>
      %190 = arith.maximumf %176, %189 : vector<21x128xf32>
      %c4_i32_152 = arith.constant 4 : i32
      %191 = arith.muli %arg14, %c4_i32_152 : i32
      %c3_i32_153 = arith.constant 3 : i32
      %192 = arith.addi %191, %c3_i32_153 : i32
      %193 = arith.index_cast %192 : i32 to index
      %c0_154 = arith.constant 0 : index
      %c0_155 = arith.constant 0 : index
      %194 = vector.load %arg12[%193, %c0_154, %c0_155] : memref<20x21x128xf32, #tpu.memory_space<vmem>>, vector<1x21x128xf32>
      %195 = vector.shape_cast %194 : vector<1x21x128xf32> to vector<21x128xf32>
      %196 = vector.shape_cast %190 : vector<21x128xf32> to vector<1x21x128xf32>
      tpu.vector_store %arg12[%193, %c0_154, %c0_155], %196 {strides = array<i32>} : memref<20x21x128xf32, #tpu.memory_space<vmem>>, vector<1x21x128xf32>,
    }
    %c5_i32_3 = arith.constant 5 : i32
    %c0_i32_4 = arith.constant 0 : i32
    %c4_i32 = arith.constant 4 : i32
    %2 = arith.addi %c0_i32_4, %c4_i32 : i32
    %c1_i32_5 = arith.constant 1 : i32
    scf.for %arg14 = %c0_i32_4 to %2 step %c1_i32_5  : i32 {
      %c4_i32_71 = arith.constant 4 : i32
      %73 = arith.muli %c4_i32_71, %arg14 : i32
      %c0_i32_72 = arith.constant 0 : i32
      %74 = arith.addi %73, %c0_i32_72 : i32
      %c0_i32_73 = arith.constant 0 : i32
      %75 = arith.addi %74, %c0_i32_73 : i32
      %76 = arith.index_cast %75 : i32 to index
      %c0_74 = arith.constant 0 : index
      %c0_75 = arith.constant 0 : index
      %77 = vector.load %arg12[%76, %c0_74, %c0_75] : memref<20x21x128xf32, #tpu.memory_space<vmem>>, vector<1x19x128xf32>
      %78 = vector.shape_cast %77 : vector<1x19x128xf32> to vector<19x128xf32>
      %c0_76 = arith.constant 0 : index
      %79 = memref.load %arg4[%c0_76] : memref<32xf32, #tpu.memory_space<smem>>
      %80 = vector.broadcast %79 : f32 to vector<19x128xf32>
      %81 = arith.mulf %80, %78 : vector<19x128xf32>
      %c16 = arith.constant 16 : index
      %82 = memref.load %arg4[%c16] : memref<32xf32, #tpu.memory_space<smem>>
      %83 = vector.broadcast %82 : f32 to vector<19x128xf32>
      %84 = arith.mulf %83, %78 : vector<19x128xf32>
      %c4_i32_77 = arith.constant 4 : i32
      %85 = arith.muli %c4_i32_77, %arg14 : i32
      %c0_i32_78 = arith.constant 0 : i32
      %86 = arith.addi %85, %c0_i32_78 : i32
      %c1_i32_79 = arith.constant 1 : i32
      %87 = arith.addi %86, %c1_i32_79 : i32
      %88 = arith.index_cast %87 : i32 to index
      %c0_80 = arith.constant 0 : index
      %c0_81 = arith.constant 0 : index
      %89 = vector.load %arg12[%88, %c0_80, %c0_81] : memref<20x21x128xf32, #tpu.memory_space<vmem>>, vector<1x19x128xf32>
      %90 = vector.shape_cast %89 : vector<1x19x128xf32> to vector<19x128xf32>
      %c4_82 = arith.constant 4 : index
      %91 = memref.load %arg4[%c4_82] : memref<32xf32, #tpu.memory_space<smem>>
      %92 = vector.broadcast %91 : f32 to vector<19x128xf32>
      %93 = arith.mulf %92, %90 : vector<19x128xf32>
      %94 = arith.addf %81, %93 : vector<19x128xf32>
      %c20 = arith.constant 20 : index
      %95 = memref.load %arg4[%c20] : memref<32xf32, #tpu.memory_space<smem>>
      %96 = vector.broadcast %95 : f32 to vector<19x128xf32>
      %97 = arith.mulf %96, %90 : vector<19x128xf32>
      %98 = arith.addf %84, %97 : vector<19x128xf32>
      %c4_i32_83 = arith.constant 4 : i32
      %99 = arith.muli %c4_i32_83, %arg14 : i32
      %c0_i32_84 = arith.constant 0 : i32
      %100 = arith.addi %99, %c0_i32_84 : i32
      %c2_i32 = arith.constant 2 : i32
      %101 = arith.addi %100, %c2_i32 : i32
      %102 = arith.index_cast %101 : i32 to index
      %c0_85 = arith.constant 0 : index
      %c0_86 = arith.constant 0 : index
      %103 = vector.load %arg12[%102, %c0_85, %c0_86] : memref<20x21x128xf32, #tpu.memory_space<vmem>>, vector<1x19x128xf32>
      %104 = vector.shape_cast %103 : vector<1x19x128xf32> to vector<19x128xf32>
      %c8 = arith.constant 8 : index
      %105 = memref.load %arg4[%c8] : memref<32xf32, #tpu.memory_space<smem>>
      %106 = vector.broadcast %105 : f32 to vector<19x128xf32>
      %107 = arith.mulf %106, %104 : vector<19x128xf32>
      %108 = arith.addf %94, %107 : vector<19x128xf32>
      %c24 = arith.constant 24 : index
      %109 = memref.load %arg4[%c24] : memref<32xf32, #tpu.memory_space<smem>>
      %110 = vector.broadcast %109 : f32 to vector<19x128xf32>
      %111 = arith.mulf %110, %104 : vector<19x128xf32>
      %112 = arith.addf %98, %111 : vector<19x128xf32>
      %c4_i32_87 = arith.constant 4 : i32
      %113 = arith.muli %c4_i32_87, %arg14 : i32
      %c0_i32_88 = arith.constant 0 : i32
      %114 = arith.addi %113, %c0_i32_88 : i32
      %c3_i32 = arith.constant 3 : i32
      %115 = arith.addi %114, %c3_i32 : i32
      %116 = arith.index_cast %115 : i32 to index
      %c0_89 = arith.constant 0 : index
      %c0_90 = arith.constant 0 : index
      %117 = vector.load %arg12[%116, %c0_89, %c0_90] : memref<20x21x128xf32, #tpu.memory_space<vmem>>, vector<1x19x128xf32>
      %118 = vector.shape_cast %117 : vector<1x19x128xf32> to vector<19x128xf32>
      %c12 = arith.constant 12 : index
      %119 = memref.load %arg4[%c12] : memref<32xf32, #tpu.memory_space<smem>>
      %120 = vector.broadcast %119 : f32 to vector<19x128xf32>
      %121 = arith.mulf %120, %118 : vector<19x128xf32>
      %122 = arith.addf %108, %121 : vector<19x128xf32>
      %c28 = arith.constant 28 : index
      %123 = memref.load %arg4[%c28] : memref<32xf32, #tpu.memory_space<smem>>
      %124 = vector.broadcast %123 : f32 to vector<19x128xf32>
      %125 = arith.mulf %124, %118 : vector<19x128xf32>
      %126 = arith.addf %112, %125 : vector<19x128xf32>
      %c4_i32_91 = arith.constant 4 : i32
      %127 = arith.muli %c4_i32_91, %arg14 : i32
      %c0_i32_92 = arith.constant 0 : i32
      %128 = arith.addi %127, %c0_i32_92 : i32
      %c0_i32_93 = arith.constant 0 : i32
      %129 = arith.addi %128, %c0_i32_93 : i32
      %130 = arith.index_cast %129 : i32 to index
      %c2_94 = arith.constant 2 : index
      %c0_95 = arith.constant 0 : index
      %131 = vector.load %arg12[%130, %c2_94, %c0_95] : memref<20x21x128xf32, #tpu.memory_space<vmem>>, vector<1x19x128xf32>
      %132 = vector.shape_cast %131 : vector<1x19x128xf32> to vector<19x128xf32>
      %c1_96 = arith.constant 1 : index
      %133 = memref.load %arg4[%c1_96] : memref<32xf32, #tpu.memory_space<smem>>
      %134 = vector.broadcast %133 : f32 to vector<19x128xf32>
      %135 = arith.mulf %134, %132 : vector<19x128xf32>
      %136 = arith.addf %122, %135 : vector<19x128xf32>
      %c17 = arith.constant 17 : index
      %137 = memref.load %arg4[%c17] : memref<32xf32, #tpu.memory_space<smem>>
      %138 = vector.broadcast %137 : f32 to vector<19x128xf32>
      %139 = arith.mulf %138, %132 : vector<19x128xf32>
      %140 = arith.addf %126, %139 : vector<19x128xf32>
      %c4_i32_97 = arith.constant 4 : i32
      %141 = arith.muli %c4_i32_97, %arg14 : i32
      %c0_i32_98 = arith.constant 0 : i32
      %142 = arith.addi %141, %c0_i32_98 : i32
      %c1_i32_99 = arith.constant 1 : i32
      %143 = arith.addi %142, %c1_i32_99 : i32
      %144 = arith.index_cast %143 : i32 to index
      %c2_100 = arith.constant 2 : index
      %c0_101 = arith.constant 0 : index
      %145 = vector.load %arg12[%144, %c2_100, %c0_101] : memref<20x21x128xf32, #tpu.memory_space<vmem>>, vector<1x19x128xf32>
      %146 = vector.shape_cast %145 : vector<1x19x128xf32> to vector<19x128xf32>
      %c5_102 = arith.constant 5 : index
      %147 = memref.load %arg4[%c5_102] : memref<32xf32, #tpu.memory_space<smem>>
      %148 = vector.broadcast %147 : f32 to vector<19x128xf32>
      %149 = arith.mulf %148, %146 : vector<19x128xf32>
      %150 = arith.addf %136, %149 : vector<19x128xf32>
      %c21 = arith.constant 21 : index
      %151 = memref.load %arg4[%c21] : memref<32xf32, #tpu.memory_space<smem>>
      %152 = vector.broadcast %151 : f32 to vector<19x128xf32>
      %153 = arith.mulf %152, %146 : vector<19x128xf32>
      %154 = arith.addf %140, %153 : vector<19x128xf32>
      %c4_i32_103 = arith.constant 4 : i32
      %155 = arith.muli %c4_i32_103, %arg14 : i32
      %c0_i32_104 = arith.constant 0 : i32
      %156 = arith.addi %155, %c0_i32_104 : i32
      %c2_i32_105 = arith.constant 2 : i32
      %157 = arith.addi %156, %c2_i32_105 : i32
      %158 = arith.index_cast %157 : i32 to index
      %c2_106 = arith.constant 2 : index
      %c0_107 = arith.constant 0 : index
      %159 = vector.load %arg12[%158, %c2_106, %c0_107] : memref<20x21x128xf32, #tpu.memory_space<vmem>>, vector<1x19x128xf32>
      %160 = vector.shape_cast %159 : vector<1x19x128xf32> to vector<19x128xf32>
      %c9 = arith.constant 9 : index
      %161 = memref.load %arg4[%c9] : memref<32xf32, #tpu.memory_space<smem>>
      %162 = vector.broadcast %161 : f32 to vector<19x128xf32>
      %163 = arith.mulf %162, %160 : vector<19x128xf32>
      %164 = arith.addf %150, %163 : vector<19x128xf32>
      %c25 = arith.constant 25 : index
      %165 = memref.load %arg4[%c25] : memref<32xf32, #tpu.memory_space<smem>>
      %166 = vector.broadcast %165 : f32 to vector<19x128xf32>
      %167 = arith.mulf %166, %160 : vector<19x128xf32>
      %168 = arith.addf %154, %167 : vector<19x128xf32>
      %c4_i32_108 = arith.constant 4 : i32
      %169 = arith.muli %c4_i32_108, %arg14 : i32
      %c0_i32_109 = arith.constant 0 : i32
      %170 = arith.addi %169, %c0_i32_109 : i32
      %c3_i32_110 = arith.constant 3 : i32
      %171 = arith.addi %170, %c3_i32_110 : i32
      %172 = arith.index_cast %171 : i32 to index
      %c2_111 = arith.constant 2 : index
      %c0_112 = arith.constant 0 : index
      %173 = vector.load %arg12[%172, %c2_111, %c0_112] : memref<20x21x128xf32, #tpu.memory_space<vmem>>, vector<1x19x128xf32>
      %174 = vector.shape_cast %173 : vector<1x19x128xf32> to vector<19x128xf32>
      %c13 = arith.constant 13 : index
      %175 = memref.load %arg4[%c13] : memref<32xf32, #tpu.memory_space<smem>>
      %176 = vector.broadcast %175 : f32 to vector<19x128xf32>
      %177 = arith.mulf %176, %174 : vector<19x128xf32>
      %178 = arith.addf %164, %177 : vector<19x128xf32>
      %c29 = arith.constant 29 : index
      %179 = memref.load %arg4[%c29] : memref<32xf32, #tpu.memory_space<smem>>
      %180 = vector.broadcast %179 : f32 to vector<19x128xf32>
      %181 = arith.mulf %180, %174 : vector<19x128xf32>
      %182 = arith.addf %168, %181 : vector<19x128xf32>
      %c4_i32_113 = arith.constant 4 : i32
      %183 = arith.muli %c4_i32_113, %arg14 : i32
      %c4_i32_114 = arith.constant 4 : i32
      %184 = arith.addi %183, %c4_i32_114 : i32
      %c0_i32_115 = arith.constant 0 : i32
      %185 = arith.addi %184, %c0_i32_115 : i32
      %186 = arith.index_cast %185 : i32 to index
      %c0_116 = arith.constant 0 : index
      %c0_117 = arith.constant 0 : index
      %187 = vector.load %arg12[%186, %c0_116, %c0_117] : memref<20x21x128xf32, #tpu.memory_space<vmem>>, vector<1x19x128xf32>
      %188 = vector.shape_cast %187 : vector<1x19x128xf32> to vector<19x128xf32>
      %c2_118 = arith.constant 2 : index
      %189 = memref.load %arg4[%c2_118] : memref<32xf32, #tpu.memory_space<smem>>
      %190 = vector.broadcast %189 : f32 to vector<19x128xf32>
      %191 = arith.mulf %190, %188 : vector<19x128xf32>
      %192 = arith.addf %178, %191 : vector<19x128xf32>
      %c18 = arith.constant 18 : index
      %193 = memref.load %arg4[%c18] : memref<32xf32, #tpu.memory_space<smem>>
      %194 = vector.broadcast %193 : f32 to vector<19x128xf32>
      %195 = arith.mulf %194, %188 : vector<19x128xf32>
      %196 = arith.addf %182, %195 : vector<19x128xf32>
      %c4_i32_119 = arith.constant 4 : i32
      %197 = arith.muli %c4_i32_119, %arg14 : i32
      %c4_i32_120 = arith.constant 4 : i32
      %198 = arith.addi %197, %c4_i32_120 : i32
      %c1_i32_121 = arith.constant 1 : i32
      %199 = arith.addi %198, %c1_i32_121 : i32
      %200 = arith.index_cast %199 : i32 to index
      %c0_122 = arith.constant 0 : index
      %c0_123 = arith.constant 0 : index
      %201 = vector.load %arg12[%200, %c0_122, %c0_123] : memref<20x21x128xf32, #tpu.memory_space<vmem>>, vector<1x19x128xf32>
      %202 = vector.shape_cast %201 : vector<1x19x128xf32> to vector<19x128xf32>
      %c6_124 = arith.constant 6 : index
      %203 = memref.load %arg4[%c6_124] : memref<32xf32, #tpu.memory_space<smem>>
      %204 = vector.broadcast %203 : f32 to vector<19x128xf32>
      %205 = arith.mulf %204, %202 : vector<19x128xf32>
      %206 = arith.addf %192, %205 : vector<19x128xf32>
      %c22 = arith.constant 22 : index
      %207 = memref.load %arg4[%c22] : memref<32xf32, #tpu.memory_space<smem>>
      %208 = vector.broadcast %207 : f32 to vector<19x128xf32>
      %209 = arith.mulf %208, %202 : vector<19x128xf32>
      %210 = arith.addf %196, %209 : vector<19x128xf32>
      %c4_i32_125 = arith.constant 4 : i32
      %211 = arith.muli %c4_i32_125, %arg14 : i32
      %c4_i32_126 = arith.constant 4 : i32
      %212 = arith.addi %211, %c4_i32_126 : i32
      %c2_i32_127 = arith.constant 2 : i32
      %213 = arith.addi %212, %c2_i32_127 : i32
      %214 = arith.index_cast %213 : i32 to index
      %c0_128 = arith.constant 0 : index
      %c0_129 = arith.constant 0 : index
      %215 = vector.load %arg12[%214, %c0_128, %c0_129] : memref<20x21x128xf32, #tpu.memory_space<vmem>>, vector<1x19x128xf32>
      %216 = vector.shape_cast %215 : vector<1x19x128xf32> to vector<19x128xf32>
      %c10 = arith.constant 10 : index
      %217 = memref.load %arg4[%c10] : memref<32xf32, #tpu.memory_space<smem>>
      %218 = vector.broadcast %217 : f32 to vector<19x128xf32>
      %219 = arith.mulf %218, %216 : vector<19x128xf32>
      %220 = arith.addf %206, %219 : vector<19x128xf32>
      %c26 = arith.constant 26 : index
      %221 = memref.load %arg4[%c26] : memref<32xf32, #tpu.memory_space<smem>>
      %222 = vector.broadcast %221 : f32 to vector<19x128xf32>
      %223 = arith.mulf %222, %216 : vector<19x128xf32>
      %224 = arith.addf %210, %223 : vector<19x128xf32>
      %c4_i32_130 = arith.constant 4 : i32
      %225 = arith.muli %c4_i32_130, %arg14 : i32
      %c4_i32_131 = arith.constant 4 : i32
      %226 = arith.addi %225, %c4_i32_131 : i32
      %c3_i32_132 = arith.constant 3 : i32
      %227 = arith.addi %226, %c3_i32_132 : i32
      %228 = arith.index_cast %227 : i32 to index
      %c0_133 = arith.constant 0 : index
      %c0_134 = arith.constant 0 : index
      %229 = vector.load %arg12[%228, %c0_133, %c0_134] : memref<20x21x128xf32, #tpu.memory_space<vmem>>, vector<1x19x128xf32>
      %230 = vector.shape_cast %229 : vector<1x19x128xf32> to vector<19x128xf32>
      %c14 = arith.constant 14 : index
      %231 = memref.load %arg4[%c14] : memref<32xf32, #tpu.memory_space<smem>>
      %232 = vector.broadcast %231 : f32 to vector<19x128xf32>
      %233 = arith.mulf %232, %230 : vector<19x128xf32>
      %234 = arith.addf %220, %233 : vector<19x128xf32>
      %c30 = arith.constant 30 : index
      %235 = memref.load %arg4[%c30] : memref<32xf32, #tpu.memory_space<smem>>
      %236 = vector.broadcast %235 : f32 to vector<19x128xf32>
      %237 = arith.mulf %236, %230 : vector<19x128xf32>
      %238 = arith.addf %224, %237 : vector<19x128xf32>
      %c4_i32_135 = arith.constant 4 : i32
      %239 = arith.muli %c4_i32_135, %arg14 : i32
      %c4_i32_136 = arith.constant 4 : i32
      %240 = arith.addi %239, %c4_i32_136 : i32
      %c0_i32_137 = arith.constant 0 : i32
      %241 = arith.addi %240, %c0_i32_137 : i32
      %242 = arith.index_cast %241 : i32 to index
      %c2_138 = arith.constant 2 : index
      %c0_139 = arith.constant 0 : index
      %243 = vector.load %arg12[%242, %c2_138, %c0_139] : memref<20x21x128xf32, #tpu.memory_space<vmem>>, vector<1x19x128xf32>
      %244 = vector.shape_cast %243 : vector<1x19x128xf32> to vector<19x128xf32>
      %c3_140 = arith.constant 3 : index
      %245 = memref.load %arg4[%c3_140] : memref<32xf32, #tpu.memory_space<smem>>
      %246 = vector.broadcast %245 : f32 to vector<19x128xf32>
      %247 = arith.mulf %246, %244 : vector<19x128xf32>
      %248 = arith.addf %234, %247 : vector<19x128xf32>
      %c19 = arith.constant 19 : index
      %249 = memref.load %arg4[%c19] : memref<32xf32, #tpu.memory_space<smem>>
      %250 = vector.broadcast %249 : f32 to vector<19x128xf32>
      %251 = arith.mulf %250, %244 : vector<19x128xf32>
      %252 = arith.addf %238, %251 : vector<19x128xf32>
      %c4_i32_141 = arith.constant 4 : i32
      %253 = arith.muli %c4_i32_141, %arg14 : i32
      %c4_i32_142 = arith.constant 4 : i32
      %254 = arith.addi %253, %c4_i32_142 : i32
      %c1_i32_143 = arith.constant 1 : i32
      %255 = arith.addi %254, %c1_i32_143 : i32
      %256 = arith.index_cast %255 : i32 to index
      %c2_144 = arith.constant 2 : index
      %c0_145 = arith.constant 0 : index
      %257 = vector.load %arg12[%256, %c2_144, %c0_145] : memref<20x21x128xf32, #tpu.memory_space<vmem>>, vector<1x19x128xf32>
      %258 = vector.shape_cast %257 : vector<1x19x128xf32> to vector<19x128xf32>
      %c7_146 = arith.constant 7 : index
      %259 = memref.load %arg4[%c7_146] : memref<32xf32, #tpu.memory_space<smem>>
      %260 = vector.broadcast %259 : f32 to vector<19x128xf32>
      %261 = arith.mulf %260, %258 : vector<19x128xf32>
      %262 = arith.addf %248, %261 : vector<19x128xf32>
      %c23 = arith.constant 23 : index
      %263 = memref.load %arg4[%c23] : memref<32xf32, #tpu.memory_space<smem>>
      %264 = vector.broadcast %263 : f32 to vector<19x128xf32>
      %265 = arith.mulf %264, %258 : vector<19x128xf32>
      %266 = arith.addf %252, %265 : vector<19x128xf32>
      %c4_i32_147 = arith.constant 4 : i32
      %267 = arith.muli %c4_i32_147, %arg14 : i32
      %c4_i32_148 = arith.constant 4 : i32
      %268 = arith.addi %267, %c4_i32_148 : i32
      %c2_i32_149 = arith.constant 2 : i32
      %269 = arith.addi %268, %c2_i32_149 : i32
      %270 = arith.index_cast %269 : i32 to index
      %c2_150 = arith.constant 2 : index
      %c0_151 = arith.constant 0 : index
      %271 = vector.load %arg12[%270, %c2_150, %c0_151] : memref<20x21x128xf32, #tpu.memory_space<vmem>>, vector<1x19x128xf32>
      %272 = vector.shape_cast %271 : vector<1x19x128xf32> to vector<19x128xf32>
      %c11 = arith.constant 11 : index
      %273 = memref.load %arg4[%c11] : memref<32xf32, #tpu.memory_space<smem>>
      %274 = vector.broadcast %273 : f32 to vector<19x128xf32>
      %275 = arith.mulf %274, %272 : vector<19x128xf32>
      %276 = arith.addf %262, %275 : vector<19x128xf32>
      %c27 = arith.constant 27 : index
      %277 = memref.load %arg4[%c27] : memref<32xf32, #tpu.memory_space<smem>>
      %278 = vector.broadcast %277 : f32 to vector<19x128xf32>
      %279 = arith.mulf %278, %272 : vector<19x128xf32>
      %280 = arith.addf %266, %279 : vector<19x128xf32>
      %c4_i32_152 = arith.constant 4 : i32
      %281 = arith.muli %c4_i32_152, %arg14 : i32
      %c4_i32_153 = arith.constant 4 : i32
      %282 = arith.addi %281, %c4_i32_153 : i32
      %c3_i32_154 = arith.constant 3 : i32
      %283 = arith.addi %282, %c3_i32_154 : i32
      %284 = arith.index_cast %283 : i32 to index
      %c2_155 = arith.constant 2 : index
      %c0_156 = arith.constant 0 : index
      %285 = vector.load %arg12[%284, %c2_155, %c0_156] : memref<20x21x128xf32, #tpu.memory_space<vmem>>, vector<1x19x128xf32>
      %286 = vector.shape_cast %285 : vector<1x19x128xf32> to vector<19x128xf32>
      %c15 = arith.constant 15 : index
      %287 = memref.load %arg4[%c15] : memref<32xf32, #tpu.memory_space<smem>>
      %288 = vector.broadcast %287 : f32 to vector<19x128xf32>
      %289 = arith.mulf %288, %286 : vector<19x128xf32>
      %290 = arith.addf %276, %289 : vector<19x128xf32>
      %c31 = arith.constant 31 : index
      %291 = memref.load %arg4[%c31] : memref<32xf32, #tpu.memory_space<smem>>
      %292 = vector.broadcast %291 : f32 to vector<19x128xf32>
      %293 = arith.mulf %292, %286 : vector<19x128xf32>
      %294 = arith.addf %280, %293 : vector<19x128xf32>
      %c0_157 = arith.constant 0 : index
      %295 = memref.load %arg5[%c0_157] : memref<2xf32, #tpu.memory_space<smem>>
      %296 = vector.broadcast %295 : f32 to vector<19x128xf32>
      %297 = arith.addf %290, %296 : vector<19x128xf32>
      %cst_158 = arith.constant 0.000000e+00 : f32
      %298 = vector.broadcast %cst_158 : f32 to vector<19x128xf32>
      %299 = arith.maximumf %297, %298 : vector<19x128xf32>
      %c2_i32_159 = arith.constant 2 : i32
      %300 = arith.muli %arg14, %c2_i32_159 : i32
      %c0_i32_160 = arith.constant 0 : i32
      %301 = arith.addi %300, %c0_i32_160 : i32
      %302 = arith.index_cast %301 : i32 to index
      %c0_161 = arith.constant 0 : index
      %c0_162 = arith.constant 0 : index
      %303 = vector.load %arg13[%302, %c0_161, %c0_162] : memref<8x19x128xf32, #tpu.memory_space<vmem>>, vector<1x19x128xf32>
      %304 = vector.shape_cast %303 : vector<1x19x128xf32> to vector<19x128xf32>
      %305 = vector.shape_cast %299 : vector<19x128xf32> to vector<1x19x128xf32>
      tpu.vector_store %arg13[%302, %c0_161, %c0_162], %305 {strides = array<i32>} : memref<8x19x128xf32, #tpu.memory_space<vmem>>, vector<1x19x128xf32>,
      %c1_163 = arith.constant 1 : index
      %306 = memref.load %arg5[%c1_163] : memref<2xf32, #tpu.memory_space<smem>>
      %307 = vector.broadcast %306 : f32 to vector<19x128xf32>
      %308 = arith.addf %294, %307 : vector<19x128xf32>
      %cst_164 = arith.constant 0.000000e+00 : f32
      %309 = vector.broadcast %cst_164 : f32 to vector<19x128xf32>
      %310 = arith.maximumf %308, %309 : vector<19x128xf32>
      %c2_i32_165 = arith.constant 2 : i32
      %311 = arith.muli %arg14, %c2_i32_165 : i32
      %c1_i32_166 = arith.constant 1 : i32
      %312 = arith.addi %311, %c1_i32_166 : i32
      %313 = arith.index_cast %312 : i32 to index
      %c0_167 = arith.constant 0 : index
      %c0_168 = arith.constant 0 : index
      %314 = vector.load %arg13[%313, %c0_167, %c0_168] : memref<8x19x128xf32, #tpu.memory_space<vmem>>, vector<1x19x128xf32>
      %315 = vector.shape_cast %314 : vector<1x19x128xf32> to vector<19x128xf32>
      %316 = vector.shape_cast %310 : vector<19x128xf32> to vector<1x19x128xf32>
      tpu.vector_store %arg13[%313, %c0_167, %c0_168], %316 {strides = array<i32>} : memref<8x19x128xf32, #tpu.memory_space<vmem>>, vector<1x19x128xf32>,
    }
    %c4_i32_6 = arith.constant 4 : i32
    %c0 = arith.constant 0 : index
    %c0_7 = arith.constant 0 : index
    %c0_8 = arith.constant 0 : index
    %3 = vector.load %arg13[%c0, %c0_7, %c0_8] : memref<8x19x128xf32, #tpu.memory_space<vmem>>, vector<1x17x128xf32>
    %4 = vector.shape_cast %3 : vector<1x17x128xf32> to vector<17x128xf32>
    %c0_9 = arith.constant 0 : index
    %c2 = arith.constant 2 : index
    %c0_10 = arith.constant 0 : index
    %5 = vector.load %arg13[%c0_9, %c2, %c0_10] : memref<8x19x128xf32, #tpu.memory_space<vmem>>, vector<1x17x128xf32>
    %6 = vector.shape_cast %5 : vector<1x17x128xf32> to vector<17x128xf32>
    %7 = arith.maximumf %4, %6 : vector<17x128xf32>
    %c2_11 = arith.constant 2 : index
    %c0_12 = arith.constant 0 : index
    %c0_13 = arith.constant 0 : index
    %8 = vector.load %arg13[%c2_11, %c0_12, %c0_13] : memref<8x19x128xf32, #tpu.memory_space<vmem>>, vector<1x17x128xf32>
    %9 = vector.shape_cast %8 : vector<1x17x128xf32> to vector<17x128xf32>
    %c2_14 = arith.constant 2 : index
    %c2_15 = arith.constant 2 : index
    %c0_16 = arith.constant 0 : index
    %10 = vector.load %arg13[%c2_14, %c2_15, %c0_16] : memref<8x19x128xf32, #tpu.memory_space<vmem>>, vector<1x17x128xf32>
    %11 = vector.shape_cast %10 : vector<1x17x128xf32> to vector<17x128xf32>
    %12 = arith.maximumf %9, %11 : vector<17x128xf32>
    %13 = arith.maximumf %7, %12 : vector<17x128xf32>
    %c0_17 = arith.constant 0 : index
    %c0_18 = arith.constant 0 : index
    %c0_19 = arith.constant 0 : index
    %14 = vector.load %arg6[%c0_17, %c0_18, %c0_19] : memref<4x20x17xf32, #tpu.memory_space<vmem>>, vector<1x20x17xf32>
    %15 = vector.shape_cast %14 : vector<1x20x17xf32> to vector<20x17xf32>
    %cst = arith.constant dense<0.000000e+00> : vector<20x128xf32>
    %16 = tpu.matmul %15, %13, %cst {dimension_numbers = #tpu.dot_dimension_numbers<[1], [0], [0], [1], [0, 0, 1, 1], [], []>} : vector<20x17xf32>, vector<17x128xf32>, vector<20x128xf32> -> vector<20x128xf32>
    %c4 = arith.constant 4 : index
    %c0_20 = arith.constant 0 : index
    %c0_21 = arith.constant 0 : index
    %17 = vector.load %arg13[%c4, %c0_20, %c0_21] : memref<8x19x128xf32, #tpu.memory_space<vmem>>, vector<1x17x128xf32>
    %18 = vector.shape_cast %17 : vector<1x17x128xf32> to vector<17x128xf32>
    %c4_22 = arith.constant 4 : index
    %c2_23 = arith.constant 2 : index
    %c0_24 = arith.constant 0 : index
    %19 = vector.load %arg13[%c4_22, %c2_23, %c0_24] : memref<8x19x128xf32, #tpu.memory_space<vmem>>, vector<1x17x128xf32>
    %20 = vector.shape_cast %19 : vector<1x17x128xf32> to vector<17x128xf32>
    %21 = arith.maximumf %18, %20 : vector<17x128xf32>
    %c6 = arith.constant 6 : index
    %c0_25 = arith.constant 0 : index
    %c0_26 = arith.constant 0 : index
    %22 = vector.load %arg13[%c6, %c0_25, %c0_26] : memref<8x19x128xf32, #tpu.memory_space<vmem>>, vector<1x17x128xf32>
    %23 = vector.shape_cast %22 : vector<1x17x128xf32> to vector<17x128xf32>
    %c6_27 = arith.constant 6 : index
    %c2_28 = arith.constant 2 : index
    %c0_29 = arith.constant 0 : index
    %24 = vector.load %arg13[%c6_27, %c2_28, %c0_29] : memref<8x19x128xf32, #tpu.memory_space<vmem>>, vector<1x17x128xf32>
    %25 = vector.shape_cast %24 : vector<1x17x128xf32> to vector<17x128xf32>
    %26 = arith.maximumf %23, %25 : vector<17x128xf32>
    %27 = arith.maximumf %21, %26 : vector<17x128xf32>
    %c1 = arith.constant 1 : index
    %c0_30 = arith.constant 0 : index
    %c0_31 = arith.constant 0 : index
    %28 = vector.load %arg6[%c1, %c0_30, %c0_31] : memref<4x20x17xf32, #tpu.memory_space<vmem>>, vector<1x20x17xf32>
    %29 = vector.shape_cast %28 : vector<1x20x17xf32> to vector<20x17xf32>
    %cst_32 = arith.constant dense<0.000000e+00> : vector<20x128xf32>
    %30 = tpu.matmul %29, %27, %cst_32 {dimension_numbers = #tpu.dot_dimension_numbers<[1], [0], [0], [1], [0, 0, 1, 1], [], []>} : vector<20x17xf32>, vector<17x128xf32>, vector<20x128xf32> -> vector<20x128xf32>
    %31 = arith.addf %16, %30 : vector<20x128xf32>
    %c1_33 = arith.constant 1 : index
    %c0_34 = arith.constant 0 : index
    %c0_35 = arith.constant 0 : index
    %32 = vector.load %arg13[%c1_33, %c0_34, %c0_35] : memref<8x19x128xf32, #tpu.memory_space<vmem>>, vector<1x17x128xf32>
    %33 = vector.shape_cast %32 : vector<1x17x128xf32> to vector<17x128xf32>
    %c1_36 = arith.constant 1 : index
    %c2_37 = arith.constant 2 : index
    %c0_38 = arith.constant 0 : index
    %34 = vector.load %arg13[%c1_36, %c2_37, %c0_38] : memref<8x19x128xf32, #tpu.memory_space<vmem>>, vector<1x17x128xf32>
    %35 = vector.shape_cast %34 : vector<1x17x128xf32> to vector<17x128xf32>
    %36 = arith.maximumf %33, %35 : vector<17x128xf32>
    %c3 = arith.constant 3 : index
    %c0_39 = arith.constant 0 : index
    %c0_40 = arith.constant 0 : index
    %37 = vector.load %arg13[%c3, %c0_39, %c0_40] : memref<8x19x128xf32, #tpu.memory_space<vmem>>, vector<1x17x128xf32>
    %38 = vector.shape_cast %37 : vector<1x17x128xf32> to vector<17x128xf32>
    %c3_41 = arith.constant 3 : index
    %c2_42 = arith.constant 2 : index
    %c0_43 = arith.constant 0 : index
    %39 = vector.load %arg13[%c3_41, %c2_42, %c0_43] : memref<8x19x128xf32, #tpu.memory_space<vmem>>, vector<1x17x128xf32>
    %40 = vector.shape_cast %39 : vector<1x17x128xf32> to vector<17x128xf32>
    %41 = arith.maximumf %38, %40 : vector<17x128xf32>
    %42 = arith.maximumf %36, %41 : vector<17x128xf32>
    %c2_44 = arith.constant 2 : index
    %c0_45 = arith.constant 0 : index
    %c0_46 = arith.constant 0 : index
    %43 = vector.load %arg6[%c2_44, %c0_45, %c0_46] : memref<4x20x17xf32, #tpu.memory_space<vmem>>, vector<1x20x17xf32>
    %44 = vector.shape_cast %43 : vector<1x20x17xf32> to vector<20x17xf32>
    %cst_47 = arith.constant dense<0.000000e+00> : vector<20x128xf32>
    %45 = tpu.matmul %44, %42, %cst_47 {dimension_numbers = #tpu.dot_dimension_numbers<[1], [0], [0], [1], [0, 0, 1, 1], [], []>} : vector<20x17xf32>, vector<17x128xf32>, vector<20x128xf32> -> vector<20x128xf32>
    %46 = arith.addf %31, %45 : vector<20x128xf32>
    %c5 = arith.constant 5 : index
    %c0_48 = arith.constant 0 : index
    %c0_49 = arith.constant 0 : index
    %47 = vector.load %arg13[%c5, %c0_48, %c0_49] : memref<8x19x128xf32, #tpu.memory_space<vmem>>, vector<1x17x128xf32>
    %48 = vector.shape_cast %47 : vector<1x17x128xf32> to vector<17x128xf32>
    %c5_50 = arith.constant 5 : index
    %c2_51 = arith.constant 2 : index
    %c0_52 = arith.constant 0 : index
    %49 = vector.load %arg13[%c5_50, %c2_51, %c0_52] : memref<8x19x128xf32, #tpu.memory_space<vmem>>, vector<1x17x128xf32>
    %50 = vector.shape_cast %49 : vector<1x17x128xf32> to vector<17x128xf32>
    %51 = arith.maximumf %48, %50 : vector<17x128xf32>
    %c7 = arith.constant 7 : index
    %c0_53 = arith.constant 0 : index
    %c0_54 = arith.constant 0 : index
    %52 = vector.load %arg13[%c7, %c0_53, %c0_54] : memref<8x19x128xf32, #tpu.memory_space<vmem>>, vector<1x17x128xf32>
    %53 = vector.shape_cast %52 : vector<1x17x128xf32> to vector<17x128xf32>
    %c7_55 = arith.constant 7 : index
    %c2_56 = arith.constant 2 : index
    %c0_57 = arith.constant 0 : index
    %54 = vector.load %arg13[%c7_55, %c2_56, %c0_57] : memref<8x19x128xf32, #tpu.memory_space<vmem>>, vector<1x17x128xf32>
    %55 = vector.shape_cast %54 : vector<1x17x128xf32> to vector<17x128xf32>
    %56 = arith.maximumf %53, %55 : vector<17x128xf32>
    %57 = arith.maximumf %51, %56 : vector<17x128xf32>
    %c3_58 = arith.constant 3 : index
    %c0_59 = arith.constant 0 : index
    %c0_60 = arith.constant 0 : index
    %58 = vector.load %arg6[%c3_58, %c0_59, %c0_60] : memref<4x20x17xf32, #tpu.memory_space<vmem>>, vector<1x20x17xf32>
    %59 = vector.shape_cast %58 : vector<1x20x17xf32> to vector<20x17xf32>
    %cst_61 = arith.constant dense<0.000000e+00> : vector<20x128xf32>
    %60 = tpu.matmul %59, %57, %cst_61 {dimension_numbers = #tpu.dot_dimension_numbers<[1], [0], [0], [1], [0, 0, 1, 1], [], []>} : vector<20x17xf32>, vector<17x128xf32>, vector<20x128xf32> -> vector<20x128xf32>
    %61 = arith.addf %46, %60 : vector<20x128xf32>
    %c0_62 = arith.constant 0 : index
    %c0_63 = arith.constant 0 : index
    %62 = vector.load %arg7[%c0_62, %c0_63] : memref<20x1xf32, #tpu.memory_space<vmem>>, vector<20x1xf32>
    %63 = vector.broadcast %62 : vector<20x1xf32> to vector<20x128xf32>
    %64 = arith.addf %61, %63 : vector<20x128xf32>
    %cst_64 = arith.constant 0.000000e+00 : f32
    %65 = vector.broadcast %cst_64 : f32 to vector<20x128xf32>
    %66 = arith.maximumf %64, %65 : vector<20x128xf32>
    %c0_65 = arith.constant 0 : index
    %c0_66 = arith.constant 0 : index
    %67 = vector.load %arg8[%c0_65, %c0_66] : memref<1x20xf32, #tpu.memory_space<vmem>>, vector<1x20xf32>
    %cst_67 = arith.constant dense<0.000000e+00> : vector<1x128xf32>
    %68 = tpu.matmul %67, %66, %cst_67 {dimension_numbers = #tpu.dot_dimension_numbers<[1], [0], [0], [1], [0, 0, 1, 1], [], []>} : vector<1x20xf32>, vector<20x128xf32>, vector<1x128xf32> -> vector<1x128xf32>
    %c0_68 = arith.constant 0 : index
    %69 = memref.load %arg9[%c0_68] : memref<1xf32, #tpu.memory_space<smem>>
    %70 = vector.broadcast %69 : f32 to vector<1x128xf32>
    %71 = arith.addf %68, %70 : vector<1x128xf32>
    %c0_69 = arith.constant 0 : index
    %c0_70 = arith.constant 0 : index
    %72 = vector.load %arg10[%c0_69, %c0_70] : memref<1x128xf32, #tpu.memory_space<vmem>>, vector<1x128xf32>
    tpu.vector_store %arg10[%c0_69, %c0_70], %71 {strides = array<i32>} : memref<1x128xf32, #tpu.memory_space<vmem>>, vector<1x128xf32>,
    return
  }
  func.func @transform_0(%arg0: i32) -> (i32, i32, i32) {
    %c0_i32 = arith.constant 0 : i32
    %c0_i32_0 = arith.constant 0 : i32
    %c0_i32_1 = arith.constant 0 : i32
    return %c0_i32, %c0_i32_0, %arg0 : i32, i32, i32
  }
  func.func @transform_1(%arg0: i32) -> i32 {
    %c0_i32 = arith.constant 0 : i32
    %c0_i32_0 = arith.constant 0 : i32
    return %c0_i32 : i32
  }
  func.func @transform_2(%arg0: i32) -> i32 {
    %c0_i32 = arith.constant 0 : i32
    %c0_i32_0 = arith.constant 0 : i32
    return %c0_i32 : i32
  }
  func.func @transform_3(%arg0: i32) -> i32 {
    %c0_i32 = arith.constant 0 : i32
    %c0_i32_0 = arith.constant 0 : i32
    return %c0_i32 : i32
  }
  func.func @transform_4(%arg0: i32) -> i32 {
    %c0_i32 = arith.constant 0 : i32
    %c0_i32_0 = arith.constant 0 : i32
    return %c0_i32 : i32
  }
  func.func @transform_5(%arg0: i32) -> (i32, i32, i32) {
    %c0_i32 = arith.constant 0 : i32
    %c0_i32_0 = arith.constant 0 : i32
    %c0_i32_1 = arith.constant 0 : i32
    %c0_i32_2 = arith.constant 0 : i32
    return %c0_i32, %c0_i32_0, %c0_i32_1 : i32, i32, i32
  }
  func.func @transform_6(%arg0: i32) -> (i32, i32) {
    %c0_i32 = arith.constant 0 : i32
    %c0_i32_0 = arith.constant 0 : i32
    %c0_i32_1 = arith.constant 0 : i32
    return %c0_i32, %c0_i32_0 : i32, i32
  }
  func.func @transform_7(%arg0: i32) -> (i32, i32) {
    %c0_i32 = arith.constant 0 : i32
    %c0_i32_0 = arith.constant 0 : i32
    %c0_i32_1 = arith.constant 0 : i32
    return %c0_i32, %c0_i32_0 : i32, i32
  }
  func.func @transform_8(%arg0: i32) -> i32 {
    %c0_i32 = arith.constant 0 : i32
    %c0_i32_0 = arith.constant 0 : i32
    return %c0_i32 : i32
  }
  func.func @transform_9(%arg0: i32) -> (i32, i32) {
    %c0_i32 = arith.constant 0 : i32
    %c0_i32_0 = arith.constant 0 : i32
    return %c0_i32, %arg0 : i32, i32
  }
}

</mosaic_0001>

<llo_original>
// kernel: tpu_custom_call.1
$region0: #{tpu_custom_call.1}
  #allocation0 [shape = 'u32[]', space=smem, size = 0x4, offset = 0x4, fixed_abs, tag = 'smem constant byte address 0x4 - core index']
  #allocation1 [shape = 'u32[144,128]{1,0:T(1,128)}', space=vmem, size = 0x12000, scoped, tag = 'internal scratch']
  #allocation2 [shape = 'f32[40,22,128]{2,1,0:T(8,128)}', space=vmem, size = 0x78000, scoped, tag = 'scratch operand']
  #allocation3 [shape = 'f32[20,21,128]{2,1,0:T(8,128)}', space=vmem, size = 0x3c000, scoped, tag = 'scratch operand']
  #allocation4 [shape = 'f32[8,19,128]{2,1,0:T(8,128)}', space=vmem, size = 0x18000, scoped, tag = 'scratch operand']
  #allocation5 [shape = 'f32[1]{0:T(128)S(6)}', space=smem, size = 0x200, scoped, tag = 'scoped memory for tpu_custom_call.1']
  %s0 = inlined_call_operand.vmem [shape: f32[13,25,128], index: 0, kind: input, shape index: {}]
  %s1 = inlined_call_operand.vmem [shape: f32[64], index: 1, kind: input, shape index: {}]
  %s2 = inlined_call_operand.vmem [shape: f32[4], index: 2, kind: input, shape index: {}]
  %s3 = inlined_call_operand.vmem [shape: f32[32], index: 3, kind: input, shape index: {}]
  %s4 = inlined_call_operand.vmem [shape: f32[2], index: 4, kind: input, shape index: {}]
  %s5 = inlined_call_operand.vmem [shape: f32[4,20,17], index: 5, kind: input, shape index: {}]
  %s6 = inlined_call_operand.vmem [shape: f32[20,1], index: 6, kind: input, shape index: {}]
  %s7 = inlined_call_operand.vmem [shape: f32[1,20], index: 7, kind: input, shape index: {}]
  %s8 = inlined_call_operand.<no memory space> [shape: f32[1], index: 8, kind: input, shape index: {}]
  %s9 = inlined_call_operand.hbm [shape: f32[1,128], index: 9, kind: output, shape index: {}]
  %s10 = sld [smem:[#allocation0]]
  $region83: #{tpu_custom_call.1} parent=0
    _
  %s12 = ssub.s32 1, %s10
  %s13 = scalar_select 0, %s12, %s10
  %14 = sst [smem:[#allocation5]] %s8
  $region1: #{tpu_custom_call.1} parent=0
    #allocation6 [shape = 'u8[512]{0}', space=smem, size = 0x200, scoped, tag = 'input window, operand 1, single buffered']
    #allocation7 [shape = 's32[1]{0}', space=sflag, size = 0x4, scoped, tag = 'scoped memory for tpu_custom_call.1']
    #allocation8 [shape = 's32[1]{0}', space=sflag, size = 0x4, scoped, tag = 'scoped memory for tpu_custom_call.1']
    #allocation9 [shape = 'u8[512]{0}', space=smem, size = 0x200, scoped, tag = 'input window, operand 2, single buffered']
    #allocation10 [shape = 's32[1]{0}', space=sflag, size = 0x4, scoped, tag = 'scoped memory for tpu_custom_call.1']
    #allocation11 [shape = 'u8[512]{0}', space=smem, size = 0x200, scoped, tag = 'input window, operand 3, single buffered']
    #allocation12 [shape = 'u8[512]{0}', space=smem, size = 0x200, scoped, tag = 'input window, operand 4, single buffered']
    #allocation13 [shape = 's32[1]{0}', space=sflag, size = 0x4, scoped, tag = 'scoped memory for tpu_custom_call.1']
    #allocation14 [shape = 'u8[512]{0}', space=vmem, size = 0x400, scoped, tag = 'output window, operand 0, single buffered']
    %15 = vsyncpa [#allocation8], 0
    %16 = vsyncpa [#allocation10], 0
    %17 = vsyncpa [#allocation13], 0
    %18 = vsyncpa [#allocation7], 0
    // Predicated region
    $region2: #{tpu_custom_call.1} parent=1 // pred_check
      _
    $region3: #{tpu_custom_call.1} parent=1 // pred_check_branch
      %20 = sbr.rel (0) target = $region5
    $region4: #{tpu_custom_call.1} parent=1 // pred_region
      _
    $region5: #{tpu_custom_call.1} parent=1 // pred_fallthru
      _
    // Predicated region
    $region6: #{tpu_custom_call.1} parent=1 // pred_check
      _
    $region7: #{tpu_custom_call.1} parent=1 // pred_check_branch
      %22 = sbr.rel (0) target = $region9
    $region8: #{tpu_custom_call.1} parent=1 // pred_region
      %s24 = ssub.s32 16, 16
      %25 = vsyncadd [#allocation8], %s24
      %s27 = sshll.u32 %s1, 4
      %s28 = int_to_ptr.vmem [resolvable:$true] %s27
      %30 = dma.vmem_to_smem %s28, 16, [#allocation6], [#allocation8]
    $region9: #{tpu_custom_call.1} parent=1 // pred_fallthru
      _
    // Predicated region
    $region10: #{tpu_custom_call.1} parent=1 // pred_check
      _
    $region11: #{tpu_custom_call.1} parent=1 // pred_check_branch
      %32 = sbr.rel (0) target = $region13
    $region12: #{tpu_custom_call.1} parent=1 // pred_region
      %s34 = ssub.s32 16, 16
      %35 = vsyncadd [#allocation10], %s34
      %s37 = sshll.u32 %s2, 4
      %s38 = int_to_ptr.vmem [resolvable:$true] %s37
      %40 = dma.vmem_to_smem %s38, 16, [#allocation9], [#allocation10]
    $region13: #{tpu_custom_call.1} parent=1 // pred_fallthru
      _
    // Predicated region
    $region14: #{tpu_custom_call.1} parent=1 // pred_check
      _
    $region15: #{tpu_custom_call.1} parent=1 // pred_check_branch
      %42 = sbr.rel (0) target = $region17
    $region16: #{tpu_custom_call.1} parent=1 // pred_region
      %s44 = ssub.s32 16, 16
      %45 = vsyncadd [#allocation10], %s44
      %s47 = sshll.u32 %s3, 4
      %s48 = int_to_ptr.vmem [resolvable:$true] %s47
      %50 = dma.vmem_to_smem %s48, 16, [#allocation11], [#allocation10]
    $region17: #{tpu_custom_call.1} parent=1 // pred_fallthru
      _
    // Predicated region
    $region18: #{tpu_custom_call.1} parent=1 // pred_check
      _
    $region19: #{tpu_custom_call.1} parent=1 // pred_check_branch
      %52 = sbr.rel (0) target = $region21
    $region20: #{tpu_custom_call.1} parent=1 // pred_region
      %s54 = ssub.s32 16, 16
      %55 = vsyncadd [#allocation13], %s54
      %s57 = sshll.u32 %s4, 4
      %s58 = int_to_ptr.vmem [resolvable:$true] %s57
      %60 = dma.vmem_to_smem %s58, 16, [#allocation12], [#allocation13]
    $region21: #{tpu_custom_call.1} parent=1 // pred_fallthru
      _
    // Predicated region
    $region22: #{tpu_custom_call.1} parent=1 // pred_check
      _
    $region23: #{tpu_custom_call.1} parent=1 // pred_check_branch
      %62 = sbr.rel (0) target = $region25
    $region24: #{tpu_custom_call.1} parent=1 // pred_region
      _
    $region25: #{tpu_custom_call.1} parent=1 // pred_fallthru
      _
    // Predicated region
    $region26: #{tpu_custom_call.1} parent=1 // pred_check
      _
    $region27: #{tpu_custom_call.1} parent=1 // pred_check_branch
      %64 = sbr.rel (0) target = $region29
    $region28: #{tpu_custom_call.1} parent=1 // pred_region
      _
    $region29: #{tpu_custom_call.1} parent=1 // pred_fallthru
      _
    // Predicated region
    $region30: #{tpu_custom_call.1} parent=1 // pred_check
      _
    $region31: #{tpu_custom_call.1} parent=1 // pred_check_branch
      %66 = sbr.rel (0) target = $region33
    $region32: #{tpu_custom_call.1} parent=1 // pred_region
      _
    $region33: #{tpu_custom_call.1} parent=1 // pred_fallthru
      _
    // Predicated region
    $region34: #{tpu_custom_call.1} parent=1 // pred_check
      _
    $region35: #{tpu_custom_call.1} parent=1 // pred_check_branch
      %68 = sbr.rel (0) target = $region37
    $region36: #{tpu_custom_call.1} parent=1 // pred_region
      _
    $region37: #{tpu_custom_call.1} parent=1 // pred_fallthru
      _
    // Predicated region
    $region38: #{tpu_custom_call.1} parent=1 // pred_check
      _
    $region39: #{tpu_custom_call.1} parent=1 // pred_check_branch
      %70 = sbr.rel (0) target = $region41
    $region40: #{tpu_custom_call.1} parent=1 // pred_region
      %71 = dma.done [#allocation8], 16
    $region41: #{tpu_custom_call.1} parent=1 // pred_fallthru
      _
    // Predicated region
    $region42: #{tpu_custom_call.1} parent=1 // pred_check
      _
    $region43: #{tpu_custom_call.1} parent=1 // pred_check_branch
      %73 = sbr.rel (0) target = $region45
    $region44: #{tpu_custom_call.1} parent=1 // pred_region
      %74 = dma.done [#allocation10], 16
    $region45: #{tpu_custom_call.1} parent=1 // pred_fallthru
      _
    // Predicated region
    $region46: #{tpu_custom_call.1} parent=1 // pred_check
      _
    $region47: #{tpu_custom_call.1} parent=1 // pred_check_branch
      %76 = sbr.rel (0) target = $region49
    $region48: #{tpu_custom_call.1} parent=1 // pred_region
      %77 = dma.done [#allocation10], 16
    $region49: #{tpu_custom_call.1} parent=1 // pred_fallthru
      _
    // Predicated region
    $region50: #{tpu_custom_call.1} parent=1 // pred_check
      _
    $region51: #{tpu_custom_call.1} parent=1 // pred_check_branch
      %79 = sbr.rel (0) target = $region53
    $region52: #{tpu_custom_call.1} parent=1 // pred_region
      %80 = dma.done [#allocation13], 16
    $region53: #{tpu_custom_call.1} parent=1 // pred_fallthru
      _
    %81 = sfence
    loop: start=0, step=1, limit=10
    $region54: #{tpu_custom_call.1} parent=1 // loop_pre_header
      _
    $region55: #{tpu_custom_call.1} parent=1 // loop_header
      %s83 = sphi 0, %s87
      %p84 = scmp.ge.s32.totalorder %s83, 10
    $region56: #{tpu_custom_call.1} parent=1 // loop_header_branch
      %86 = sbr.rel (%p84) target = $region60
    $region57: #{tpu_custom_call.1} parent=1 // loop_body
      %s88 = smul.u32 %s83, 32
      %s89 = scalar_lea.vmem %s0, %s88
      %v90 = vld [vmem:[%s89] sm:$0xff]
      %v91 = vld [vmem:[%s89 + $0x8] sm:$0xff]
      %v92 = vld [vmem:[%s89 + $0x10] sm:$0x3f]
      %s93 = sld [smem:[#allocation6]]
      %v94 = vstv %s93
      %v95 = vmul.f32 %v94, %v90
      %v96 = vmul.f32 %v94, %v91
      %v97 = vmul.f32 %v94, %v92
      %s98 = sld [smem:[#allocation6 + $0x10]]
      %v99 = vstv %s98
      %v100 = vmul.f32 %v99, %v90
      %v101 = vmul.f32 %v99, %v91
      %v102 = vmul.f32 %v99, %v92
      %s103 = sld [smem:[#allocation6 + $0x20]]
      %v104 = vstv %s103
      %v105 = vmul.f32 %v104, %v90
      %v106 = vmul.f32 %v104, %v91
      %v107 = vmul.f32 %v104, %v92
      %s108 = sld [smem:[#allocation6 + $0x30]]
      %v109 = vstv %s108
      %v110 = vmul.f32 %v109, %v90
      %v111 = vmul.f32 %v109, %v91
      %v112 = vmul.f32 %v109, %v92
      %v113 = vld [vmem:[%s89 + $0x1] sm:$0xff]
      %v114 = vld [vmem:[%s89 + $0x9] sm:$0xff]
      %v115 = vld [vmem:[%s89 + $0x11] sm:$0x3f]
      %s116 = sld [smem:[#allocation6 + $0x1]]
      %v117 = vstv %s116
      %v118 = vmul.f32 %v117, %v113
      %v119 = vmul.f32 %v117, %v114
      %v120 = vmul.f32 %v117, %v115
      %v121 = vadd.f32 %v95, %v118
      %v122 = vadd.f32 %v96, %v119
      %v123 = vadd.f32 %v97, %v120
      %s124 = sld [smem:[#allocation6 + $0x11]]
      %v125 = vstv %s124
      %v126 = vmul.f32 %v125, %v113
      %v127 = vmul.f32 %v125, %v114
      %v128 = vmul.f32 %v125, %v115
      %v129 = vadd.f32 %v100, %v126
      %v130 = vadd.f32 %v101, %v127
      %v131 = vadd.f32 %v102, %v128
      %s132 = sld [smem:[#allocation6 + $0x21]]
      %v133 = vstv %s132
      %v134 = vmul.f32 %v133, %v113
      %v135 = vmul.f32 %v133, %v114
      %v136 = vmul.f32 %v133, %v115
      %v137 = vadd.f32 %v105, %v134
      %v138 = vadd.f32 %v106, %v135
      %v139 = vadd.f32 %v107, %v136
      %s140 = sld [smem:[#allocation6 + $0x31]]
      %v141 = vstv %s140
      %v142 = vmul.f32 %v141, %v113
      %v143 = vmul.f32 %v141, %v114
      %v144 = vmul.f32 %v141, %v115
      %v145 = vadd.f32 %v110, %v142
      %v146 = vadd.f32 %v111, %v143
      %v147 = vadd.f32 %v112, %v144
      %v148 = vld [vmem:[%s89 + $0x2] sm:$0xff]
      %v149 = vld [vmem:[%s89 + $0xa] sm:$0xff]
      %v150 = vld [vmem:[%s89 + $0x12] sm:$0x3f]
      %s151 = sld [smem:[#allocation6 + $0x2]]
      %v152 = vstv %s151
      %v153 = vmul.f32 %v152, %v148
      %v154 = vmul.f32 %v152, %v149
      %v155 = vmul.f32 %v152, %v150
      %v156 = vadd.f32 %v121, %v153
      %v157 = vadd.f32 %v122, %v154
      %v158 = vadd.f32 %v123, %v155
      %s159 = sld [smem:[#allocation6 + $0x12]]
      %v160 = vstv %s159
      %v161 = vmul.f32 %v160, %v148
      %v162 = vmul.f32 %v160, %v149
      %v163 = vmul.f32 %v160, %v150
      %v164 = vadd.f32 %v129, %v161
      %v165 = vadd.f32 %v130, %v162
      %v166 = vadd.f32 %v131, %v163
      %s167 = sld [smem:[#allocation6 + $0x22]]
      %v168 = vstv %s167
      %v169 = vmul.f32 %v168, %v148
      %v170 = vmul.f32 %v168, %v149
      %v171 = vmul.f32 %v168, %v150
      %v172 = vadd.f32 %v137, %v169
      %v173 = vadd.f32 %v138, %v170
      %v174 = vadd.f32 %v139, %v171
      %s175 = sld [smem:[#allocation6 + $0x32]]
      %v176 = vstv %s175
      %v177 = vmul.f32 %v176, %v148
      %v178 = vmul.f32 %v176, %v149
      %v179 = vmul.f32 %v176, %v150
      %v180 = vadd.f32 %v145, %v177
      %v181 = vadd.f32 %v146, %v178
      %v182 = vadd.f32 %v147, %v179
      %v183 = vld [vmem:[%s89 + $0x3] sm:$0xff]
      %v184 = vld [vmem:[%s89 + $0xb] sm:$0xff]
      %v185 = vld [vmem:[%s89 + $0x13] sm:$0x3f]
      %s186 = sld [smem:[#allocation6 + $0x3]]
      %v187 = vstv %s186
      %v188 = vmul.f32 %v187, %v183
      %v189 = vmul.f32 %v187, %v184
      %v190 = vmul.f32 %v187, %v185
      %v191 = vadd.f32 %v156, %v188
      %v192 = vadd.f32 %v157, %v189
      %v193 = vadd.f32 %v158, %v190
      %s194 = sld [smem:[#allocation6 + $0x13]]
      %v195 = vstv %s194
      %v196 = vmul.f32 %v195, %v183
      %v197 = vmul.f32 %v195, %v184
      %v198 = vmul.f32 %v195, %v185
      %v199 = vadd.f32 %v164, %v196
      %v200 = vadd.f32 %v165, %v197
      %v201 = vadd.f32 %v166, %v198
      %s202 = sld [smem:[#allocation6 + $0x23]]
      %v203 = vstv %s202
      %v204 = vmul.f32 %v203, %v183
      %v205 = vmul.f32 %v203, %v184
      %v206 = vmul.f32 %v203, %v185
      %v207 = vadd.f32 %v172, %v204
      %v208 = vadd.f32 %v173, %v205
      %v209 = vadd.f32 %v174, %v206
      %s210 = sld [smem:[#allocation6 + $0x33]]
      %v211 = vstv %s210
      %v212 = vmul.f32 %v211, %v183
      %v213 = vmul.f32 %v211, %v184
      %v214 = vmul.f32 %v211, %v185
      %v215 = vadd.f32 %v180, %v212
      %v216 = vadd.f32 %v181, %v213
      %v217 = vadd.f32 %v182, %v214
      %s218 = sadd.s32 %s83, 1
      %s219 = smul.u32 %s218, 32
      %s220 = scalar_lea.vmem %s0, %s219
      %v221 = vld [vmem:[%s220] sm:$0xff]
      %v222 = vld [vmem:[%s220 + $0x8] sm:$0xff]
      %v223 = vld [vmem:[%s220 + $0x10] sm:$0x3f]
      %s224 = sld [smem:[#allocation6 + $0x4]]
      %v225 = vstv %s224
      %v226 = vmul.f32 %v225, %v221
      %v227 = vmul.f32 %v225, %v222
      %v228 = vmul.f32 %v225, %v223
      %v229 = vadd.f32 %v191, %v226
      %v230 = vadd.f32 %v192, %v227
      %v231 = vadd.f32 %v193, %v228
      %s232 = sld [smem:[#allocation6 + $0x14]]
      %v233 = vstv %s232
      %v234 = vmul.f32 %v233, %v221
      %v235 = vmul.f32 %v233, %v222
      %v236 = vmul.f32 %v233, %v223
      %v237 = vadd.f32 %v199, %v234
      %v238 = vadd.f32 %v200, %v235
      %v239 = vadd.f32 %v201, %v236
      %s240 = sld [smem:[#allocation6 + $0x24]]
      %v241 = vstv %s240
      %v242 = vmul.f32 %v241, %v221
      %v243 = vmul.f32 %v241, %v222
      %v244 = vmul.f32 %v241, %v223
      %v245 = vadd.f32 %v207, %v242
      %v246 = vadd.f32 %v208, %v243
      %v247 = vadd.f32 %v209, %v244
      %s248 = sld [smem:[#allocation6 + $0x34]]
      %v249 = vstv %s248
      %v250 = vmul.f32 %v249, %v221
      %v251 = vmul.f32 %v249, %v222
      %v252 = vmul.f32 %v249, %v223
      %v253 = vadd.f32 %v215, %v250
      %v254 = vadd.f32 %v216, %v251
      %v255 = vadd.f32 %v217, %v252
      %v256 = vld [vmem:[%s220 + $0x1] sm:$0xff]
      %v257 = vld [vmem:[%s220 + $0x9] sm:$0xff]
      %v258 = vld [vmem:[%s220 + $0x11] sm:$0x3f]
      %s259 = sld [smem:[#allocation6 + $0x5]]
      %v260 = vstv %s259
      %v261 = vmul.f32 %v260, %v256
      %v262 = vmul.f32 %v260, %v257
      %v263 = vmul.f32 %v260, %v258
      %v264 = vadd.f32 %v229, %v261
      %v265 = vadd.f32 %v230, %v262
      %v266 = vadd.f32 %v231, %v263
      %s267 = sld [smem:[#allocation6 + $0x15]]
      %v268 = vstv %s267
      %v269 = vmul.f32 %v268, %v256
      %v270 = vmul.f32 %v268, %v257
      %v271 = vmul.f32 %v268, %v258
      %v272 = vadd.f32 %v237, %v269
      %v273 = vadd.f32 %v238, %v270
      %v274 = vadd.f32 %v239, %v271
      %s275 = sld [smem:[#allocation6 + $0x25]]
      %v276 = vstv %s275
      %v277 = vmul.f32 %v276, %v256
      %v278 = vmul.f32 %v276, %v257
      %v279 = vmul.f32 %v276, %v258
      %v280 = vadd.f32 %v245, %v277
      %v281 = vadd.f32 %v246, %v278
      %v282 = vadd.f32 %v247, %v279
      %s283 = sld [smem:[#allocation6 + $0x35]]
      %v284 = vstv %s283
      %v285 = vmul.f32 %v284, %v256
      %v286 = vmul.f32 %v284, %v257
      %v287 = vmul.f32 %v284, %v258
      %v288 = vadd.f32 %v253, %v285
      %v289 = vadd.f32 %v254, %v286
      %v290 = vadd.f32 %v255, %v287
      %v291 = vld [vmem:[%s220 + $0x2] sm:$0xff]
      %v292 = vld [vmem:[%s220 + $0xa] sm:$0xff]
      %v293 = vld [vmem:[%s220 + $0x12] sm:$0x3f]
      %s294 = sld [smem:[#allocation6 + $0x6]]
      %v295 = vstv %s294
      %v296 = vmul.f32 %v295, %v291
      %v297 = vmul.f32 %v295, %v292
      %v298 = vmul.f32 %v295, %v293
      %v299 = vadd.f32 %v264, %v296
      %v300 = vadd.f32 %v265, %v297
      %v301 = vadd.f32 %v266, %v298
      %s302 = sld [smem:[#allocation6 + $0x16]]
      %v303 = vstv %s302
      %v304 = vmul.f32 %v303, %v291
      %v305 = vmul.f32 %v303, %v292
      %v306 = vmul.f32 %v303, %v293
      %v307 = vadd.f32 %v272, %v304
      %v308 = vadd.f32 %v273, %v305
      %v309 = vadd.f32 %v274, %v306
      %s310 = sld [smem:[#allocation6 + $0x26]]
      %v311 = vstv %s310
      %v312 = vmul.f32 %v311, %v291
      %v313 = vmul.f32 %v311, %v292
      %v314 = vmul.f32 %v311, %v293
      %v315 = vadd.f32 %v280, %v312
      %v316 = vadd.f32 %v281, %v313
      %v317 = vadd.f32 %v282, %v314
      %s318 = sld [smem:[#allocation6 + $0x36]]
      %v319 = vstv %s318
      %v320 = vmul.f32 %v319, %v291
      %v321 = vmul.f32 %v319, %v292
      %v322 = vmul.f32 %v319, %v293
      %v323 = vadd.f32 %v288, %v320
      %v324 = vadd.f32 %v289, %v321
      %v325 = vadd.f32 %v290, %v322
      %v326 = vld [vmem:[%s220 + $0x3] sm:$0xff]
      %v327 = vld [vmem:[%s220 + $0xb] sm:$0xff]
      %v328 = vld [vmem:[%s220 + $0x13] sm:$0x3f]
      %s329 = sld [smem:[#allocation6 + $0x7]]
      %v330 = vstv %s329
      %v331 = vmul.f32 %v330, %v326
      %v332 = vmul.f32 %v330, %v327
      %v333 = vmul.f32 %v330, %v328
      %v334 = vadd.f32 %v299, %v331
      %v335 = vadd.f32 %v300, %v332
      %v336 = vadd.f32 %v301, %v333
      %s337 = sld [smem:[#allocation6 + $0x17]]
      %v338 = vstv %s337
      %v339 = vmul.f32 %v338, %v326
      %v340 = vmul.f32 %v338, %v327
      %v341 = vmul.f32 %v338, %v328
      %v342 = vadd.f32 %v307, %v339
      %v343 = vadd.f32 %v308, %v340
      %v344 = vadd.f32 %v309, %v341
      %s345 = sld [smem:[#allocation6 + $0x27]]
      %v346 = vstv %s345
      %v347 = vmul.f32 %v346, %v326
      %v348 = vmul.f32 %v346, %v327
      %v349 = vmul.f32 %v346, %v328
      %v350 = vadd.f32 %v315, %v347
      %v351 = vadd.f32 %v316, %v348
      %v352 = vadd.f32 %v317, %v349
      %s353 = sld [smem:[#allocation6 + $0x37]]
      %v354 = vstv %s353
      %v355 = vmul.f32 %v354, %v326
      %v356 = vmul.f32 %v354, %v327
      %v357 = vmul.f32 %v354, %v328
      %v358 = vadd.f32 %v323, %v355
      %v359 = vadd.f32 %v324, %v356
      %v360 = vadd.f32 %v325, %v357
      %s361 = sadd.s32 %s83, 2
      %s362 = smul.u32 %s361, 32
      %s363 = scalar_lea.vmem %s0, %s362
      %v364 = vld [vmem:[%s363] sm:$0xff]
      %v365 = vld [vmem:[%s363 + $0x8] sm:$0xff]
      %v366 = vld [vmem:[%s363 + $0x10] sm:$0x3f]
      %s367 = sld [smem:[#allocation6 + $0x8]]
      %v368 = vstv %s367
      %v369 = vmul.f32 %v368, %v364
      %v370 = vmul.f32 %v368, %v365
      %v371 = vmul.f32 %v368, %v366
      %v372 = vadd.f32 %v334, %v369
      %v373 = vadd.f32 %v335, %v370
      %v374 = vadd.f32 %v336, %v371
      %s375 = sld [smem:[#allocation6 + $0x18]]
      %v376 = vstv %s375
      %v377 = vmul.f32 %v376, %v364
      %v378 = vmul.f32 %v376, %v365
      %v379 = vmul.f32 %v376, %v366
      %v380 = vadd.f32 %v342, %v377
      %v381 = vadd.f32 %v343, %v378
      %v382 = vadd.f32 %v344, %v379
      %s383 = sld [smem:[#allocation6 + $0x28]]
      %v384 = vstv %s383
      %v385 = vmul.f32 %v384, %v364
      %v386 = vmul.f32 %v384, %v365
      %v387 = vmul.f32 %v384, %v366
      %v388 = vadd.f32 %v350, %v385
      %v389 = vadd.f32 %v351, %v386
      %v390 = vadd.f32 %v352, %v387
      %s391 = sld [smem:[#allocation6 + $0x38]]
      %v392 = vstv %s391
      %v393 = vmul.f32 %v392, %v364
      %v394 = vmul.f32 %v392, %v365
      %v395 = vmul.f32 %v392, %v366
      %v396 = vadd.f32 %v358, %v393
      %v397 = vadd.f32 %v359, %v394
      %v398 = vadd.f32 %v360, %v395
      %v399 = vld [vmem:[%s363 + $0x1] sm:$0xff]
      %v400 = vld [vmem:[%s363 + $0x9] sm:$0xff]
      %v401 = vld [vmem:[%s363 + $0x11] sm:$0x3f]
      %s402 = sld [smem:[#allocation6 + $0x9]]
      %v403 = vstv %s402
      %v404 = vmul.f32 %v403, %v399
      %v405 = vmul.f32 %v403, %v400
      %v406 = vmul.f32 %v403, %v401
      %v407 = vadd.f32 %v372, %v404
      %v408 = vadd.f32 %v373, %v405
      %v409 = vadd.f32 %v374, %v406
      %s410 = sld [smem:[#allocation6 + $0x19]]
      %v411 = vstv %s410
      %v412 = vmul.f32 %v411, %v399
      %v413 = vmul.f32 %v411, %v400
      %v414 = vmul.f32 %v411, %v401
      %v415 = vadd.f32 %v380, %v412
      %v416 = vadd.f32 %v381, %v413
      %v417 = vadd.f32 %v382, %v414
      %s418 = sld [smem:[#allocation6 + $0x29]]
      %v419 = vstv %s418
      %v420 = vmul.f32 %v419, %v399
      %v421 = vmul.f32 %v419, %v400
      %v422 = vmul.f32 %v419, %v401
      %v423 = vadd.f32 %v388, %v420
      %v424 = vadd.f32 %v389, %v421
      %v425 = vadd.f32 %v390, %v422
      %s426 = sld [smem:[#allocation6 + $0x39]]
      %v427 = vstv %s426
      %v428 = vmul.f32 %v427, %v399
      %v429 = vmul.f32 %v427, %v400
      %v430 = vmul.f32 %v427, %v401
      %v431 = vadd.f32 %v396, %v428
      %v432 = vadd.f32 %v397, %v429
      %v433 = vadd.f32 %v398, %v430
      %v434 = vld [vmem:[%s363 + $0x2] sm:$0xff]
      %v435 = vld [vmem:[%s363 + $0xa] sm:$0xff]
      %v436 = vld [vmem:[%s363 + $0x12] sm:$0x3f]
      %s437 = sld [smem:[#allocation6 + $0xa]]
      %v438 = vstv %s437
      %v439 = vmul.f32 %v438, %v434
      %v440 = vmul.f32 %v438, %v435
      %v441 = vmul.f32 %v438, %v436
      %v442 = vadd.f32 %v407, %v439
      %v443 = vadd.f32 %v408, %v440
      %v444 = vadd.f32 %v409, %v441
      %s445 = sld [smem:[#allocation6 + $0x1a]]
      %v446 = vstv %s445
      %v447 = vmul.f32 %v446, %v434
      %v448 = vmul.f32 %v446, %v435
      %v449 = vmul.f32 %v446, %v436
      %v450 = vadd.f32 %v415, %v447
      %v451 = vadd.f32 %v416, %v448
      %v452 = vadd.f32 %v417, %v449
      %s453 = sld [smem:[#allocation6 + $0x2a]]
      %v454 = vstv %s453
      %v455 = vmul.f32 %v454, %v434
      %v456 = vmul.f32 %v454, %v435
      %v457 = vmul.f32 %v454, %v436
      %v458 = vadd.f32 %v423, %v455
      %v459 = vadd.f32 %v424, %v456
      %v460 = vadd.f32 %v425, %v457
      %s461 = sld [smem:[#allocation6 + $0x3a]]
      %v462 = vstv %s461
      %v463 = vmul.f32 %v462, %v434
      %v464 = vmul.f32 %v462, %v435
      %v465 = vmul.f32 %v462, %v436
      %v466 = vadd.f32 %v431, %v463
      %v467 = vadd.f32 %v432, %v464
      %v468 = vadd.f32 %v433, %v465
      %v469 = vld [vmem:[%s363 + $0x3] sm:$0xff]
      %v470 = vld [vmem:[%s363 + $0xb] sm:$0xff]
      %v471 = vld [vmem:[%s363 + $0x13] sm:$0x3f]
      %s472 = sld [smem:[#allocation6 + $0xb]]
      %v473 = vstv %s472
      %v474 = vmul.f32 %v473, %v469
      %v475 = vmul.f32 %v473, %v470
      %v476 = vmul.f32 %v473, %v471
      %v477 = vadd.f32 %v442, %v474
      %v478 = vadd.f32 %v443, %v475
      %v479 = vadd.f32 %v444, %v476
      %s480 = sld [smem:[#allocation6 + $0x1b]]
      %v481 = vstv %s480
      %v482 = vmul.f32 %v481, %v469
      %v483 = vmul.f32 %v481, %v470
      %v484 = vmul.f32 %v481, %v471
      %v485 = vadd.f32 %v450, %v482
      %v486 = vadd.f32 %v451, %v483
      %v487 = vadd.f32 %v452, %v484
      %s488 = sld [smem:[#allocation6 + $0x2b]]
      %v489 = vstv %s488
      %v490 = vmul.f32 %v489, %v469
      %v491 = vmul.f32 %v489, %v470
      %v492 = vmul.f32 %v489, %v471
      %v493 = vadd.f32 %v458, %v490
      %v494 = vadd.f32 %v459, %v491
      %v495 = vadd.f32 %v460, %v492
      %s496 = sld [smem:[#allocation6 + $0x3b]]
      %v497 = vstv %s496
      %v498 = vmul.f32 %v497, %v469
      %v499 = vmul.f32 %v497, %v470
      %v500 = vmul.f32 %v497, %v471
      %v501 = vadd.f32 %v466, %v498
      %v502 = vadd.f32 %v467, %v499
      %v503 = vadd.f32 %v468, %v500
      %s504 = sadd.s32 %s83, 3
      %s505 = smul.u32 %s504, 32
      %s506 = scalar_lea.vmem %s0, %s505
      %v507 = vld [vmem:[%s506] sm:$0xff]
      %v508 = vld [vmem:[%s506 + $0x8] sm:$0xff]
      %v509 = vld [vmem:[%s506 + $0x10] sm:$0x3f]
      %s510 = sld [smem:[#allocation6 + $0xc]]
      %v511 = vstv %s510
      %v512 = vmul.f32 %v511, %v507
      %v513 = vmul.f32 %v511, %v508
      %v514 = vmul.f32 %v511, %v509
      %v515 = vadd.f32 %v477, %v512
      %v516 = vadd.f32 %v478, %v513
      %v517 = vadd.f32 %v479, %v514
      %s518 = sld [smem:[#allocation6 + $0x1c]]
      %v519 = vstv %s518
      %v520 = vmul.f32 %v519, %v507
      %v521 = vmul.f32 %v519, %v508
      %v522 = vmul.f32 %v519, %v509
      %v523 = vadd.f32 %v485, %v520
      %v524 = vadd.f32 %v486, %v521
      %v525 = vadd.f32 %v487, %v522
      %s526 = sld [smem:[#allocation6 + $0x2c]]
      %v527 = vstv %s526
      %v528 = vmul.f32 %v527, %v507
      %v529 = vmul.f32 %v527, %v508
      %v530 = vmul.f32 %v527, %v509
      %v531 = vadd.f32 %v493, %v528
      %v532 = vadd.f32 %v494, %v529
      %v533 = vadd.f32 %v495, %v530
      %s534 = sld [smem:[#allocation6 + $0x3c]]
      %v535 = vstv %s534
      %v536 = vmul.f32 %v535, %v507
      %v537 = vmul.f32 %v535, %v508
      %v538 = vmul.f32 %v535, %v509
      %v539 = vadd.f32 %v501, %v536
      %v540 = vadd.f32 %v502, %v537
      %v541 = vadd.f32 %v503, %v538
      %v542 = vld [vmem:[%s506 + $0x1] sm:$0xff]
      %v543 = vld [vmem:[%s506 + $0x9] sm:$0xff]
      %v544 = vld [vmem:[%s506 + $0x11] sm:$0x3f]
      %s545 = sld [smem:[#allocation6 + $0xd]]
      %v546 = vstv %s545
      %v547 = vmul.f32 %v546, %v542
      %v548 = vmul.f32 %v546, %v543
      %v549 = vmul.f32 %v546, %v544
      %v550 = vadd.f32 %v515, %v547
      %v551 = vadd.f32 %v516, %v548
      %v552 = vadd.f32 %v517, %v549
      %s553 = sld [smem:[#allocation6 + $0x1d]]
      %v554 = vstv %s553
      %v555 = vmul.f32 %v554, %v542
      %v556 = vmul.f32 %v554, %v543
      %v557 = vmul.f32 %v554, %v544
      %v558 = vadd.f32 %v523, %v555
      %v559 = vadd.f32 %v524, %v556
      %v560 = vadd.f32 %v525, %v557
      %s561 = sld [smem:[#allocation6 + $0x2d]]
      %v562 = vstv %s561
      %v563 = vmul.f32 %v562, %v542
      %v564 = vmul.f32 %v562, %v543
      %v565 = vmul.f32 %v562, %v544
      %v566 = vadd.f32 %v531, %v563
      %v567 = vadd.f32 %v532, %v564
      %v568 = vadd.f32 %v533, %v565
      %s569 = sld [smem:[#allocation6 + $0x3d]]
      %v570 = vstv %s569
      %v571 = vmul.f32 %v570, %v542
      %v572 = vmul.f32 %v570, %v543
      %v573 = vmul.f32 %v570, %v544
      %v574 = vadd.f32 %v539, %v571
      %v575 = vadd.f32 %v540, %v572
      %v576 = vadd.f32 %v541, %v573
      %v577 = vld [vmem:[%s506 + $0x2] sm:$0xff]
      %v578 = vld [vmem:[%s506 + $0xa] sm:$0xff]
      %v579 = vld [vmem:[%s506 + $0x12] sm:$0x3f]
      %s580 = sld [smem:[#allocation6 + $0xe]]
      %v581 = vstv %s580
      %v582 = vmul.f32 %v581, %v577
      %v583 = vmul.f32 %v581, %v578
      %v584 = vmul.f32 %v581, %v579
      %v585 = vadd.f32 %v550, %v582
      %v586 = vadd.f32 %v551, %v583
      %v587 = vadd.f32 %v552, %v584
      %s588 = sld [smem:[#allocation6 + $0x1e]]
      %v589 = vstv %s588
      %v590 = vmul.f32 %v589, %v577
      %v591 = vmul.f32 %v589, %v578
      %v592 = vmul.f32 %v589, %v579
      %v593 = vadd.f32 %v558, %v590
      %v594 = vadd.f32 %v559, %v591
      %v595 = vadd.f32 %v560, %v592
      %s596 = sld [smem:[#allocation6 + $0x2e]]
      %v597 = vstv %s596
      %v598 = vmul.f32 %v597, %v577
      %v599 = vmul.f32 %v597, %v578
      %v600 = vmul.f32 %v597, %v579
      %v601 = vadd.f32 %v566, %v598
      %v602 = vadd.f32 %v567, %v599
      %v603 = vadd.f32 %v568, %v600
      %s604 = sld [smem:[#allocation6 + $0x3e]]
      %v605 = vstv %s604
      %v606 = vmul.f32 %v605, %v577
      %v607 = vmul.f32 %v605, %v578
      %v608 = vmul.f32 %v605, %v579
      %v609 = vadd.f32 %v574, %v606
      %v610 = vadd.f32 %v575, %v607
      %v611 = vadd.f32 %v576, %v608
      %v612 = vld [vmem:[%s506 + $0x3] sm:$0xff]
      %v613 = vld [vmem:[%s506 + $0xb] sm:$0xff]
      %v614 = vld [vmem:[%s506 + $0x13] sm:$0x3f]
      %s615 = sld [smem:[#allocation6 + $0xf]]
      %v616 = vstv %s615
      %v617 = vmul.f32 %v616, %v612
      %v618 = vmul.f32 %v616, %v613
      %v619 = vmul.f32 %v616, %v614
      %v620 = vadd.f32 %v585, %v617
      %v621 = vadd.f32 %v586, %v618
      %v622 = vadd.f32 %v587, %v619
      %s623 = sld [smem:[#allocation6 + $0x1f]]
      %v624 = vstv %s623
      %v625 = vmul.f32 %v624, %v612
      %v626 = vmul.f32 %v624, %v613
      %v627 = vmul.f32 %v624, %v614
      %v628 = vadd.f32 %v593, %v625
      %v629 = vadd.f32 %v594, %v626
      %v630 = vadd.f32 %v595, %v627
      %s631 = sld [smem:[#allocation6 + $0x2f]]
      %v632 = vstv %s631
      %v633 = vmul.f32 %v632, %v612
      %v634 = vmul.f32 %v632, %v613
      %v635 = vmul.f32 %v632, %v614
      %v636 = vadd.f32 %v601, %v633
      %v637 = vadd.f32 %v602, %v634
      %v638 = vadd.f32 %v603, %v635
      %s639 = sld [smem:[#allocation6 + $0x3f]]
      %v640 = vstv %s639
      %v641 = vmul.f32 %v640, %v612
      %v642 = vmul.f32 %v640, %v613
      %v643 = vmul.f32 %v640, %v614
      %v644 = vadd.f32 %v609, %v641
      %v645 = vadd.f32 %v610, %v642
      %v646 = vadd.f32 %v611, %v643
      %s647 = sld [smem:[#allocation9]]
      %v648 = vstv %s647
      %v649 = vadd.f32 %v620, %v648
      %v650 = vadd.f32 %v621, %v648
      %v651 = vadd.f32 %v622, %v648
      %v652 = vmax.f32 %v649, 0.0
      %v653 = vmax.f32 %v650, 0.0
      %v654 = vmax.f32 %v651, 0.0
      %s655 = smul.u32 %s83, 4
      %s656 = smul.u32 %s655, 24
      %s657 = scalar_lea.vmem [#allocation2], %s656
      %658 = vst [vmem:[%s657] sm:$0xff] %v652
      %659 = vst [vmem:[%s657 + $0x8] sm:$0xff] %v653
      %660 = vst [vmem:[%s657 + $0x10] sm:$0x3f] %v654
      %s661 = sld [smem:[#allocation9 + $0x1]]
      %v662 = vstv %s661
      %v663 = vadd.f32 %v628, %v662
      %v664 = vadd.f32 %v629, %v662
      %v665 = vadd.f32 %v630, %v662
      %v666 = vmax.f32 %v663, 0.0
      %v667 = vmax.f32 %v664, 0.0
      %v668 = vmax.f32 %v665, 0.0
      %s669 = sadd.s32 %s655, 1
      %s670 = smul.u32 %s669, 24
      %s671 = scalar_lea.vmem [#allocation2], %s670
      %672 = vst [vmem:[%s671] sm:$0xff] %v666
      %673 = vst [vmem:[%s671 + $0x8] sm:$0xff] %v667
      %674 = vst [vmem:[%s671 + $0x10] sm:$0x3f] %v668
      %s675 = sld [smem:[#allocation9 + $0x2]]
      %v676 = vstv %s675
      %v677 = vadd.f32 %v636, %v676
      %v678 = vadd.f32 %v637, %v676
      %v679 = vadd.f32 %v638, %v676
      %v680 = vmax.f32 %v677, 0.0
      %v681 = vmax.f32 %v678, 0.0
      %v682 = vmax.f32 %v679, 0.0
      %s683 = sadd.s32 %s655, 2
      %s684 = smul.u32 %s683, 24
      %s685 = scalar_lea.vmem [#allocation2], %s684
      %686 = vst [vmem:[%s685] sm:$0xff] %v680
      %687 = vst [vmem:[%s685 + $0x8] sm:$0xff] %v681
      %688 = vst [vmem:[%s685 + $0x10] sm:$0x3f] %v682
      %s689 = sld [smem:[#allocation9 + $0x3]]
      %v690 = vstv %s689
      %v691 = vadd.f32 %v644, %v690
      %v692 = vadd.f32 %v645, %v690
      %v693 = vadd.f32 %v646, %v690
      %v694 = vmax.f32 %v691, 0.0
      %v695 = vmax.f32 %v692, 0.0
      %v696 = vmax.f32 %v693, 0.0
      %s697 = sadd.s32 %s655, 3
      %s698 = smul.u32 %s697, 24
      %s699 = scalar_lea.vmem [#allocation2], %s698
      %700 = vst [vmem:[%s699] sm:$0xff] %v694
      %701 = vst [vmem:[%s699 + $0x8] sm:$0xff] %v695
      %702 = vst [vmem:[%s699 + $0x10] sm:$0x3f] %v696
    $region58: #{tpu_custom_call.1} parent=1 // loop_footer
      %s87 = sadd.s32 1, %s83
    $region59: #{tpu_custom_call.1} parent=1 // loop_footer_branch
      %82 = sbr.rel target = $region55
    $region60: #{tpu_custom_call.1} parent=1 // loop_exit
      _
    loop: start=0, step=1, limit=5
    $region61: #{tpu_custom_call.1} parent=1 // loop_pre_header
      _
    $region62: #{tpu_custom_call.1} parent=1 // loop_header
      %s704 = sphi 0, %s708
      %p705 = scmp.ge.s32.totalorder %s704, 5
    $region63: #{tpu_custom_call.1} parent=1 // loop_header_branch
      %707 = sbr.rel (%p705) target = $region67
    $region64: #{tpu_custom_call.1} parent=1 // loop_body
      %s709 = smul.u32 %s704, 8
      %s710 = smul.u32 %s709, 24
      %s711 = scalar_lea.vmem [#allocation2], %s710
      %v712 = vld [vmem:[%s711] sm:$0xff]
      %v713 = vld [vmem:[%s711 + $0x8] sm:$0xff]
      %v714 = vld [vmem:[%s711 + $0x10] sm:$0x1f]
      %v715 = vld [vmem:[%s711 + $0x1] sm:$0xff]
      %v716 = vld [vmem:[%s711 + $0x9] sm:$0xff]
      %v717 = vld [vmem:[%s711 + $0x11] sm:$0x1f]
      %v718 = vmax.f32 %v712, %v715
      %v719 = vmax.f32 %v713, %v716
      %v720 = vmax.f32 %v714, %v717
      %s721 = sadd.s32 %s709, 4
      %s722 = smul.u32 %s721, 24
      %s723 = scalar_lea.vmem [#allocation2], %s722
      %v724 = vld [vmem:[%s723] sm:$0xff]
      %v725 = vld [vmem:[%s723 + $0x8] sm:$0xff]
      %v726 = vld [vmem:[%s723 + $0x10] sm:$0x1f]
      %v727 = vld [vmem:[%s723 + $0x1] sm:$0xff]
      %v728 = vld [vmem:[%s723 + $0x9] sm:$0xff]
      %v729 = vld [vmem:[%s723 + $0x11] sm:$0x1f]
      %v730 = vmax.f32 %v724, %v727
      %v731 = vmax.f32 %v725, %v728
      %v732 = vmax.f32 %v726, %v729
      %v733 = vmax.f32 %v718, %v730
      %v734 = vmax.f32 %v719, %v731
      %v735 = vmax.f32 %v720, %v732
      %s736 = smul.u32 %s704, 4
      %s737 = smul.u32 %s736, 24
      %s738 = scalar_lea.vmem [#allocation3], %s737
      %739 = vst [vmem:[%s738] sm:$0xff] %v733
      %740 = vst [vmem:[%s738 + $0x8] sm:$0xff] %v734
      %741 = vst [vmem:[%s738 + $0x10] sm:$0x1f] %v735
      %s742 = sadd.s32 %s709, 1
      %s743 = smul.u32 %s742, 24
      %s744 = scalar_lea.vmem [#allocation2], %s743
      %v745 = vld [vmem:[%s744] sm:$0xff]
      %v746 = vld [vmem:[%s744 + $0x8] sm:$0xff]
      %v747 = vld [vmem:[%s744 + $0x10] sm:$0x1f]
      %v748 = vld [vmem:[%s744 + $0x1] sm:$0xff]
      %v749 = vld [vmem:[%s744 + $0x9] sm:$0xff]
      %v750 = vld [vmem:[%s744 + $0x11] sm:$0x1f]
      %v751 = vmax.f32 %v745, %v748
      %v752 = vmax.f32 %v746, %v749
      %v753 = vmax.f32 %v747, %v750
      %s754 = sadd.s32 %s709, 5
      %s755 = smul.u32 %s754, 24
      %s756 = scalar_lea.vmem [#allocation2], %s755
      %v757 = vld [vmem:[%s756] sm:$0xff]
      %v758 = vld [vmem:[%s756 + $0x8] sm:$0xff]
      %v759 = vld [vmem:[%s756 + $0x10] sm:$0x1f]
      %v760 = vld [vmem:[%s756 + $0x1] sm:$0xff]
      %v761 = vld [vmem:[%s756 + $0x9] sm:$0xff]
      %v762 = vld [vmem:[%s756 + $0x11] sm:$0x1f]
      %v763 = vmax.f32 %v757, %v760
      %v764 = vmax.f32 %v758, %v761
      %v765 = vmax.f32 %v759, %v762
      %v766 = vmax.f32 %v751, %v763
      %v767 = vmax.f32 %v752, %v764
      %v768 = vmax.f32 %v753, %v765
      %s769 = sadd.s32 %s736, 1
      %s770 = smul.u32 %s769, 24
      %s771 = scalar_lea.vmem [#allocation3], %s770
      %772 = vst [vmem:[%s771] sm:$0xff] %v766
      %773 = vst [vmem:[%s771 + $0x8] sm:$0xff] %v767
      %774 = vst [vmem:[%s771 + $0x10] sm:$0x1f] %v768
      %s775 = sadd.s32 %s709, 2
      %s776 = smul.u32 %s775, 24
      %s777 = scalar_lea.vmem [#allocation2], %s776
      %v778 = vld [vmem:[%s777] sm:$0xff]
      %v779 = vld [vmem:[%s777 + $0x8] sm:$0xff]
      %v780 = vld [vmem:[%s777 + $0x10] sm:$0x1f]
      %v781 = vld [vmem:[%s777 + $0x1] sm:$0xff]
      %v782 = vld [vmem:[%s777 + $0x9] sm:$0xff]
      %v783 = vld [vmem:[%s777 + $0x11] sm:$0x1f]
      %v784 = vmax.f32 %v778, %v781
      %v785 = vmax.f32 %v779, %v782
      %v786 = vmax.f32 %v780, %v783
      %s787 = sadd.s32 %s709, 6
      %s788 = smul.u32 %s787, 24
      %s789 = scalar_lea.vmem [#allocation2], %s788
      %v790 = vld [vmem:[%s789] sm:$0xff]
      %v791 = vld [vmem:[%s789 + $0x8] sm:$0xff]
      %v792 = vld [vmem:[%s789 + $0x10] sm:$0x1f]
      %v793 = vld [vmem:[%s789 + $0x1] sm:$0xff]
      %v794 = vld [vmem:[%s789 + $0x9] sm:$0xff]
      %v795 = vld [vmem:[%s789 + $0x11] sm:$0x1f]
      %v796 = vmax.f32 %v790, %v793
      %v797 = vmax.f32 %v791, %v794
      %v798 = vmax.f32 %v792, %v795
      %v799 = vmax.f32 %v784, %v796
      %v800 = vmax.f32 %v785, %v797
      %v801 = vmax.f32 %v786, %v798
      %s802 = sadd.s32 %s736, 2
      %s803 = smul.u32 %s802, 24
      %s804 = scalar_lea.vmem [#allocation3], %s803
      %805 = vst [vmem:[%s804] sm:$0xff] %v799
      %806 = vst [vmem:[%s804 + $0x8] sm:$0xff] %v800
      %807 = vst [vmem:[%s804 + $0x10] sm:$0x1f] %v801
      %s808 = sadd.s32 %s709, 3
      %s809 = smul.u32 %s808, 24
      %s810 = scalar_lea.vmem [#allocation2], %s809
      %v811 = vld [vmem:[%s810] sm:$0xff]
      %v812 = vld [vmem:[%s810 + $0x8] sm:$0xff]
      %v813 = vld [vmem:[%s810 + $0x10] sm:$0x1f]
      %v814 = vld [vmem:[%s810 + $0x1] sm:$0xff]
      %v815 = vld [vmem:[%s810 + $0x9] sm:$0xff]
      %v816 = vld [vmem:[%s810 + $0x11] sm:$0x1f]
      %v817 = vmax.f32 %v811, %v814
      %v818 = vmax.f32 %v812, %v815
      %v819 = vmax.f32 %v813, %v816
      %s820 = sadd.s32 %s709, 7
      %s821 = smul.u32 %s820, 24
      %s822 = scalar_lea.vmem [#allocation2], %s821
      %v823 = vld [vmem:[%s822] sm:$0xff]
      %v824 = vld [vmem:[%s822 + $0x8] sm:$0xff]
      %v825 = vld [vmem:[%s822 + $0x10] sm:$0x1f]
      %v826 = vld [vmem:[%s822 + $0x1] sm:$0xff]
      %v827 = vld [vmem:[%s822 + $0x9] sm:$0xff]
      %v828 = vld [vmem:[%s822 + $0x11] sm:$0x1f]
      %v829 = vmax.f32 %v823, %v826
      %v830 = vmax.f32 %v824, %v827
      %v831 = vmax.f32 %v825, %v828
      %v832 = vmax.f32 %v817, %v829
      %v833 = vmax.f32 %v818, %v830
      %v834 = vmax.f32 %v819, %v831
      %s835 = sadd.s32 %s736, 3
      %s836 = smul.u32 %s835, 24
      %s837 = scalar_lea.vmem [#allocation3], %s836
      %838 = vst [vmem:[%s837] sm:$0xff] %v832
      %839 = vst [vmem:[%s837 + $0x8] sm:$0xff] %v833
      %840 = vst [vmem:[%s837 + $0x10] sm:$0x1f] %v834
    $region65: #{tpu_custom_call.1} parent=1 // loop_footer
      %s708 = sadd.s32 1, %s704
    $region66: #{tpu_custom_call.1} parent=1 // loop_footer_branch
      %703 = sbr.rel target = $region62
    $region67: #{tpu_custom_call.1} parent=1 // loop_exit
      _
    loop: start=0, step=1, limit=4
    $region68: #{tpu_custom_call.1} parent=1 // loop_pre_header
      _
    $region69: #{tpu_custom_call.1} parent=1 // loop_header
      %s842 = sphi 0, %s846
      %p843 = scmp.ge.s32.totalorder %s842, 4
    $region70: #{tpu_custom_call.1} parent=1 // loop_header_branch
      %845 = sbr.rel (%p843) target = $region74
    $region71: #{tpu_custom_call.1} parent=1 // loop_body
      %s847 = smul.u32 %s842, 4
      %s848 = smul.u32 %s847, 24
      %s849 = scalar_lea.vmem [#allocation3], %s848
      %v850 = vld [vmem:[%s849] sm:$0xff]
      %v851 = vld [vmem:[%s849 + $0x8] sm:$0xff]
      %v852 = vld [vmem:[%s849 + $0x10] sm:$0x7]
      %s853 = sld [smem:[#allocation11]]
      %v854 = vstv %s853
      %v855 = vmul.f32 %v854, %v850
      %v856 = vmul.f32 %v854, %v851
      %v857 = vmul.f32 %v854, %v852
      %s858 = sld [smem:[#allocation11 + $0x10]]
      %v859 = vstv %s858
      %v860 = vmul.f32 %v859, %v850
      %v861 = vmul.f32 %v859, %v851
      %v862 = vmul.f32 %v859, %v852
      %s863 = sadd.s32 %s847, 1
      %s864 = smul.u32 %s863, 24
      %s865 = scalar_lea.vmem [#allocation3], %s864
      %v866 = vld [vmem:[%s865] sm:$0xff]
      %v867 = vld [vmem:[%s865 + $0x8] sm:$0xff]
      %v868 = vld [vmem:[%s865 + $0x10] sm:$0x7]
      %s869 = sld [smem:[#allocation11 + $0x4]]
      %v870 = vstv %s869
      %v871 = vmul.f32 %v870, %v866
      %v872 = vmul.f32 %v870, %v867
      %v873 = vmul.f32 %v870, %v868
      %v874 = vadd.f32 %v855, %v871
      %v875 = vadd.f32 %v856, %v872
      %v876 = vadd.f32 %v857, %v873
      %s877 = sld [smem:[#allocation11 + $0x14]]
      %v878 = vstv %s877
      %v879 = vmul.f32 %v878, %v866
      %v880 = vmul.f32 %v878, %v867
      %v881 = vmul.f32 %v878, %v868
      %v882 = vadd.f32 %v860, %v879
      %v883 = vadd.f32 %v861, %v880
      %v884 = vadd.f32 %v862, %v881
      %s885 = sadd.s32 %s847, 2
      %s886 = smul.u32 %s885, 24
      %s887 = scalar_lea.vmem [#allocation3], %s886
      %v888 = vld [vmem:[%s887] sm:$0xff]
      %v889 = vld [vmem:[%s887 + $0x8] sm:$0xff]
      %v890 = vld [vmem:[%s887 + $0x10] sm:$0x7]
      %s891 = sld [smem:[#allocation11 + $0x8]]
      %v892 = vstv %s891
      %v893 = vmul.f32 %v892, %v888
      %v894 = vmul.f32 %v892, %v889
      %v895 = vmul.f32 %v892, %v890
      %v896 = vadd.f32 %v874, %v893
      %v897 = vadd.f32 %v875, %v894
      %v898 = vadd.f32 %v876, %v895
      %s899 = sld [smem:[#allocation11 + $0x18]]
      %v900 = vstv %s899
      %v901 = vmul.f32 %v900, %v888
      %v902 = vmul.f32 %v900, %v889
      %v903 = vmul.f32 %v900, %v890
      %v904 = vadd.f32 %v882, %v901
      %v905 = vadd.f32 %v883, %v902
      %v906 = vadd.f32 %v884, %v903
      %s907 = sadd.s32 %s847, 3
      %s908 = smul.u32 %s907, 24
      %s909 = scalar_lea.vmem [#allocation3], %s908
      %v910 = vld [vmem:[%s909] sm:$0xff]
      %v911 = vld [vmem:[%s909 + $0x8] sm:$0xff]
      %v912 = vld [vmem:[%s909 + $0x10] sm:$0x7]
      %s913 = sld [smem:[#allocation11 + $0xc]]
      %v914 = vstv %s913
      %v915 = vmul.f32 %v914, %v910
      %v916 = vmul.f32 %v914, %v911
      %v917 = vmul.f32 %v914, %v912
      %v918 = vadd.f32 %v896, %v915
      %v919 = vadd.f32 %v897, %v916
      %v920 = vadd.f32 %v898, %v917
      %s921 = sld [smem:[#allocation11 + $0x1c]]
      %v922 = vstv %s921
      %v923 = vmul.f32 %v922, %v910
      %v924 = vmul.f32 %v922, %v911
      %v925 = vmul.f32 %v922, %v912
      %v926 = vadd.f32 %v904, %v923
      %v927 = vadd.f32 %v905, %v924
      %v928 = vadd.f32 %v906, %v925
      %v929 = vld [vmem:[%s849 + $0x2] sm:$0xff]
      %v930 = vld [vmem:[%s849 + $0xa] sm:$0xff]
      %v931 = vld [vmem:[%s849 + $0x12] sm:$0x7]
      %s932 = sld [smem:[#allocation11 + $0x1]]
      %v933 = vstv %s932
      %v934 = vmul.f32 %v933, %v929
      %v935 = vmul.f32 %v933, %v930
      %v936 = vmul.f32 %v933, %v931
      %v937 = vadd.f32 %v918, %v934
      %v938 = vadd.f32 %v919, %v935
      %v939 = vadd.f32 %v920, %v936
      %s940 = sld [smem:[#allocation11 + $0x11]]
      %v941 = vstv %s940
      %v942 = vmul.f32 %v941, %v929
      %v943 = vmul.f32 %v941, %v930
      %v944 = vmul.f32 %v941, %v931
      %v945 = vadd.f32 %v926, %v942
      %v946 = vadd.f32 %v927, %v943
      %v947 = vadd.f32 %v928, %v944
      %v948 = vld [vmem:[%s865 + $0x2] sm:$0xff]
      %v949 = vld [vmem:[%s865 + $0xa] sm:$0xff]
      %v950 = vld [vmem:[%s865 + $0x12] sm:$0x7]
      %s951 = sld [smem:[#allocation11 + $0x5]]
      %v952 = vstv %s951
      %v953 = vmul.f32 %v952, %v948
      %v954 = vmul.f32 %v952, %v949
      %v955 = vmul.f32 %v952, %v950
      %v956 = vadd.f32 %v937, %v953
      %v957 = vadd.f32 %v938, %v954
      %v958 = vadd.f32 %v939, %v955
      %s959 = sld [smem:[#allocation11 + $0x15]]
      %v960 = vstv %s959
      %v961 = vmul.f32 %v960, %v948
      %v962 = vmul.f32 %v960, %v949
      %v963 = vmul.f32 %v960, %v950
      %v964 = vadd.f32 %v945, %v961
      %v965 = vadd.f32 %v946, %v962
      %v966 = vadd.f32 %v947, %v963
      %v967 = vld [vmem:[%s887 + $0x2] sm:$0xff]
      %v968 = vld [vmem:[%s887 + $0xa] sm:$0xff]
      %v969 = vld [vmem:[%s887 + $0x12] sm:$0x7]
      %s970 = sld [smem:[#allocation11 + $0x9]]
      %v971 = vstv %s970
      %v972 = vmul.f32 %v971, %v967
      %v973 = vmul.f32 %v971, %v968
      %v974 = vmul.f32 %v971, %v969
      %v975 = vadd.f32 %v956, %v972
      %v976 = vadd.f32 %v957, %v973
      %v977 = vadd.f32 %v958, %v974
      %s978 = sld [smem:[#allocation11 + $0x19]]
      %v979 = vstv %s978
      %v980 = vmul.f32 %v979, %v967
      %v981 = vmul.f32 %v979, %v968
      %v982 = vmul.f32 %v979, %v969
      %v983 = vadd.f32 %v964, %v980
      %v984 = vadd.f32 %v965, %v981
      %v985 = vadd.f32 %v966, %v982
      %v986 = vld [vmem:[%s909 + $0x2] sm:$0xff]
      %v987 = vld [vmem:[%s909 + $0xa] sm:$0xff]
      %v988 = vld [vmem:[%s909 + $0x12] sm:$0x7]
      %s989 = sld [smem:[#allocation11 + $0xd]]
      %v990 = vstv %s989
      %v991 = vmul.f32 %v990, %v986
      %v992 = vmul.f32 %v990, %v987
      %v993 = vmul.f32 %v990, %v988
      %v994 = vadd.f32 %v975, %v991
      %v995 = vadd.f32 %v976, %v992
      %v996 = vadd.f32 %v977, %v993
      %s997 = sld [smem:[#allocation11 + $0x1d]]
      %v998 = vstv %s997
      %v999 = vmul.f32 %v998, %v986
      %v1000 = vmul.f32 %v998, %v987
      %v1001 = vmul.f32 %v998, %v988
      %v1002 = vadd.f32 %v983, %v999
      %v1003 = vadd.f32 %v984, %v1000
      %v1004 = vadd.f32 %v985, %v1001
      %s1005 = sadd.s32 %s847, 4
      %s1006 = smul.u32 %s1005, 24
      %s1007 = scalar_lea.vmem [#allocation3], %s1006
      %v1008 = vld [vmem:[%s1007] sm:$0xff]
      %v1009 = vld [vmem:[%s1007 + $0x8] sm:$0xff]
      %v1010 = vld [vmem:[%s1007 + $0x10] sm:$0x7]
      %s1011 = sld [smem:[#allocation11 + $0x2]]
      %v1012 = vstv %s1011
      %v1013 = vmul.f32 %v1012, %v1008
      %v1014 = vmul.f32 %v1012, %v1009
      %v1015 = vmul.f32 %v1012, %v1010
      %v1016 = vadd.f32 %v994, %v1013
      %v1017 = vadd.f32 %v995, %v1014
      %v1018 = vadd.f32 %v996, %v1015
      %s1019 = sld [smem:[#allocation11 + $0x12]]
      %v1020 = vstv %s1019
      %v1021 = vmul.f32 %v1020, %v1008
      %v1022 = vmul.f32 %v1020, %v1009
      %v1023 = vmul.f32 %v1020, %v1010
      %v1024 = vadd.f32 %v1002, %v1021
      %v1025 = vadd.f32 %v1003, %v1022
      %v1026 = vadd.f32 %v1004, %v1023
      %s1027 = sadd.s32 %s847, 5
      %s1028 = smul.u32 %s1027, 24
      %s1029 = scalar_lea.vmem [#allocation3], %s1028
      %v1030 = vld [vmem:[%s1029] sm:$0xff]
      %v1031 = vld [vmem:[%s1029 + $0x8] sm:$0xff]
      %v1032 = vld [vmem:[%s1029 + $0x10] sm:$0x7]
      %s1033 = sld [smem:[#allocation11 + $0x6]]
      %v1034 = vstv %s1033
      %v1035 = vmul.f32 %v1034, %v1030
      %v1036 = vmul.f32 %v1034, %v1031
      %v1037 = vmul.f32 %v1034, %v1032
      %v1038 = vadd.f32 %v1016, %v1035
      %v1039 = vadd.f32 %v1017, %v1036
      %v1040 = vadd.f32 %v1018, %v1037
      %s1041 = sld [smem:[#allocation11 + $0x16]]
      %v1042 = vstv %s1041
      %v1043 = vmul.f32 %v1042, %v1030
      %v1044 = vmul.f32 %v1042, %v1031
      %v1045 = vmul.f32 %v1042, %v1032
      %v1046 = vadd.f32 %v1024, %v1043
      %v1047 = vadd.f32 %v1025, %v1044
      %v1048 = vadd.f32 %v1026, %v1045
      %s1049 = sadd.s32 %s847, 6
      %s1050 = smul.u32 %s1049, 24
      %s1051 = scalar_lea.vmem [#allocation3], %s1050
      %v1052 = vld [vmem:[%s1051] sm:$0xff]
      %v1053 = vld [vmem:[%s1051 + $0x8] sm:$0xff]
      %v1054 = vld [vmem:[%s1051 + $0x10] sm:$0x7]
      %s1055 = sld [smem:[#allocation11 + $0xa]]
      %v1056 = vstv %s1055
      %v1057 = vmul.f32 %v1056, %v1052
      %v1058 = vmul.f32 %v1056, %v1053
      %v1059 = vmul.f32 %v1056, %v1054
      %v1060 = vadd.f32 %v1038, %v1057
      %v1061 = vadd.f32 %v1039, %v1058
      %v1062 = vadd.f32 %v1040, %v1059
      %s1063 = sld [smem:[#allocation11 + $0x1a]]
      %v1064 = vstv %s1063
      %v1065 = vmul.f32 %v1064, %v1052
      %v1066 = vmul.f32 %v1064, %v1053
      %v1067 = vmul.f32 %v1064, %v1054
      %v1068 = vadd.f32 %v1046, %v1065
      %v1069 = vadd.f32 %v1047, %v1066
      %v1070 = vadd.f32 %v1048, %v1067
      %s1071 = sadd.s32 %s847, 7
      %s1072 = smul.u32 %s1071, 24
      %s1073 = scalar_lea.vmem [#allocation3], %s1072
      %v1074 = vld [vmem:[%s1073] sm:$0xff]
      %v1075 = vld [vmem:[%s1073 + $0x8] sm:$0xff]
      %v1076 = vld [vmem:[%s1073 + $0x10] sm:$0x7]
      %s1077 = sld [smem:[#allocation11 + $0xe]]
      %v1078 = vstv %s1077
      %v1079 = vmul.f32 %v1078, %v1074
      %v1080 = vmul.f32 %v1078, %v1075
      %v1081 = vmul.f32 %v1078, %v1076
      %v1082 = vadd.f32 %v1060, %v1079
      %v1083 = vadd.f32 %v1061, %v1080
      %v1084 = vadd.f32 %v1062, %v1081
      %s1085 = sld [smem:[#allocation11 + $0x1e]]
      %v1086 = vstv %s1085
      %v1087 = vmul.f32 %v1086, %v1074
      %v1088 = vmul.f32 %v1086, %v1075
      %v1089 = vmul.f32 %v1086, %v1076
      %v1090 = vadd.f32 %v1068, %v1087
      %v1091 = vadd.f32 %v1069, %v1088
      %v1092 = vadd.f32 %v1070, %v1089
      %v1093 = vld [vmem:[%s1007 + $0x2] sm:$0xff]
      %v1094 = vld [vmem:[%s1007 + $0xa] sm:$0xff]
      %v1095 = vld [vmem:[%s1007 + $0x12] sm:$0x7]
      %s1096 = sld [smem:[#allocation11 + $0x3]]
      %v1097 = vstv %s1096
      %v1098 = vmul.f32 %v1097, %v1093
      %v1099 = vmul.f32 %v1097, %v1094
      %v1100 = vmul.f32 %v1097, %v1095
      %v1101 = vadd.f32 %v1082, %v1098
      %v1102 = vadd.f32 %v1083, %v1099
      %v1103 = vadd.f32 %v1084, %v1100
      %s1104 = sld [smem:[#allocation11 + $0x13]]
      %v1105 = vstv %s1104
      %v1106 = vmul.f32 %v1105, %v1093
      %v1107 = vmul.f32 %v1105, %v1094
      %v1108 = vmul.f32 %v1105, %v1095
      %v1109 = vadd.f32 %v1090, %v1106
      %v1110 = vadd.f32 %v1091, %v1107
      %v1111 = vadd.f32 %v1092, %v1108
      %v1112 = vld [vmem:[%s1029 + $0x2] sm:$0xff]
      %v1113 = vld [vmem:[%s1029 + $0xa] sm:$0xff]
      %v1114 = vld [vmem:[%s1029 + $0x12] sm:$0x7]
      %s1115 = sld [smem:[#allocation11 + $0x7]]
      %v1116 = vstv %s1115
      %v1117 = vmul.f32 %v1116, %v1112
      %v1118 = vmul.f32 %v1116, %v1113
      %v1119 = vmul.f32 %v1116, %v1114
      %v1120 = vadd.f32 %v1101, %v1117
      %v1121 = vadd.f32 %v1102, %v1118
      %v1122 = vadd.f32 %v1103, %v1119
      %s1123 = sld [smem:[#allocation11 + $0x17]]
      %v1124 = vstv %s1123
      %v1125 = vmul.f32 %v1124, %v1112
      %v1126 = vmul.f32 %v1124, %v1113
      %v1127 = vmul.f32 %v1124, %v1114
      %v1128 = vadd.f32 %v1109, %v1125
      %v1129 = vadd.f32 %v1110, %v1126
      %v1130 = vadd.f32 %v1111, %v1127
      %v1131 = vld [vmem:[%s1051 + $0x2] sm:$0xff]
      %v1132 = vld [vmem:[%s1051 + $0xa] sm:$0xff]
      %v1133 = vld [vmem:[%s1051 + $0x12] sm:$0x7]
      %s1134 = sld [smem:[#allocation11 + $0xb]]
      %v1135 = vstv %s1134
      %v1136 = vmul.f32 %v1135, %v1131
      %v1137 = vmul.f32 %v1135, %v1132
      %v1138 = vmul.f32 %v1135, %v1133
      %v1139 = vadd.f32 %v1120, %v1136
      %v1140 = vadd.f32 %v1121, %v1137
      %v1141 = vadd.f32 %v1122, %v1138
      %s1142 = sld [smem:[#allocation11 + $0x1b]]
      %v1143 = vstv %s1142
      %v1144 = vmul.f32 %v1143, %v1131
      %v1145 = vmul.f32 %v1143, %v1132
      %v1146 = vmul.f32 %v1143, %v1133
      %v1147 = vadd.f32 %v1128, %v1144
      %v1148 = vadd.f32 %v1129, %v1145
      %v1149 = vadd.f32 %v1130, %v1146
      %v1150 = vld [vmem:[%s1073 + $0x2] sm:$0xff]
      %v1151 = vld [vmem:[%s1073 + $0xa] sm:$0xff]
      %v1152 = vld [vmem:[%s1073 + $0x12] sm:$0x7]
      %s1153 = sld [smem:[#allocation11 + $0xf]]
      %v1154 = vstv %s1153
      %v1155 = vmul.f32 %v1154, %v1150
      %v1156 = vmul.f32 %v1154, %v1151
      %v1157 = vmul.f32 %v1154, %v1152
      %v1158 = vadd.f32 %v1139, %v1155
      %v1159 = vadd.f32 %v1140, %v1156
      %v1160 = vadd.f32 %v1141, %v1157
      %s1161 = sld [smem:[#allocation11 + $0x1f]]
      %v1162 = vstv %s1161
      %v1163 = vmul.f32 %v1162, %v1150
      %v1164 = vmul.f32 %v1162, %v1151
      %v1165 = vmul.f32 %v1162, %v1152
      %v1166 = vadd.f32 %v1147, %v1163
      %v1167 = vadd.f32 %v1148, %v1164
      %v1168 = vadd.f32 %v1149, %v1165
      %s1169 = sld [smem:[#allocation12]]
      %v1170 = vstv %s1169
      %v1171 = vadd.f32 %v1158, %v1170
      %v1172 = vadd.f32 %v1159, %v1170
      %v1173 = vadd.f32 %v1160, %v1170
      %v1174 = vmax.f32 %v1171, 0.0
      %v1175 = vmax.f32 %v1172, 0.0
      %v1176 = vmax.f32 %v1173, 0.0
      %s1177 = smul.u32 %s842, 2
      %s1178 = smul.u32 %s1177, 24
      %s1179 = scalar_lea.vmem [#allocation4], %s1178
      %1180 = vst [vmem:[%s1179] sm:$0xff] %v1174
      %1181 = vst [vmem:[%s1179 + $0x8] sm:$0xff] %v1175
      %1182 = vst [vmem:[%s1179 + $0x10] sm:$0x7] %v1176
      %s1183 = sld [smem:[#allocation12 + $0x1]]
      %v1184 = vstv %s1183
      %v1185 = vadd.f32 %v1166, %v1184
      %v1186 = vadd.f32 %v1167, %v1184
      %v1187 = vadd.f32 %v1168, %v1184
      %v1188 = vmax.f32 %v1185, 0.0
      %v1189 = vmax.f32 %v1186, 0.0
      %v1190 = vmax.f32 %v1187, 0.0
      %s1191 = sadd.s32 %s1177, 1
      %s1192 = smul.u32 %s1191, 24
      %s1193 = scalar_lea.vmem [#allocation4], %s1192
      %1194 = vst [vmem:[%s1193] sm:$0xff] %v1188
      %1195 = vst [vmem:[%s1193 + $0x8] sm:$0xff] %v1189
      %1196 = vst [vmem:[%s1193 + $0x10] sm:$0x7] %v1190
    $region72: #{tpu_custom_call.1} parent=1 // loop_footer
      %s846 = sadd.s32 1, %s842
    $region73: #{tpu_custom_call.1} parent=1 // loop_footer_branch
      %841 = sbr.rel target = $region69
    $region74: #{tpu_custom_call.1} parent=1 // loop_exit
      _
    %v1197 = vld [vmem:[#allocation4] sm:$0xff]
    %v1198 = vld [vmem:[#allocation4 + $0x8] sm:$0xff]
    %v1199 = vld [vmem:[#allocation4 + $0x10] sm:$0x1]
    %v1200 = vld [vmem:[#allocation4 + $0x2] sm:$0xff]
    %v1201 = vld [vmem:[#allocation4 + $0xa] sm:$0xff]
    %v1202 = vld [vmem:[#allocation4 + $0x12] sm:$0x1]
    %v1203 = vmax.f32 %v1197, %v1200
    %v1204 = vmax.f32 %v1198, %v1201
    %v1205 = vmax.f32 %v1199, %v1202
    %s1206 = scalar_lea.vmem [#allocation4], 48
    %v1207 = vld [vmem:[%s1206] sm:$0xff]
    %v1208 = vld [vmem:[%s1206 + $0x8] sm:$0xff]
    %v1209 = vld [vmem:[%s1206 + $0x10] sm:$0x1]
    %v1210 = vld [vmem:[%s1206 + $0x2] sm:$0xff]
    %v1211 = vld [vmem:[%s1206 + $0xa] sm:$0xff]
    %v1212 = vld [vmem:[%s1206 + $0x12] sm:$0x1]
    %v1213 = vmax.f32 %v1207, %v1210
    %v1214 = vmax.f32 %v1208, %v1211
    %v1215 = vmax.f32 %v1209, %v1212
    %v1216 = vmax.f32 %v1203, %v1213
    %v1217 = vmax.f32 %v1204, %v1214
    %v1218 = vmax.f32 %v1205, %v1215
    %v1219 = vld [vmem:[%s5] sm:$0xff]
    %v1220 = vld [vmem:[%s5 + $0x8] sm:$0xff]
    %v1221 = vld [vmem:[%s5 + $0x10] sm:$0xf]
    %s1222 = scalar_lea.vmem [#allocation4], 96
    %v1223 = vld [vmem:[%s1222] sm:$0xff]
    %v1224 = vld [vmem:[%s1222 + $0x8] sm:$0xff]
    %v1225 = vld [vmem:[%s1222 + $0x10] sm:$0x1]
    %v1226 = vld [vmem:[%s1222 + $0x2] sm:$0xff]
    %v1227 = vld [vmem:[%s1222 + $0xa] sm:$0xff]
    %v1228 = vld [vmem:[%s1222 + $0x12] sm:$0x1]
    %v1229 = vmax.f32 %v1223, %v1226
    %v1230 = vmax.f32 %v1224, %v1227
    %v1231 = vmax.f32 %v1225, %v1228
    %s1232 = scalar_lea.vmem [#allocation4], 144
    %v1233 = vld [vmem:[%s1232] sm:$0xff]
    %v1234 = vld [vmem:[%s1232 + $0x8] sm:$0xff]
    %v1235 = vld [vmem:[%s1232 + $0x10] sm:$0x1]
    %v1236 = vld [vmem:[%s1232 + $0x2] sm:$0xff]
    %v1237 = vld [vmem:[%s1232 + $0xa] sm:$0xff]
    %v1238 = vld [vmem:[%s1232 + $0x12] sm:$0x1]
    %v1239 = vmax.f32 %v1233, %v1236
    %v1240 = vmax.f32 %v1234, %v1237
    %v1241 = vmax.f32 %v1235, %v1238
    %v1242 = vmax.f32 %v1229, %v1239
    %v1243 = vmax.f32 %v1230, %v1240
    %v1244 = vmax.f32 %v1231, %v1241
    %s1245 = scalar_lea.vmem %s5, 24
    %v1246 = vld [vmem:[%s1245] sm:$0xff]
    %v1247 = vld [vmem:[%s1245 + $0x8] sm:$0xff]
    %v1248 = vld [vmem:[%s1245 + $0x10] sm:$0xf]
    %vm1249 = vcmask 138240
    %v1251 = vsel %vm1249, %v1246, 0
    %v1254 = vsel %vm1249, %v1247, 0
    %v1257 = vsel %vm1249, %v1248, 0
    %vm1259 = vcmask 1040384
    %v1261 = vsel %vm1259, %v1244, 0
    %1263 = vmatprep.subr.mxu0 0.0
    %1264 = vmatpush1.msra.mxu0 %v1242
    %1265 = vmatprep.subr.mxu0 0.0
    %1266 = vmatpush1.msra.mxu0 %v1243
    %1267 = vmatprep.subr.mxu0 0.0
    %1268 = vmatpush1.msra.mxu0 %v1261
    %1269 = vmatprep.subr.mxu0 0.0
    %1270 = vmatpush1.msra.mxu0 0.0
    %1271 = vmatprep.subr.mxu0 0.0
    %1272 = vmatpush1.msra.mxu0 0.0
    %1273 = vmatprep.subr.mxu0 0.0
    %1274 = vmatpush1.msra.mxu0 0.0
    %1275 = vmatprep.subr.mxu0 0.0
    %1276 = vmatpush1.msra.mxu0 0.0
    %1277 = vmatprep.subr.mxu0 0.0
    %1278 = vmatpush1.msra.mxu0 0.0
    %1279 = vmatprep.subr.mxu0 0.0
    %1280 = vmatpush1.msra.mxu0 0.0
    %1281 = vmatprep.subr.mxu0 0.0
    %1282 = vmatpush1.msra.mxu0 0.0
    %1283 = vmatprep.subr.mxu0 0.0
    %1284 = vmatpush1.msra.mxu0 0.0
    %1285 = vmatprep.subr.mxu0 0.0
    %1286 = vmatpush1.msra.mxu0 0.0
    %1287 = vmatprep.subr.mxu0 0.0
    %1288 = vmatpush1.msra.mxu0 0.0
    %1289 = vmatprep.subr.mxu0 0.0
    %1290 = vmatpush1.msra.mxu0 0.0
    %1291 = vmatprep.subr.mxu0 0.0
    %1292 = vmatpush1.msra.mxu0 0.0
    %1293 = vmatprep.subr.mxu0 0.0
    %1294 = vmatpush1.msra.mxu0 0.0
    %1295 = vmatprep.subr.mxu0 0.0
    %1296 = vmatpush1.msra.mxu0 0.0
    %1297 = vmatprep.subr.mxu0 0.0
    %1298 = vmatpush1.msra.mxu0 0.0
    %1299 = vmatprep.subr.mxu0 0.0
    %1300 = vmatpush1.msra.mxu0 0.0
    %1301 = vmatprep.subr.mxu0 0.0
    %1302 = vmatpush1.msra.mxu0 0.0
    %1303 = vmatprep.subr.mxu0 0.0
    %1304 = vmatpush1.msra.mxu0 0.0
    %1305 = vmatprep.subr.mxu0 0.0
    %1306 = vmatpush1.msra.mxu0 0.0
    %1307 = vmatprep.subr.mxu0 0.0
    %1308 = vmatpush1.msra.mxu0 0.0
    %1309 = vmatprep.subr.mxu0 0.0
    %1310 = vmatpush1.msra.mxu0 0.0
    %1311 = vmatprep.subr.mxu0 0.0
    %1312 = vmatpush1.msra.mxu0 0.0
    %1313 = vmatprep.subr.mxu0 0.0
    %1314 = vmatpush1.msra.mxu0 0.0
    %1315 = vmatprep.subr.mxu0 0.0
    %1316 = vmatpush1.msra.mxu0 0.0
    %1317 = vmatprep.subr.mxu0 0.0
    %1318 = vmatpush1.msra.mxu0 0.0
    %1319 = vmatprep.subr.mxu0 0.0
    %1320 = vmatpush1.msra.mxu0 0.0
    %1321 = vmatprep.subr.mxu0 0.0
    %1322 = vmatpush1.msra.mxu0 0.0
    %1323 = vmatprep.subr.mxu0 0.0
    %1324 = vmatpush1.msra.mxu0 0.0
    %1325 = vmatprep.subr.mxu0 0.0
    %1326 = vmatpush1.msra.mxu0 0.0
    %1327 = vmatprep.mubr.f32.mxu0 0.0
    %1328 = vmatmul.mubr.f32.gmra.mrb[0].mxu0 %v1251
    %v1329 = vpop.f32.mrb[0].mxu0
    %v1330 = vadd.f32 0.0, %v1329
    %v1331 = vpop.f32.mrb[0].mxu0
    %1332 = vmatprep.mubr.f32.mxu0 0.0
    %1333 = vmatmul.mubr.f32.gmra.mrb[0].mxu0 %v1254
    %v1334 = vpop.f32.mrb[0].mxu0
    %v1335 = vadd.f32 0.0, %v1334
    %v1336 = vpop.f32.mrb[0].mxu0
    %1337 = vmatprep.mubr.f32.mxu0 0.0
    %1338 = vmatmul.mubr.f32.gmra.mrb[0].mxu0 %v1257
    %v1339 = vpop.f32.mrb[0].mxu0
    %v1340 = vadd.f32 0.0, %v1339
    %v1341 = vpop.f32.mrb[0].mxu0
    %1342 = vdwg.mxu0
    %v1344 = vsel %vm1249, %v1219, 0
    %v1347 = vsel %vm1249, %v1220, 0
    %v1350 = vsel %vm1249, %v1221, 0
    %v1353 = vsel %vm1259, %v1218, 0
    %1355 = vmatprep.subr.mxu0 0.0
    %1356 = vmatpush1.msra.mxu0 %v1216
    %1357 = vmatprep.subr.mxu0 0.0
    %1358 = vmatpush1.msra.mxu0 %v1217
    %1359 = vmatprep.subr.mxu0 0.0
    %1360 = vmatpush1.msra.mxu0 %v1353
    %1361 = vmatprep.subr.mxu0 0.0
    %1362 = vmatpush1.msra.mxu0 0.0
    %1363 = vmatprep.subr.mxu0 0.0
    %1364 = vmatpush1.msra.mxu0 0.0
    %1365 = vmatprep.subr.mxu0 0.0
    %1366 = vmatpush1.msra.mxu0 0.0
    %1367 = vmatprep.subr.mxu0 0.0
    %1368 = vmatpush1.msra.mxu0 0.0
    %1369 = vmatprep.subr.mxu0 0.0
    %1370 = vmatpush1.msra.mxu0 0.0
    %1371 = vmatprep.subr.mxu0 0.0
    %1372 = vmatpush1.msra.mxu0 0.0
    %1373 = vmatprep.subr.mxu0 0.0
    %1374 = vmatpush1.msra.mxu0 0.0
    %1375 = vmatprep.subr.mxu0 0.0
    %1376 = vmatpush1.msra.mxu0 0.0
    %1377 = vmatprep.subr.mxu0 0.0
    %1378 = vmatpush1.msra.mxu0 0.0
    %1379 = vmatprep.subr.mxu0 0.0
    %1380 = vmatpush1.msra.mxu0 0.0
    %1381 = vmatprep.subr.mxu0 0.0
    %1382 = vmatpush1.msra.mxu0 0.0
    %1383 = vmatprep.subr.mxu0 0.0
    %1384 = vmatpush1.msra.mxu0 0.0
    %1385 = vmatprep.subr.mxu0 0.0
    %1386 = vmatpush1.msra.mxu0 0.0
    %1387 = vmatprep.subr.mxu0 0.0
    %1388 = vmatpush1.msra.mxu0 0.0
    %1389 = vmatprep.subr.mxu0 0.0
    %1390 = vmatpush1.msra.mxu0 0.0
    %1391 = vmatprep.subr.mxu0 0.0
    %1392 = vmatpush1.msra.mxu0 0.0
    %1393 = vmatprep.subr.mxu0 0.0
    %1394 = vmatpush1.msra.mxu0 0.0
    %1395 = vmatprep.subr.mxu0 0.0
    %1396 = vmatpush1.msra.mxu0 0.0
    %1397 = vmatprep.subr.mxu0 0.0
    %1398 = vmatpush1.msra.mxu0 0.0
    %1399 = vmatprep.subr.mxu0 0.0
    %1400 = vmatpush1.msra.mxu0 0.0
    %1401 = vmatprep.subr.mxu0 0.0
    %1402 = vmatpush1.msra.mxu0 0.0
    %1403 = vmatprep.subr.mxu0 0.0
    %1404 = vmatpush1.msra.mxu0 0.0
    %1405 = vmatprep.subr.mxu0 0.0
    %1406 = vmatpush1.msra.mxu0 0.0
    %1407 = vmatprep.subr.mxu0 0.0
    %1408 = vmatpush1.msra.mxu0 0.0
    %1409 = vmatprep.subr.mxu0 0.0
    %1410 = vmatpush1.msra.mxu0 0.0
    %1411 = vmatprep.subr.mxu0 0.0
    %1412 = vmatpush1.msra.mxu0 0.0
    %1413 = vmatprep.subr.mxu0 0.0
    %1414 = vmatpush1.msra.mxu0 0.0
    %1415 = vmatprep.subr.mxu0 0.0
    %1416 = vmatpush1.msra.mxu0 0.0
    %1417 = vmatprep.subr.mxu0 0.0
    %1418 = vmatpush1.msra.mxu0 0.0
    %1419 = vmatprep.mubr.f32.mxu0 0.0
    %1420 = vmatmul.mubr.f32.gmra.mrb[0].mxu0 %v1344
    %v1421 = vpop.f32.mrb[0].mxu0
    %v1422 = vadd.f32 %v1330, %v1421
    %v1423 = vpop.f32.mrb[0].mxu0
    %1424 = vmatprep.mubr.f32.mxu0 0.0
    %1425 = vmatmul.mubr.f32.gmra.mrb[0].mxu0 %v1347
    %v1426 = vpop.f32.mrb[0].mxu0
    %v1427 = vadd.f32 %v1335, %v1426
    %v1428 = vpop.f32.mrb[0].mxu0
    %1429 = vmatprep.mubr.f32.mxu0 0.0
    %1430 = vmatmul.mubr.f32.gmra.mrb[0].mxu0 %v1350
    %v1431 = vpop.f32.mrb[0].mxu0
    %v1432 = vadd.f32 %v1340, %v1431
    %v1433 = vpop.f32.mrb[0].mxu0
    %1434 = vdwg.mxu0
    %s1435 = scalar_lea.vmem [#allocation4], 24
    %v1436 = vld [vmem:[%s1435] sm:$0xff]
    %v1437 = vld [vmem:[%s1435 + $0x8] sm:$0xff]
    %v1438 = vld [vmem:[%s1435 + $0x10] sm:$0x1]
    %v1439 = vld [vmem:[%s1435 + $0x2] sm:$0xff]
    %v1440 = vld [vmem:[%s1435 + $0xa] sm:$0xff]
    %v1441 = vld [vmem:[%s1435 + $0x12] sm:$0x1]
    %v1442 = vmax.f32 %v1436, %v1439
    %v1443 = vmax.f32 %v1437, %v1440
    %v1444 = vmax.f32 %v1438, %v1441
    %s1445 = scalar_lea.vmem [#allocation4], 72
    %v1446 = vld [vmem:[%s1445] sm:$0xff]
    %v1447 = vld [vmem:[%s1445 + $0x8] sm:$0xff]
    %v1448 = vld [vmem:[%s1445 + $0x10] sm:$0x1]
    %v1449 = vld [vmem:[%s1445 + $0x2] sm:$0xff]
    %v1450 = vld [vmem:[%s1445 + $0xa] sm:$0xff]
    %v1451 = vld [vmem:[%s1445 + $0x12] sm:$0x1]
    %v1452 = vmax.f32 %v1446, %v1449
    %v1453 = vmax.f32 %v1447, %v1450
    %v1454 = vmax.f32 %v1448, %v1451
    %v1455 = vmax.f32 %v1442, %v1452
    %v1456 = vmax.f32 %v1443, %v1453
    %v1457 = vmax.f32 %v1444, %v1454
    %s1458 = scalar_lea.vmem %s5, 48
    %v1459 = vld [vmem:[%s1458] sm:$0xff]
    %v1460 = vld [vmem:[%s1458 + $0x8] sm:$0xff]
    %v1461 = vld [vmem:[%s1458 + $0x10] sm:$0xf]
    %v1463 = vsel %vm1249, %v1459, 0
    %v1466 = vsel %vm1249, %v1460, 0
    %v1469 = vsel %vm1249, %v1461, 0
    %v1472 = vsel %vm1259, %v1457, 0
    %1474 = vmatprep.subr.mxu0 0.0
    %1475 = vmatpush1.msra.mxu0 %v1455
    %1476 = vmatprep.subr.mxu0 0.0
    %1477 = vmatpush1.msra.mxu0 %v1456
    %1478 = vmatprep.subr.mxu0 0.0
    %1479 = vmatpush1.msra.mxu0 %v1472
    %1480 = vmatprep.subr.mxu0 0.0
    %1481 = vmatpush1.msra.mxu0 0.0
    %1482 = vmatprep.subr.mxu0 0.0
    %1483 = vmatpush1.msra.mxu0 0.0
    %1484 = vmatprep.subr.mxu0 0.0
    %1485 = vmatpush1.msra.mxu0 0.0
    %1486 = vmatprep.subr.mxu0 0.0
    %1487 = vmatpush1.msra.mxu0 0.0
    %1488 = vmatprep.subr.mxu0 0.0
    %1489 = vmatpush1.msra.mxu0 0.0
    %1490 = vmatprep.subr.mxu0 0.0
    %1491 = vmatpush1.msra.mxu0 0.0
    %1492 = vmatprep.subr.mxu0 0.0
    %1493 = vmatpush1.msra.mxu0 0.0
    %1494 = vmatprep.subr.mxu0 0.0
    %1495 = vmatpush1.msra.mxu0 0.0
    %1496 = vmatprep.subr.mxu0 0.0
    %1497 = vmatpush1.msra.mxu0 0.0
    %1498 = vmatprep.subr.mxu0 0.0
    %1499 = vmatpush1.msra.mxu0 0.0
    %1500 = vmatprep.subr.mxu0 0.0
    %1501 = vmatpush1.msra.mxu0 0.0
    %1502 = vmatprep.subr.mxu0 0.0
    %1503 = vmatpush1.msra.mxu0 0.0
    %1504 = vmatprep.subr.mxu0 0.0
    %1505 = vmatpush1.msra.mxu0 0.0
    %1506 = vmatprep.subr.mxu0 0.0
    %1507 = vmatpush1.msra.mxu0 0.0
    %1508 = vmatprep.subr.mxu0 0.0
    %1509 = vmatpush1.msra.mxu0 0.0
    %1510 = vmatprep.subr.mxu0 0.0
    %1511 = vmatpush1.msra.mxu0 0.0
    %1512 = vmatprep.subr.mxu0 0.0
    %1513 = vmatpush1.msra.mxu0 0.0
    %1514 = vmatprep.subr.mxu0 0.0
    %1515 = vmatpush1.msra.mxu0 0.0
    %1516 = vmatprep.subr.mxu0 0.0
    %1517 = vmatpush1.msra.mxu0 0.0
    %1518 = vmatprep.subr.mxu0 0.0
    %1519 = vmatpush1.msra.mxu0 0.0
    %1520 = vmatprep.subr.mxu0 0.0
    %1521 = vmatpush1.msra.mxu0 0.0
    %1522 = vmatprep.subr.mxu0 0.0
    %1523 = vmatpush1.msra.mxu0 0.0
    %1524 = vmatprep.subr.mxu0 0.0
    %1525 = vmatpush1.msra.mxu0 0.0
    %1526 = vmatprep.subr.mxu0 0.0
    %1527 = vmatpush1.msra.mxu0 0.0
    %1528 = vmatprep.subr.mxu0 0.0
    %1529 = vmatpush1.msra.mxu0 0.0
    %1530 = vmatprep.subr.mxu0 0.0
    %1531 = vmatpush1.msra.mxu0 0.0
    %1532 = vmatprep.subr.mxu0 0.0
    %1533 = vmatpush1.msra.mxu0 0.0
    %1534 = vmatprep.subr.mxu0 0.0
    %1535 = vmatpush1.msra.mxu0 0.0
    %1536 = vmatprep.subr.mxu0 0.0
    %1537 = vmatpush1.msra.mxu0 0.0
    %1538 = vmatprep.mubr.f32.mxu0 0.0
    %1539 = vmatmul.mubr.f32.gmra.mrb[0].mxu0 %v1463
    %v1540 = vpop.f32.mrb[0].mxu0
    %v1541 = vadd.f32 0.0, %v1540
    %v1542 = vpop.f32.mrb[0].mxu0
    %1543 = vmatprep.mubr.f32.mxu0 0.0
    %1544 = vmatmul.mubr.f32.gmra.mrb[0].mxu0 %v1466
    %v1545 = vpop.f32.mrb[0].mxu0
    %v1546 = vadd.f32 0.0, %v1545
    %v1547 = vpop.f32.mrb[0].mxu0
    %1548 = vmatprep.mubr.f32.mxu0 0.0
    %1549 = vmatmul.mubr.f32.gmra.mrb[0].mxu0 %v1469
    %v1550 = vpop.f32.mrb[0].mxu0
    %v1551 = vadd.f32 0.0, %v1550
    %v1552 = vpop.f32.mrb[0].mxu0
    %1553 = vdwg.mxu0
    %v1554 = vadd.f32 %v1422, %v1541
    %v1555 = vadd.f32 %v1427, %v1546
    %v1556 = vadd.f32 %v1432, %v1551
    %s1557 = scalar_lea.vmem [#allocation4], 120
    %v1558 = vld [vmem:[%s1557] sm:$0xff]
    %v1559 = vld [vmem:[%s1557 + $0x8] sm:$0xff]
    %v1560 = vld [vmem:[%s1557 + $0x10] sm:$0x1]
    %v1561 = vld [vmem:[%s1557 + $0x2] sm:$0xff]
    %v1562 = vld [vmem:[%s1557 + $0xa] sm:$0xff]
    %v1563 = vld [vmem:[%s1557 + $0x12] sm:$0x1]
    %v1564 = vmax.f32 %v1558, %v1561
    %v1565 = vmax.f32 %v1559, %v1562
    %v1566 = vmax.f32 %v1560, %v1563
    %s1567 = scalar_lea.vmem [#allocation4], 168
    %v1568 = vld [vmem:[%s1567] sm:$0xff]
    %v1569 = vld [vmem:[%s1567 + $0x8] sm:$0xff]
    %v1570 = vld [vmem:[%s1567 + $0x10] sm:$0x1]
    %v1571 = vld [vmem:[%s1567 + $0x2] sm:$0xff]
    %v1572 = vld [vmem:[%s1567 + $0xa] sm:$0xff]
    %v1573 = vld [vmem:[%s1567 + $0x12] sm:$0x1]
    %v1574 = vmax.f32 %v1568, %v1571
    %v1575 = vmax.f32 %v1569, %v1572
    %v1576 = vmax.f32 %v1570, %v1573
    %v1577 = vmax.f32 %v1564, %v1574
    %v1578 = vmax.f32 %v1565, %v1575
    %v1579 = vmax.f32 %v1566, %v1576
    %s1580 = scalar_lea.vmem %s5, 72
    %v1581 = vld [vmem:[%s1580] sm:$0xff]
    %v1582 = vld [vmem:[%s1580 + $0x8] sm:$0xff]
    %v1583 = vld [vmem:[%s1580 + $0x10] sm:$0xf]
    %v1585 = vsel %vm1249, %v1581, 0
    %v1588 = vsel %vm1249, %v1582, 0
    %v1591 = vsel %vm1249, %v1583, 0
    %v1594 = vsel %vm1259, %v1579, 0
    %1596 = vmatprep.subr.mxu0 0.0
    %1597 = vmatpush1.msra.mxu0 %v1577
    %1598 = vmatprep.subr.mxu0 0.0
    %1599 = vmatpush1.msra.mxu0 %v1578
    %1600 = vmatprep.subr.mxu0 0.0
    %1601 = vmatpush1.msra.mxu0 %v1594
    %1602 = vmatprep.subr.mxu0 0.0
    %1603 = vmatpush1.msra.mxu0 0.0
    %1604 = vmatprep.subr.mxu0 0.0
    %1605 = vmatpush1.msra.mxu0 0.0
    %1606 = vmatprep.subr.mxu0 0.0
    %1607 = vmatpush1.msra.mxu0 0.0
    %1608 = vmatprep.subr.mxu0 0.0
    %1609 = vmatpush1.msra.mxu0 0.0
    %1610 = vmatprep.subr.mxu0 0.0
    %1611 = vmatpush1.msra.mxu0 0.0
    %1612 = vmatprep.subr.mxu0 0.0
    %1613 = vmatpush1.msra.mxu0 0.0
    %1614 = vmatprep.subr.mxu0 0.0
    %1615 = vmatpush1.msra.mxu0 0.0
    %1616 = vmatprep.subr.mxu0 0.0
    %1617 = vmatpush1.msra.mxu0 0.0
    %1618 = vmatprep.subr.mxu0 0.0
    %1619 = vmatpush1.msra.mxu0 0.0
    %1620 = vmatprep.subr.mxu0 0.0
    %1621 = vmatpush1.msra.mxu0 0.0
    %1622 = vmatprep.subr.mxu0 0.0
    %1623 = vmatpush1.msra.mxu0 0.0
    %1624 = vmatprep.subr.mxu0 0.0
    %1625 = vmatpush1.msra.mxu0 0.0
    %1626 = vmatprep.subr.mxu0 0.0
    %1627 = vmatpush1.msra.mxu0 0.0
    %1628 = vmatprep.subr.mxu0 0.0
    %1629 = vmatpush1.msra.mxu0 0.0
    %1630 = vmatprep.subr.mxu0 0.0
    %1631 = vmatpush1.msra.mxu0 0.0
    %1632 = vmatprep.subr.mxu0 0.0
    %1633 = vmatpush1.msra.mxu0 0.0
    %1634 = vmatprep.subr.mxu0 0.0
    %1635 = vmatpush1.msra.mxu0 0.0
    %1636 = vmatprep.subr.mxu0 0.0
    %1637 = vmatpush1.msra.mxu0 0.0
    %1638 = vmatprep.subr.mxu0 0.0
    %1639 = vmatpush1.msra.mxu0 0.0
    %1640 = vmatprep.subr.mxu0 0.0
    %1641 = vmatpush1.msra.mxu0 0.0
    %1642 = vmatprep.subr.mxu0 0.0
    %1643 = vmatpush1.msra.mxu0 0.0
    %1644 = vmatprep.subr.mxu0 0.0
    %1645 = vmatpush1.msra.mxu0 0.0
    %1646 = vmatprep.subr.mxu0 0.0
    %1647 = vmatpush1.msra.mxu0 0.0
    %1648 = vmatprep.subr.mxu0 0.0
    %1649 = vmatpush1.msra.mxu0 0.0
    %1650 = vmatprep.subr.mxu0 0.0
    %1651 = vmatpush1.msra.mxu0 0.0
    %1652 = vmatprep.subr.mxu0 0.0
    %1653 = vmatpush1.msra.mxu0 0.0
    %1654 = vmatprep.subr.mxu0 0.0
    %1655 = vmatpush1.msra.mxu0 0.0
    %1656 = vmatprep.subr.mxu0 0.0
    %1657 = vmatpush1.msra.mxu0 0.0
    %1658 = vmatprep.subr.mxu0 0.0
    %1659 = vmatpush1.msra.mxu0 0.0
    %1660 = vmatprep.mubr.f32.mxu0 0.0
    %1661 = vmatmul.mubr.f32.gmra.mrb[0].mxu0 %v1585
    %v1662 = vpop.f32.mrb[0].mxu0
    %v1663 = vadd.f32 0.0, %v1662
    %v1664 = vpop.f32.mrb[0].mxu0
    %1665 = vmatprep.mubr.f32.mxu0 0.0
    %1666 = vmatmul.mubr.f32.gmra.mrb[0].mxu0 %v1588
    %v1667 = vpop.f32.mrb[0].mxu0
    %v1668 = vadd.f32 0.0, %v1667
    %v1669 = vpop.f32.mrb[0].mxu0
    %1670 = vmatprep.mubr.f32.mxu0 0.0
    %1671 = vmatmul.mubr.f32.gmra.mrb[0].mxu0 %v1591
    %v1672 = vpop.f32.mrb[0].mxu0
    %v1673 = vadd.f32 0.0, %v1672
    %v1674 = vpop.f32.mrb[0].mxu0
    %1675 = vdwg.mxu0
    %v1676 = vadd.f32 %v1554, %v1663
    %v1677 = vadd.f32 %v1555, %v1668
    %v1678 = vadd.f32 %v1556, %v1673
    %v1679 = vld [vmem:[%s6] sm:$0xff]
    %v1680 = vld [vmem:[%s6 + $0x8] sm:$0xff]
    %v1681 = vld [vmem:[%s6 + $0x10] sm:$0xf]
    %1683 = vset.pattern.permute.xlu0 0
    %1684 = vperm.xlu0 %1683, %v1679
    %v1685 = vpop.permute.xlu0 %1684
    %1688 = vset.pattern.permute.xlu0 0
    %1689 = vperm.xlu0 %1688, %v1680
    %v1690 = vpop.permute.xlu0 %1689
    %1693 = vset.pattern.permute.xlu0 0
    %1694 = vperm.xlu0 %1693, %v1681
    %v1695 = vpop.permute.xlu0 %1694
    %v1697 = vadd.f32 %v1676, %v1685
    %v1698 = vadd.f32 %v1677, %v1690
    %v1699 = vadd.f32 %v1678, %v1695
    %v1700 = vmax.f32 %v1697, 0.0
    %v1701 = vmax.f32 %v1698, 0.0
    %v1702 = vmax.f32 %v1699, 0.0
    %v1703 = vld [vmem:[%s7] sm:$0x1]
    %s1704 = sld [smem:[#allocation5]]
    %v1705 = vstv %s1704
    %vm1706 = vcmask 162816
    %v1708 = vsel %vm1706, %v1703, 0
    %vm1710 = vcmask 1043456
    %v1712 = vsel %vm1710, %v1702, 0
    %1714 = vmatprep.subr.mxu0 0.0
    %1715 = vmatpush1.msra.mxu0 %v1700
    %1716 = vmatprep.subr.mxu0 0.0
    %1717 = vmatpush1.msra.mxu0 %v1701
    %1718 = vmatprep.subr.mxu0 0.0
    %1719 = vmatpush1.msra.mxu0 %v1712
    %1720 = vmatprep.subr.mxu0 0.0
    %1721 = vmatpush1.msra.mxu0 0.0
    %1722 = vmatprep.subr.mxu0 0.0
    %1723 = vmatpush1.msra.mxu0 0.0
    %1724 = vmatprep.subr.mxu0 0.0
    %1725 = vmatpush1.msra.mxu0 0.0
    %1726 = vmatprep.subr.mxu0 0.0
    %1727 = vmatpush1.msra.mxu0 0.0
    %1728 = vmatprep.subr.mxu0 0.0
    %1729 = vmatpush1.msra.mxu0 0.0
    %1730 = vmatprep.subr.mxu0 0.0
    %1731 = vmatpush1.msra.mxu0 0.0
    %1732 = vmatprep.subr.mxu0 0.0
    %1733 = vmatpush1.msra.mxu0 0.0
    %1734 = vmatprep.subr.mxu0 0.0
    %1735 = vmatpush1.msra.mxu0 0.0
    %1736 = vmatprep.subr.mxu0 0.0
    %1737 = vmatpush1.msra.mxu0 0.0
    %1738 = vmatprep.subr.mxu0 0.0
    %1739 = vmatpush1.msra.mxu0 0.0
    %1740 = vmatprep.subr.mxu0 0.0
    %1741 = vmatpush1.msra.mxu0 0.0
    %1742 = vmatprep.subr.mxu0 0.0
    %1743 = vmatpush1.msra.mxu0 0.0
    %1744 = vmatprep.subr.mxu0 0.0
    %1745 = vmatpush1.msra.mxu0 0.0
    %1746 = vmatprep.subr.mxu0 0.0
    %1747 = vmatpush1.msra.mxu0 0.0
    %1748 = vmatprep.subr.mxu0 0.0
    %1749 = vmatpush1.msra.mxu0 0.0
    %1750 = vmatprep.subr.mxu0 0.0
    %1751 = vmatpush1.msra.mxu0 0.0
    %1752 = vmatprep.subr.mxu0 0.0
    %1753 = vmatpush1.msra.mxu0 0.0
    %1754 = vmatprep.subr.mxu0 0.0
    %1755 = vmatpush1.msra.mxu0 0.0
    %1756 = vmatprep.subr.mxu0 0.0
    %1757 = vmatpush1.msra.mxu0 0.0
    %1758 = vmatprep.subr.mxu0 0.0
    %1759 = vmatpush1.msra.mxu0 0.0
    %1760 = vmatprep.subr.mxu0 0.0
    %1761 = vmatpush1.msra.mxu0 0.0
    %1762 = vmatprep.subr.mxu0 0.0
    %1763 = vmatpush1.msra.mxu0 0.0
    %1764 = vmatprep.subr.mxu0 0.0
    %1765 = vmatpush1.msra.mxu0 0.0
    %1766 = vmatprep.subr.mxu0 0.0
    %1767 = vmatpush1.msra.mxu0 0.0
    %1768 = vmatprep.subr.mxu0 0.0
    %1769 = vmatpush1.msra.mxu0 0.0
    %1770 = vmatprep.subr.mxu0 0.0
    %1771 = vmatpush1.msra.mxu0 0.0
    %1772 = vmatprep.subr.mxu0 0.0
    %1773 = vmatpush1.msra.mxu0 0.0
    %1774 = vmatprep.subr.mxu0 0.0
    %1775 = vmatpush1.msra.mxu0 0.0
    %1776 = vmatprep.subr.mxu0 0.0
    %1777 = vmatpush1.msra.mxu0 0.0
    %1778 = vmatprep.mubr.f32.mxu0 0.0
    %1779 = vmatmul.mubr.f32.gmra.mrb[0].mxu0 %v1708
    %v1780 = vpop.f32.mrb[0].mxu0
    %v1781 = vadd.f32 %v1705, %v1780
    %v1782 = vpop.f32.mrb[0].mxu0
    %1783 = vdwg.mxu0
    %1784 = vst [vmem:[#allocation14] sm:$0x1] %v1781
    // Predicated region
    $region75: #{tpu_custom_call.1} parent=1 // pred_check
      _
    $region76: #{tpu_custom_call.1} parent=1 // pred_check_branch
      %1786 = sbr.rel (0) target = $region78
    $region77: #{tpu_custom_call.1} parent=1 // pred_region
      %s1788 = ssub.s32 16, 16
      %1789 = vsyncadd [#allocation7], %s1788
      %s1791 = sshll.u32 [#allocation14], 4
      %s1792 = int_to_ptr.vmem [resolvable:$true] %s1791
      %1794 = dma.vmem_to_hbm [thread:$0]  %s1792, 16, %s9, [#allocation7]
    $region78: #{tpu_custom_call.1} parent=1 // pred_fallthru
      _
    // Predicated region
    $region79: #{tpu_custom_call.1} parent=1 // pred_check
      _
    $region80: #{tpu_custom_call.1} parent=1 // pred_check_branch
      %1796 = sbr.rel (0) target = $region82
    $region81: #{tpu_custom_call.1} parent=1 // pred_region
      %1797 = dma.done [#allocation7], 16
    $region82: #{tpu_custom_call.1} parent=1 // pred_fallthru
      _
    %1798 = vsyncpa [#allocation7], 1
    %1799 = vsyncpa [#allocation8], 1
    %1800 = vsyncpa [#allocation10], 1
    %1801 = vsyncpa [#allocation13], 1

</llo_original>
